<compile_context>
chip_gen: v7x
topology: tpu7x:2x2x1
jax: 0.10.0
libtpu: 0.0.40
codegen_flags: <defaults>
</compile_context>

<pallas_src>
import jax
import jax.numpy as jnp
from jax.experimental import pallas as pl
from jax.experimental.pallas import tpu as pltpu


# -----------------------------------------------------------------------------
# Kernel
# -----------------------------------------------------------------------------
def discriminator_kernel(emb_ref, h0_ref, w_ih0_ref, w_ih1a_ref, w_ih1b_ref,
                         w_hh_ref, b_gi_ref, b_hn_ref, wg_ref, bg_ref,
                         wo_ref, bo_ref, out_ref,
                         gi_f_ref, gi_b_ref, l0f_ref, l0b_ref):
    """Whole forward pass in one kernel invocation (no grid).

    emb_ref   : (T*B, E)    time-major embedded input, flattened over (T, B)
    h0_ref    : (4, B, H)   initial hidden, slots [l0_fwd, l0_bwd, l1_fwd, l1_bwd]
    w_ih0_ref : (2, E, 3H)  layer-0 input->gate weights (pre-transposed)
    w_ih1a_ref: (2, H, 3H)  layer-1 input->gate weights, rows for the fwd half
    w_ih1b_ref: (2, H, 3H)  layer-1 input->gate weights, rows for the bwd half
    w_hh_ref  : (4, H, 3H)  hidden->gate weights (pre-transposed)
    b_gi_ref  : (4, 1, 3H)  b_ih + [b_hh_r, b_hh_z, 0]   (folded gi bias)
    b_hn_ref  : (4, 1, H)   b_hh_n (n-gate hidden bias, kept in-loop)
    wg_ref    : (4H, H)     gru2hidden weight^T     bg_ref: (1, H)
    wo_ref    : (1, H)      hidden2out weight row   bo_ref: (1, 1)
    out_ref   : (B, 128)    sigmoid output, lane-broadcast (host slices [:, :1])
    gi_f_ref / gi_b_ref : (T*B, 3H) scratch — precomputed input->gate projections
    l0f_ref  / l0b_ref  : (T*B, H)  scratch — layer-0 fwd / bwd per-step outputs
    """
    TB, _ = emb_ref.shape
    _, B, H = h0_ref.shape
    T = TB // B
    H2 = 2 * H
    H3 = 3 * H

    def gru_step(gi, h, w_hh, b_hn_b):
        # gi already holds x @ W_ih^T + b_ih (+ b_hh for r/z gates).
        gh = jnp.dot(h, w_hh, preferred_element_type=jnp.float32)       # (B, 3H)
        r = jax.nn.sigmoid(gi[:, 0:H] + gh[:, 0:H])
        z = jax.nn.sigmoid(gi[:, H:H2] + gh[:, H:H2])
        n = jnp.tanh(gi[:, H2:H3] + r * (gh[:, H2:H3] + b_hn_b))
        return (1.0 - z) * n + z * h

    # ---- layer 0: input->gate projections for the whole sequence (hoisted) ----
    emb2d = emb_ref[...]                                                 # (T*B, E)
    gi_f_ref[...] = (jnp.dot(emb2d, w_ih0_ref[0],
                             preferred_element_type=jnp.float32) + b_gi_ref[0])
    gi_b_ref[...] = (jnp.dot(emb2d, w_ih0_ref[1],
                             preferred_element_type=jnp.float32) + b_gi_ref[1])

    # hoist per-direction recurrent weights / broadcast biases out of the loop
    w_hh_f0 = w_hh_ref[0]
    w_hh_b0 = w_hh_ref[1]
    b_hn_f0 = jnp.broadcast_to(b_hn_ref[0], (B, H))
    b_hn_b0 = jnp.broadcast_to(b_hn_ref[1], (B, H))

    # ---- layer 0 recurrence: fwd & bwd interleaved, fully unrolled ----
    h_f0 = h0_ref[0]
    h_b0 = h0_ref[1]
    for i in range(T):
        j = T - 1 - i
        h_f0 = gru_step(gi_f_ref[pl.ds(i * B, B), :], h_f0, w_hh_f0, b_hn_f0)
        h_b0 = gru_step(gi_b_ref[pl.ds(j * B, B), :], h_b0, w_hh_b0, b_hn_b0)
        l0f_ref[pl.ds(i * B, B), :] = h_f0
        l0b_ref[pl.ds(j * B, B), :] = h_b0

    # ---- layer 1: input->gate projections from layer-0 outputs (hoisted) ----
    # split-K over (fwd-half, bwd-half) so no lane-axis concatenate is needed.
    l0f = l0f_ref[...]                                                   # (T*B, H)
    l0b = l0b_ref[...]                                                   # (T*B, H)
    gi_f_ref[...] = (jnp.dot(l0f, w_ih1a_ref[0], preferred_element_type=jnp.float32)
                     + jnp.dot(l0b, w_ih1b_ref[0], preferred_element_type=jnp.float32)
                     + b_gi_ref[2])
    gi_b_ref[...] = (jnp.dot(l0f, w_ih1a_ref[1], preferred_element_type=jnp.float32)
                     + jnp.dot(l0b, w_ih1b_ref[1], preferred_element_type=jnp.float32)
                     + b_gi_ref[3])

    w_hh_f1 = w_hh_ref[2]
    w_hh_b1 = w_hh_ref[3]
    b_hn_f1 = jnp.broadcast_to(b_hn_ref[2], (B, H))
    b_hn_b1 = jnp.broadcast_to(b_hn_ref[3], (B, H))

    # ---- layer 1 recurrence: fwd & bwd interleaved, fully unrolled ----
    h_f1 = h0_ref[2]
    h_b1 = h0_ref[3]
    for i in range(T):
        j = T - 1 - i
        h_f1 = gru_step(gi_f_ref[pl.ds(i * B, B), :], h_f1, w_hh_f1, b_hn_f1)
        h_b1 = gru_step(gi_b_ref[pl.ds(j * B, B), :], h_b1, w_hh_b1, b_hn_b1)

    # ---- head: concat final hiddens -> linear -> tanh -> dot-row -> sigmoid ----
    hcat = jnp.concatenate([h_f0, h_b0, h_f1, h_b1], axis=-1)            # (B, 4H)
    g = jnp.tanh(jnp.dot(hcat, wg_ref[...],
                         preferred_element_type=jnp.float32) + bg_ref[...])
    # N=1 output matmul replaced by a VPU multiply + cross-lane reduction.
    logit = jnp.sum(g * wo_ref[...], axis=-1, keepdims=True) + bo_ref[...]
    out_ref[...] = jnp.broadcast_to(jax.nn.sigmoid(logit), out_ref.shape)


# -----------------------------------------------------------------------------
# Host-side wrapper (parameter packing + pallas_call)
# -----------------------------------------------------------------------------
def discriminator_forward(tokens, h0, params):
    H = params["hidden_dim"]
    emb_table = params["embedding"]                 # (V, E)
    E = emb_table.shape[1]
    B, T = tokens.shape
    B_pad = max(8, ((B + 7) // 8) * 8)              # fill an f32 sublane tile

    # Embedding lookup + permute(1,0,2) in plain JAX (glue), batch-padded.
    emb = emb_table[tokens]                         # (B, T, E)
    emb = jnp.transpose(emb, (1, 0, 2))             # (T, B, E)
    if B_pad > B:
        pad_b = B_pad - B
        emb = jnp.concatenate(
            [emb, jnp.zeros((T, pad_b, E), emb.dtype)], axis=1)
        h0p = jnp.concatenate(
            [h0, jnp.zeros((4, pad_b, H), h0.dtype)], axis=1)
    else:
        h0p = h0
    emb2d = emb.reshape(T * B_pad, E)               # (T*B_pad, E)

    # Pack GRU params, slot order [l0_fwd, l0_bwd, l1_fwd, l1_bwd], pre-transposed.
    gru = params["gru"]
    w_ih0_t = jnp.stack([gru[0][0].T, gru[1][0].T])         # (2, E, 3H)
    w_ih1f_t = gru[2][0].T                                  # (2H, 3H)
    w_ih1b_t = gru[3][0].T                                  # (2H, 3H)
    w_ih1a = jnp.stack([w_ih1f_t[:H], w_ih1b_t[:H]])        # (2, H, 3H) fwd-half rows
    w_ih1b = jnp.stack([w_ih1f_t[H:], w_ih1b_t[H:]])        # (2, H, 3H) bwd-half rows
    w_hh_t = jnp.stack([p[1].T for p in gru])               # (4, H, 3H)

    b_gi, b_hn = [], []
    for (_w_ih, _w_hh, b_ih, b_hh) in gru:
        # fold b_ih (all gates) and b_hh for r/z into the precomputed gi
        b_gi.append(b_ih + jnp.concatenate(
            [b_hh[:2 * H], jnp.zeros((H,), b_hh.dtype)]))
        b_hn.append(b_hh[2 * H:])                           # n-gate hidden bias
    b_gi = jnp.stack(b_gi)[:, None, :]                      # (4, 1, 3H)
    b_hn = jnp.stack(b_hn)[:, None, :]                      # (4, 1, H)

    wg_t = params["wg"].T                                   # (4H, H)
    bg = params["bg"].reshape(1, H)                         # (1, H)
    wo_row = params["wo"].reshape(1, H)                     # (1, H)
    bo = params["bo"].reshape(1, 1)                         # (1, 1)

    vmem = pl.BlockSpec(memory_space=pltpu.MemorySpace.VMEM)
    out = pl.pallas_call(
        discriminator_kernel,
        out_shape=jax.ShapeDtypeStruct((B_pad, 128), jnp.float32),
        in_specs=[vmem] * 12,
        out_specs=vmem,
        scratch_shapes=[
            pltpu.VMEM((T * B_pad, 3 * H), jnp.float32),    # gi fwd (reused per layer)
            pltpu.VMEM((T * B_pad, 3 * H), jnp.float32),    # gi bwd (reused per layer)
            pltpu.VMEM((T * B_pad, H), jnp.float32),        # layer-0 fwd outputs
            pltpu.VMEM((T * B_pad, H), jnp.float32),        # layer-0 bwd outputs
        ],
    )(emb2d, h0p, w_ih0_t, w_ih1a, w_ih1b, w_hh_t, b_gi, b_hn,
      wg_t, bg, wo_row, bo)
    return out[:B, :1]


# -----------------------------------------------------------------------------
# Pure-JAX reference (mirrors PyTorch semantics) for a correctness check
# -----------------------------------------------------------------------------
def discriminator_reference(tokens, h0, params):
    H = params["hidden_dim"]
    x = jnp.transpose(params["embedding"][tokens], (1, 0, 2))   # (T, B, E)
    T = x.shape[0]

    def run_dir(xs, h, slot, reverse):
        w_ih, w_hh, b_ih, b_hh = params["gru"][slot]
        outs = [None] * T
        order = range(T - 1, -1, -1) if reverse else range(T)
        for t in order:
            gi = xs[t] @ w_ih.T + b_ih
            gh = h @ w_hh.T + b_hh
            r = jax.nn.sigmoid(gi[:, :H] + gh[:, :H])
            z = jax.nn.sigmoid(gi[:, H:2 * H] + gh[:, H:2 * H])
            n = jnp.tanh(gi[:, 2 * H:] + r * gh[:, 2 * H:])
            h = (1.0 - z) * n + z * h
            outs[t] = h
        return jnp.stack(outs), h

    of, hf0 = run_dir(x, h0[0], 0, False)
    ob, hb0 = run_dir(x, h0[1], 1, True)
    x1 = jnp.concatenate([of, ob], axis=-1)
    _, hf1 = run_dir(x1, h0[2], 2, False)
    _, hb1 = run_dir(x1, h0[3], 3, True)
    hcat = jnp.concatenate([hf0, hb0, hf1, hb1], axis=-1)        # (B, 4H)
    g = jnp.tanh(hcat @ params["wg"].T + params["bg"])
    return jax.nn.sigmoid(g @ params["wo"].T + params["bo"])


# -----------------------------------------------------------------------------
# Deterministic parameter construction + demo
# -----------------------------------------------------------------------------
def make_params(key, vocab_size, embedding_dim, hidden_dim):
    H, E = hidden_dim, embedding_dim
    keys = iter(jax.random.split(key, 32))
    u = lambda k, shape, s: jax.random.uniform(k, shape, jnp.float32, -s, s)

    params = {"hidden_dim": H}
    params["embedding"] = u(next(keys), (vocab_size, E), 0.1)

    s = 1.0 / jnp.sqrt(H)
    gru = []
    # slot order: [layer0 fwd, layer0 bwd, layer1 fwd, layer1 bwd]
    for layer in range(2):
        in_dim = E if layer == 0 else 2 * H
        for _direction in range(2):
            gru.append((u(next(keys), (3 * H, in_dim), s),   # weight_ih
                        u(next(keys), (3 * H, H), s),        # weight_hh
                        u(next(keys), (3 * H,), s),          # bias_ih
                        u(next(keys), (3 * H,), s)))         # bias_hh
    params["gru"] = gru

    params["wg"] = u(next(keys), (H, 4 * H), 1.0 / jnp.sqrt(4 * H))
    params["bg"] = u(next(keys), (H,), 1.0 / jnp.sqrt(4 * H))
    params["wo"] = u(next(keys), (1, H), s)
    params["bo"] = u(next(keys), (1,), s)
    return params


if __name__ == "__main__":
    # Small, module-consistent shapes.
    batch, seq_len = 2, 8
    vocab_size, embedding_dim, hidden_dim = 32, 64, 32

    key = jax.random.PRNGKey(0)
    k_par, k_tok = jax.random.split(key)
    params = make_params(k_par, vocab_size, embedding_dim, hidden_dim)

    tokens = jax.random.randint(k_tok, (batch, seq_len), 0, vocab_size,
                                dtype=jnp.int32)
    # init_hidden: zeros of shape (2 * 2 * 1, batch, hidden_dim)
    h0 = jnp.zeros((4, batch, hidden_dim), jnp.float32)

    out = discriminator_forward(tokens, h0, params)       # (batch, 1)
    out = jax.block_until_ready(out)

    ref = jax.block_until_ready(discriminator_reference(tokens, h0, params))
    assert out.shape == (batch, 1)
    assert jnp.allclose(out, ref, atol=2e-5, rtol=2e-5), (out, ref)

    print("KERNEL_OK")
</pallas_src>

<mosaic_0001>
module attributes {stable_mosaic.version = 11 : i64} {
  func.func @discriminator_kernel(%arg0: memref<64x64xf32, #tpu.memory_space<vmem>>, %arg1: memref<4x8x32xf32, #tpu.memory_space<vmem>>, %arg2: memref<2x64x96xf32, #tpu.memory_space<vmem>>, %arg3: memref<2x32x96xf32, #tpu.memory_space<vmem>>, %arg4: memref<2x32x96xf32, #tpu.memory_space<vmem>>, %arg5: memref<4x32x96xf32, #tpu.memory_space<vmem>>, %arg6: memref<4x1x96xf32, #tpu.memory_space<vmem>>, %arg7: memref<4x1x32xf32, #tpu.memory_space<vmem>>, %arg8: memref<128x32xf32, #tpu.memory_space<vmem>>, %arg9: memref<1x32xf32, #tpu.memory_space<vmem>>, %arg10: memref<1x32xf32, #tpu.memory_space<vmem>>, %arg11: memref<1x1xf32, #tpu.memory_space<vmem>>, %arg12: memref<8x128xf32, #tpu.memory_space<vmem>>, %arg13: memref<64x96xf32, #tpu.memory_space<vmem>>, %arg14: memref<64x96xf32, #tpu.memory_space<vmem>>, %arg15: memref<64x32xf32, #tpu.memory_space<vmem>>, %arg16: memref<64x32xf32, #tpu.memory_space<vmem>>) attributes {dimension_semantics = [], scalar_prefetch = 0 : i64, scratch_operands = 4 : i64, tpu.core_type = #tpu.core_type<tc>} {
    %c0 = arith.constant 0 : index
    %c0_0 = arith.constant 0 : index
    %0 = vector.load %arg0[%c0, %c0_0] : memref<64x64xf32, #tpu.memory_space<vmem>>, vector<64x64xf32>
    %c0_1 = arith.constant 0 : index
    %c0_2 = arith.constant 0 : index
    %c0_3 = arith.constant 0 : index
    %1 = vector.load %arg2[%c0_1, %c0_2, %c0_3] : memref<2x64x96xf32, #tpu.memory_space<vmem>>, vector<1x64x96xf32>
    %2 = vector.shape_cast %1 : vector<1x64x96xf32> to vector<64x96xf32>
    %cst = arith.constant dense<0.000000e+00> : vector<64x96xf32>
    %3 = tpu.matmul %0, %2, %cst {dimension_numbers = #tpu.dot_dimension_numbers<[1], [0], [0], [1], [0, 0, 1, 1], [], []>} : vector<64x64xf32>, vector<64x96xf32>, vector<64x96xf32> -> vector<64x96xf32>
    %c0_4 = arith.constant 0 : index
    %c0_5 = arith.constant 0 : index
    %c0_6 = arith.constant 0 : index
    %4 = vector.load %arg6[%c0_4, %c0_5, %c0_6] : memref<4x1x96xf32, #tpu.memory_space<vmem>>, vector<1x1x96xf32>
    %5 = vector.shape_cast %4 : vector<1x1x96xf32> to vector<1x96xf32>
    %6 = vector.broadcast %5 : vector<1x96xf32> to vector<64x96xf32>
    %7 = arith.addf %3, %6 : vector<64x96xf32>
    %c0_7 = arith.constant 0 : index
    %c0_8 = arith.constant 0 : index
    %8 = vector.load %arg13[%c0_7, %c0_8] : memref<64x96xf32, #tpu.memory_space<vmem>>, vector<64x96xf32>
    tpu.vector_store %arg13[%c0_7, %c0_8], %7 {strides = array<i32>} : memref<64x96xf32, #tpu.memory_space<vmem>>, vector<64x96xf32>,
    %c1 = arith.constant 1 : index
    %c0_9 = arith.constant 0 : index
    %c0_10 = arith.constant 0 : index
    %9 = vector.load %arg2[%c1, %c0_9, %c0_10] : memref<2x64x96xf32, #tpu.memory_space<vmem>>, vector<1x64x96xf32>
    %10 = vector.shape_cast %9 : vector<1x64x96xf32> to vector<64x96xf32>
    %cst_11 = arith.constant dense<0.000000e+00> : vector<64x96xf32>
    %11 = tpu.matmul %0, %10, %cst_11 {dimension_numbers = #tpu.dot_dimension_numbers<[1], [0], [0], [1], [0, 0, 1, 1], [], []>} : vector<64x64xf32>, vector<64x96xf32>, vector<64x96xf32> -> vector<64x96xf32>
    %c1_12 = arith.constant 1 : index
    %c0_13 = arith.constant 0 : index
    %c0_14 = arith.constant 0 : index
    %12 = vector.load %arg6[%c1_12, %c0_13, %c0_14] : memref<4x1x96xf32, #tpu.memory_space<vmem>>, vector<1x1x96xf32>
    %13 = vector.shape_cast %12 : vector<1x1x96xf32> to vector<1x96xf32>
    %14 = vector.broadcast %13 : vector<1x96xf32> to vector<64x96xf32>
    %15 = arith.addf %11, %14 : vector<64x96xf32>
    %c0_15 = arith.constant 0 : index
    %c0_16 = arith.constant 0 : index
    %16 = vector.load %arg14[%c0_15, %c0_16] : memref<64x96xf32, #tpu.memory_space<vmem>>, vector<64x96xf32>
    tpu.vector_store %arg14[%c0_15, %c0_16], %15 {strides = array<i32>} : memref<64x96xf32, #tpu.memory_space<vmem>>, vector<64x96xf32>,
    %c0_17 = arith.constant 0 : index
    %c0_18 = arith.constant 0 : index
    %c0_19 = arith.constant 0 : index
    %17 = vector.load %arg5[%c0_17, %c0_18, %c0_19] : memref<4x32x96xf32, #tpu.memory_space<vmem>>, vector<1x32x96xf32>
    %18 = vector.shape_cast %17 : vector<1x32x96xf32> to vector<32x96xf32>
    %c1_20 = arith.constant 1 : index
    %c0_21 = arith.constant 0 : index
    %c0_22 = arith.constant 0 : index
    %19 = vector.load %arg5[%c1_20, %c0_21, %c0_22] : memref<4x32x96xf32, #tpu.memory_space<vmem>>, vector<1x32x96xf32>
    %20 = vector.shape_cast %19 : vector<1x32x96xf32> to vector<32x96xf32>
    %c0_23 = arith.constant 0 : index
    %c0_24 = arith.constant 0 : index
    %c0_25 = arith.constant 0 : index
    %21 = vector.load %arg7[%c0_23, %c0_24, %c0_25] : memref<4x1x32xf32, #tpu.memory_space<vmem>>, vector<1x1x32xf32>
    %22 = vector.shape_cast %21 : vector<1x1x32xf32> to vector<1x32xf32>
    %23 = vector.shape_cast %22 : vector<1x32xf32> to vector<1x32xf32>
    %24 = vector.broadcast %23 : vector<1x32xf32> to vector<8x32xf32>
    %c1_26 = arith.constant 1 : index
    %c0_27 = arith.constant 0 : index
    %c0_28 = arith.constant 0 : index
    %25 = vector.load %arg7[%c1_26, %c0_27, %c0_28] : memref<4x1x32xf32, #tpu.memory_space<vmem>>, vector<1x1x32xf32>
    %26 = vector.shape_cast %25 : vector<1x1x32xf32> to vector<1x32xf32>
    %27 = vector.shape_cast %26 : vector<1x32xf32> to vector<1x32xf32>
    %28 = vector.broadcast %27 : vector<1x32xf32> to vector<8x32xf32>
    %c0_29 = arith.constant 0 : index
    %c0_30 = arith.constant 0 : index
    %c0_31 = arith.constant 0 : index
    %29 = vector.load %arg1[%c0_29, %c0_30, %c0_31] : memref<4x8x32xf32, #tpu.memory_space<vmem>>, vector<1x8x32xf32>
    %30 = vector.shape_cast %29 : vector<1x8x32xf32> to vector<8x32xf32>
    %c1_32 = arith.constant 1 : index
    %c0_33 = arith.constant 0 : index
    %c0_34 = arith.constant 0 : index
    %31 = vector.load %arg1[%c1_32, %c0_33, %c0_34] : memref<4x8x32xf32, #tpu.memory_space<vmem>>, vector<1x8x32xf32>
    %32 = vector.shape_cast %31 : vector<1x8x32xf32> to vector<8x32xf32>
    %c0_35 = arith.constant 0 : index
    %c0_36 = arith.constant 0 : index
    %33 = vector.load %arg13[%c0_35, %c0_36] : memref<64x96xf32, #tpu.memory_space<vmem>>, vector<8x96xf32>
    %cst_37 = arith.constant dense<0.000000e+00> : vector<8x96xf32>
    %34 = tpu.matmul %30, %18, %cst_37 {dimension_numbers = #tpu.dot_dimension_numbers<[1], [0], [0], [1], [0, 0, 1, 1], [], []>} : vector<8x32xf32>, vector<32x96xf32>, vector<8x96xf32> -> vector<8x96xf32>
    %35 = vector.extract_strided_slice %33 {offsets = [0, 0], sizes = [8, 32], strides = [1, 1]} : vector<8x96xf32> to vector<8x32xf32>
    %36 = vector.extract_strided_slice %34 {offsets = [0, 0], sizes = [8, 32], strides = [1, 1]} : vector<8x96xf32> to vector<8x32xf32>
    %37 = arith.addf %35, %36 : vector<8x32xf32>
    %38 = arith.negf %37 : vector<8x32xf32>
    %39 = math.exp %38 : vector<8x32xf32>
    %cst_38 = arith.constant 1.000000e+00 : f32
    %40 = vector.broadcast %cst_38 : f32 to vector<8x32xf32>
    %41 = arith.addf %40, %39 : vector<8x32xf32>
    %42 = arith.divf %40, %41 : vector<8x32xf32>
    %43 = vector.extract_strided_slice %33 {offsets = [0, 32], sizes = [8, 32], strides = [1, 1]} : vector<8x96xf32> to vector<8x32xf32>
    %44 = vector.extract_strided_slice %34 {offsets = [0, 32], sizes = [8, 32], strides = [1, 1]} : vector<8x96xf32> to vector<8x32xf32>
    %45 = arith.addf %43, %44 : vector<8x32xf32>
    %46 = arith.negf %45 : vector<8x32xf32>
    %47 = math.exp %46 : vector<8x32xf32>
    %cst_39 = arith.constant 1.000000e+00 : f32
    %48 = vector.broadcast %cst_39 : f32 to vector<8x32xf32>
    %49 = arith.addf %48, %47 : vector<8x32xf32>
    %50 = arith.divf %48, %49 : vector<8x32xf32>
    %51 = vector.extract_strided_slice %33 {offsets = [0, 64], sizes = [8, 32], strides = [1, 1]} : vector<8x96xf32> to vector<8x32xf32>
    %52 = vector.extract_strided_slice %34 {offsets = [0, 64], sizes = [8, 32], strides = [1, 1]} : vector<8x96xf32> to vector<8x32xf32>
    %53 = arith.addf %52, %24 : vector<8x32xf32>
    %54 = arith.mulf %42, %53 : vector<8x32xf32>
    %55 = arith.addf %51, %54 : vector<8x32xf32>
    %56 = math.tanh %55 : vector<8x32xf32>
    %cst_40 = arith.constant 1.000000e+00 : f32
    %57 = vector.broadcast %cst_40 : f32 to vector<8x32xf32>
    %58 = arith.subf %57, %50 : vector<8x32xf32>
    %59 = arith.mulf %58, %56 : vector<8x32xf32>
    %60 = arith.mulf %50, %30 : vector<8x32xf32>
    %61 = arith.addf %59, %60 : vector<8x32xf32>
    %c56 = arith.constant 56 : index
    %c0_41 = arith.constant 0 : index
    %62 = vector.load %arg14[%c56, %c0_41] : memref<64x96xf32, #tpu.memory_space<vmem>>, vector<8x96xf32>
    %cst_42 = arith.constant dense<0.000000e+00> : vector<8x96xf32>
    %63 = tpu.matmul %32, %20, %cst_42 {dimension_numbers = #tpu.dot_dimension_numbers<[1], [0], [0], [1], [0, 0, 1, 1], [], []>} : vector<8x32xf32>, vector<32x96xf32>, vector<8x96xf32> -> vector<8x96xf32>
    %64 = vector.extract_strided_slice %62 {offsets = [0, 0], sizes = [8, 32], strides = [1, 1]} : vector<8x96xf32> to vector<8x32xf32>
    %65 = vector.extract_strided_slice %63 {offsets = [0, 0], sizes = [8, 32], strides = [1, 1]} : vector<8x96xf32> to vector<8x32xf32>
    %66 = arith.addf %64, %65 : vector<8x32xf32>
    %67 = arith.negf %66 : vector<8x32xf32>
    %68 = math.exp %67 : vector<8x32xf32>
    %cst_43 = arith.constant 1.000000e+00 : f32
    %69 = vector.broadcast %cst_43 : f32 to vector<8x32xf32>
    %70 = arith.addf %69, %68 : vector<8x32xf32>
    %71 = arith.divf %69, %70 : vector<8x32xf32>
    %72 = vector.extract_strided_slice %62 {offsets = [0, 32], sizes = [8, 32], strides = [1, 1]} : vector<8x96xf32> to vector<8x32xf32>
    %73 = vector.extract_strided_slice %63 {offsets = [0, 32], sizes = [8, 32], strides = [1, 1]} : vector<8x96xf32> to vector<8x32xf32>
    %74 = arith.addf %72, %73 : vector<8x32xf32>
    %75 = arith.negf %74 : vector<8x32xf32>
    %76 = math.exp %75 : vector<8x32xf32>
    %cst_44 = arith.constant 1.000000e+00 : f32
    %77 = vector.broadcast %cst_44 : f32 to vector<8x32xf32>
    %78 = arith.addf %77, %76 : vector<8x32xf32>
    %79 = arith.divf %77, %78 : vector<8x32xf32>
    %80 = vector.extract_strided_slice %62 {offsets = [0, 64], sizes = [8, 32], strides = [1, 1]} : vector<8x96xf32> to vector<8x32xf32>
    %81 = vector.extract_strided_slice %63 {offsets = [0, 64], sizes = [8, 32], strides = [1, 1]} : vector<8x96xf32> to vector<8x32xf32>
    %82 = arith.addf %81, %28 : vector<8x32xf32>
    %83 = arith.mulf %71, %82 : vector<8x32xf32>
    %84 = arith.addf %80, %83 : vector<8x32xf32>
    %85 = math.tanh %84 : vector<8x32xf32>
    %cst_45 = arith.constant 1.000000e+00 : f32
    %86 = vector.broadcast %cst_45 : f32 to vector<8x32xf32>
    %87 = arith.subf %86, %79 : vector<8x32xf32>
    %88 = arith.mulf %87, %85 : vector<8x32xf32>
    %89 = arith.mulf %79, %32 : vector<8x32xf32>
    %90 = arith.addf %88, %89 : vector<8x32xf32>
    %c0_46 = arith.constant 0 : index
    %c0_47 = arith.constant 0 : index
    %91 = vector.load %arg15[%c0_46, %c0_47] : memref<64x32xf32, #tpu.memory_space<vmem>>, vector<8x32xf32>
    tpu.vector_store %arg15[%c0_46, %c0_47], %61 {strides = array<i32>} : memref<64x32xf32, #tpu.memory_space<vmem>>, vector<8x32xf32>,
    %c56_48 = arith.constant 56 : index
    %c0_49 = arith.constant 0 : index
    %92 = vector.load %arg16[%c56_48, %c0_49] : memref<64x32xf32, #tpu.memory_space<vmem>>, vector<8x32xf32>
    tpu.vector_store %arg16[%c56_48, %c0_49], %90 {strides = array<i32>} : memref<64x32xf32, #tpu.memory_space<vmem>>, vector<8x32xf32>,
    %c8 = arith.constant 8 : index
    %c0_50 = arith.constant 0 : index
    %93 = vector.load %arg13[%c8, %c0_50] : memref<64x96xf32, #tpu.memory_space<vmem>>, vector<8x96xf32>
    %cst_51 = arith.constant dense<0.000000e+00> : vector<8x96xf32>
    %94 = tpu.matmul %61, %18, %cst_51 {dimension_numbers = #tpu.dot_dimension_numbers<[1], [0], [0], [1], [0, 0, 1, 1], [], []>} : vector<8x32xf32>, vector<32x96xf32>, vector<8x96xf32> -> vector<8x96xf32>
    %95 = vector.extract_strided_slice %93 {offsets = [0, 0], sizes = [8, 32], strides = [1, 1]} : vector<8x96xf32> to vector<8x32xf32>
    %96 = vector.extract_strided_slice %94 {offsets = [0, 0], sizes = [8, 32], strides = [1, 1]} : vector<8x96xf32> to vector<8x32xf32>
    %97 = arith.addf %95, %96 : vector<8x32xf32>
    %98 = arith.negf %97 : vector<8x32xf32>
    %99 = math.exp %98 : vector<8x32xf32>
    %cst_52 = arith.constant 1.000000e+00 : f32
    %100 = vector.broadcast %cst_52 : f32 to vector<8x32xf32>
    %101 = arith.addf %100, %99 : vector<8x32xf32>
    %102 = arith.divf %100, %101 : vector<8x32xf32>
    %103 = vector.extract_strided_slice %93 {offsets = [0, 32], sizes = [8, 32], strides = [1, 1]} : vector<8x96xf32> to vector<8x32xf32>
    %104 = vector.extract_strided_slice %94 {offsets = [0, 32], sizes = [8, 32], strides = [1, 1]} : vector<8x96xf32> to vector<8x32xf32>
    %105 = arith.addf %103, %104 : vector<8x32xf32>
    %106 = arith.negf %105 : vector<8x32xf32>
    %107 = math.exp %106 : vector<8x32xf32>
    %cst_53 = arith.constant 1.000000e+00 : f32
    %108 = vector.broadcast %cst_53 : f32 to vector<8x32xf32>
    %109 = arith.addf %108, %107 : vector<8x32xf32>
    %110 = arith.divf %108, %109 : vector<8x32xf32>
    %111 = vector.extract_strided_slice %93 {offsets = [0, 64], sizes = [8, 32], strides = [1, 1]} : vector<8x96xf32> to vector<8x32xf32>
    %112 = vector.extract_strided_slice %94 {offsets = [0, 64], sizes = [8, 32], strides = [1, 1]} : vector<8x96xf32> to vector<8x32xf32>
    %113 = arith.addf %112, %24 : vector<8x32xf32>
    %114 = arith.mulf %102, %113 : vector<8x32xf32>
    %115 = arith.addf %111, %114 : vector<8x32xf32>
    %116 = math.tanh %115 : vector<8x32xf32>
    %cst_54 = arith.constant 1.000000e+00 : f32
    %117 = vector.broadcast %cst_54 : f32 to vector<8x32xf32>
    %118 = arith.subf %117, %110 : vector<8x32xf32>
    %119 = arith.mulf %118, %116 : vector<8x32xf32>
    %120 = arith.mulf %110, %61 : vector<8x32xf32>
    %121 = arith.addf %119, %120 : vector<8x32xf32>
    %c48 = arith.constant 48 : index
    %c0_55 = arith.constant 0 : index
    %122 = vector.load %arg14[%c48, %c0_55] : memref<64x96xf32, #tpu.memory_space<vmem>>, vector<8x96xf32>
    %cst_56 = arith.constant dense<0.000000e+00> : vector<8x96xf32>
    %123 = tpu.matmul %90, %20, %cst_56 {dimension_numbers = #tpu.dot_dimension_numbers<[1], [0], [0], [1], [0, 0, 1, 1], [], []>} : vector<8x32xf32>, vector<32x96xf32>, vector<8x96xf32> -> vector<8x96xf32>
    %124 = vector.extract_strided_slice %122 {offsets = [0, 0], sizes = [8, 32], strides = [1, 1]} : vector<8x96xf32> to vector<8x32xf32>
    %125 = vector.extract_strided_slice %123 {offsets = [0, 0], sizes = [8, 32], strides = [1, 1]} : vector<8x96xf32> to vector<8x32xf32>
    %126 = arith.addf %124, %125 : vector<8x32xf32>
    %127 = arith.negf %126 : vector<8x32xf32>
    %128 = math.exp %127 : vector<8x32xf32>
    %cst_57 = arith.constant 1.000000e+00 : f32
    %129 = vector.broadcast %cst_57 : f32 to vector<8x32xf32>
    %130 = arith.addf %129, %128 : vector<8x32xf32>
    %131 = arith.divf %129, %130 : vector<8x32xf32>
    %132 = vector.extract_strided_slice %122 {offsets = [0, 32], sizes = [8, 32], strides = [1, 1]} : vector<8x96xf32> to vector<8x32xf32>
    %133 = vector.extract_strided_slice %123 {offsets = [0, 32], sizes = [8, 32], strides = [1, 1]} : vector<8x96xf32> to vector<8x32xf32>
    %134 = arith.addf %132, %133 : vector<8x32xf32>
    %135 = arith.negf %134 : vector<8x32xf32>
    %136 = math.exp %135 : vector<8x32xf32>
    %cst_58 = arith.constant 1.000000e+00 : f32
    %137 = vector.broadcast %cst_58 : f32 to vector<8x32xf32>
    %138 = arith.addf %137, %136 : vector<8x32xf32>
    %139 = arith.divf %137, %138 : vector<8x32xf32>
    %140 = vector.extract_strided_slice %122 {offsets = [0, 64], sizes = [8, 32], strides = [1, 1]} : vector<8x96xf32> to vector<8x32xf32>
    %141 = vector.extract_strided_slice %123 {offsets = [0, 64], sizes = [8, 32], strides = [1, 1]} : vector<8x96xf32> to vector<8x32xf32>
    %142 = arith.addf %141, %28 : vector<8x32xf32>
    %143 = arith.mulf %131, %142 : vector<8x32xf32>
    %144 = arith.addf %140, %143 : vector<8x32xf32>
    %145 = math.tanh %144 : vector<8x32xf32>
    %cst_59 = arith.constant 1.000000e+00 : f32
    %146 = vector.broadcast %cst_59 : f32 to vector<8x32xf32>
    %147 = arith.subf %146, %139 : vector<8x32xf32>
    %148 = arith.mulf %147, %145 : vector<8x32xf32>
    %149 = arith.mulf %139, %90 : vector<8x32xf32>
    %150 = arith.addf %148, %149 : vector<8x32xf32>
    %c8_60 = arith.constant 8 : index
    %c0_61 = arith.constant 0 : index
    %151 = vector.load %arg15[%c8_60, %c0_61] : memref<64x32xf32, #tpu.memory_space<vmem>>, vector<8x32xf32>
    tpu.vector_store %arg15[%c8_60, %c0_61], %121 {strides = array<i32>} : memref<64x32xf32, #tpu.memory_space<vmem>>, vector<8x32xf32>,
    %c48_62 = arith.constant 48 : index
    %c0_63 = arith.constant 0 : index
    %152 = vector.load %arg16[%c48_62, %c0_63] : memref<64x32xf32, #tpu.memory_space<vmem>>, vector<8x32xf32>
    tpu.vector_store %arg16[%c48_62, %c0_63], %150 {strides = array<i32>} : memref<64x32xf32, #tpu.memory_space<vmem>>, vector<8x32xf32>,
    %c16 = arith.constant 16 : index
    %c0_64 = arith.constant 0 : index
    %153 = vector.load %arg13[%c16, %c0_64] : memref<64x96xf32, #tpu.memory_space<vmem>>, vector<8x96xf32>
    %cst_65 = arith.constant dense<0.000000e+00> : vector<8x96xf32>
    %154 = tpu.matmul %121, %18, %cst_65 {dimension_numbers = #tpu.dot_dimension_numbers<[1], [0], [0], [1], [0, 0, 1, 1], [], []>} : vector<8x32xf32>, vector<32x96xf32>, vector<8x96xf32> -> vector<8x96xf32>
    %155 = vector.extract_strided_slice %153 {offsets = [0, 0], sizes = [8, 32], strides = [1, 1]} : vector<8x96xf32> to vector<8x32xf32>
    %156 = vector.extract_strided_slice %154 {offsets = [0, 0], sizes = [8, 32], strides = [1, 1]} : vector<8x96xf32> to vector<8x32xf32>
    %157 = arith.addf %155, %156 : vector<8x32xf32>
    %158 = arith.negf %157 : vector<8x32xf32>
    %159 = math.exp %158 : vector<8x32xf32>
    %cst_66 = arith.constant 1.000000e+00 : f32
    %160 = vector.broadcast %cst_66 : f32 to vector<8x32xf32>
    %161 = arith.addf %160, %159 : vector<8x32xf32>
    %162 = arith.divf %160, %161 : vector<8x32xf32>
    %163 = vector.extract_strided_slice %153 {offsets = [0, 32], sizes = [8, 32], strides = [1, 1]} : vector<8x96xf32> to vector<8x32xf32>
    %164 = vector.extract_strided_slice %154 {offsets = [0, 32], sizes = [8, 32], strides = [1, 1]} : vector<8x96xf32> to vector<8x32xf32>
    %165 = arith.addf %163, %164 : vector<8x32xf32>
    %166 = arith.negf %165 : vector<8x32xf32>
    %167 = math.exp %166 : vector<8x32xf32>
    %cst_67 = arith.constant 1.000000e+00 : f32
    %168 = vector.broadcast %cst_67 : f32 to vector<8x32xf32>
    %169 = arith.addf %168, %167 : vector<8x32xf32>
    %170 = arith.divf %168, %169 : vector<8x32xf32>
    %171 = vector.extract_strided_slice %153 {offsets = [0, 64], sizes = [8, 32], strides = [1, 1]} : vector<8x96xf32> to vector<8x32xf32>
    %172 = vector.extract_strided_slice %154 {offsets = [0, 64], sizes = [8, 32], strides = [1, 1]} : vector<8x96xf32> to vector<8x32xf32>
    %173 = arith.addf %172, %24 : vector<8x32xf32>
    %174 = arith.mulf %162, %173 : vector<8x32xf32>
    %175 = arith.addf %171, %174 : vector<8x32xf32>
    %176 = math.tanh %175 : vector<8x32xf32>
    %cst_68 = arith.constant 1.000000e+00 : f32
    %177 = vector.broadcast %cst_68 : f32 to vector<8x32xf32>
    %178 = arith.subf %177, %170 : vector<8x32xf32>
    %179 = arith.mulf %178, %176 : vector<8x32xf32>
    %180 = arith.mulf %170, %121 : vector<8x32xf32>
    %181 = arith.addf %179, %180 : vector<8x32xf32>
    %c40 = arith.constant 40 : index
    %c0_69 = arith.constant 0 : index
    %182 = vector.load %arg14[%c40, %c0_69] : memref<64x96xf32, #tpu.memory_space<vmem>>, vector<8x96xf32>
    %cst_70 = arith.constant dense<0.000000e+00> : vector<8x96xf32>
    %183 = tpu.matmul %150, %20, %cst_70 {dimension_numbers = #tpu.dot_dimension_numbers<[1], [0], [0], [1], [0, 0, 1, 1], [], []>} : vector<8x32xf32>, vector<32x96xf32>, vector<8x96xf32> -> vector<8x96xf32>
    %184 = vector.extract_strided_slice %182 {offsets = [0, 0], sizes = [8, 32], strides = [1, 1]} : vector<8x96xf32> to vector<8x32xf32>
    %185 = vector.extract_strided_slice %183 {offsets = [0, 0], sizes = [8, 32], strides = [1, 1]} : vector<8x96xf32> to vector<8x32xf32>
    %186 = arith.addf %184, %185 : vector<8x32xf32>
    %187 = arith.negf %186 : vector<8x32xf32>
    %188 = math.exp %187 : vector<8x32xf32>
    %cst_71 = arith.constant 1.000000e+00 : f32
    %189 = vector.broadcast %cst_71 : f32 to vector<8x32xf32>
    %190 = arith.addf %189, %188 : vector<8x32xf32>
    %191 = arith.divf %189, %190 : vector<8x32xf32>
    %192 = vector.extract_strided_slice %182 {offsets = [0, 32], sizes = [8, 32], strides = [1, 1]} : vector<8x96xf32> to vector<8x32xf32>
    %193 = vector.extract_strided_slice %183 {offsets = [0, 32], sizes = [8, 32], strides = [1, 1]} : vector<8x96xf32> to vector<8x32xf32>
    %194 = arith.addf %192, %193 : vector<8x32xf32>
    %195 = arith.negf %194 : vector<8x32xf32>
    %196 = math.exp %195 : vector<8x32xf32>
    %cst_72 = arith.constant 1.000000e+00 : f32
    %197 = vector.broadcast %cst_72 : f32 to vector<8x32xf32>
    %198 = arith.addf %197, %196 : vector<8x32xf32>
    %199 = arith.divf %197, %198 : vector<8x32xf32>
    %200 = vector.extract_strided_slice %182 {offsets = [0, 64], sizes = [8, 32], strides = [1, 1]} : vector<8x96xf32> to vector<8x32xf32>
    %201 = vector.extract_strided_slice %183 {offsets = [0, 64], sizes = [8, 32], strides = [1, 1]} : vector<8x96xf32> to vector<8x32xf32>
    %202 = arith.addf %201, %28 : vector<8x32xf32>
    %203 = arith.mulf %191, %202 : vector<8x32xf32>
    %204 = arith.addf %200, %203 : vector<8x32xf32>
    %205 = math.tanh %204 : vector<8x32xf32>
    %cst_73 = arith.constant 1.000000e+00 : f32
    %206 = vector.broadcast %cst_73 : f32 to vector<8x32xf32>
    %207 = arith.subf %206, %199 : vector<8x32xf32>
    %208 = arith.mulf %207, %205 : vector<8x32xf32>
    %209 = arith.mulf %199, %150 : vector<8x32xf32>
    %210 = arith.addf %208, %209 : vector<8x32xf32>
    %c16_74 = arith.constant 16 : index
    %c0_75 = arith.constant 0 : index
    %211 = vector.load %arg15[%c16_74, %c0_75] : memref<64x32xf32, #tpu.memory_space<vmem>>, vector<8x32xf32>
    tpu.vector_store %arg15[%c16_74, %c0_75], %181 {strides = array<i32>} : memref<64x32xf32, #tpu.memory_space<vmem>>, vector<8x32xf32>,
    %c40_76 = arith.constant 40 : index
    %c0_77 = arith.constant 0 : index
    %212 = vector.load %arg16[%c40_76, %c0_77] : memref<64x32xf32, #tpu.memory_space<vmem>>, vector<8x32xf32>
    tpu.vector_store %arg16[%c40_76, %c0_77], %210 {strides = array<i32>} : memref<64x32xf32, #tpu.memory_space<vmem>>, vector<8x32xf32>,
    %c24 = arith.constant 24 : index
    %c0_78 = arith.constant 0 : index
    %213 = vector.load %arg13[%c24, %c0_78] : memref<64x96xf32, #tpu.memory_space<vmem>>, vector<8x96xf32>
    %cst_79 = arith.constant dense<0.000000e+00> : vector<8x96xf32>
    %214 = tpu.matmul %181, %18, %cst_79 {dimension_numbers = #tpu.dot_dimension_numbers<[1], [0], [0], [1], [0, 0, 1, 1], [], []>} : vector<8x32xf32>, vector<32x96xf32>, vector<8x96xf32> -> vector<8x96xf32>
    %215 = vector.extract_strided_slice %213 {offsets = [0, 0], sizes = [8, 32], strides = [1, 1]} : vector<8x96xf32> to vector<8x32xf32>
    %216 = vector.extract_strided_slice %214 {offsets = [0, 0], sizes = [8, 32], strides = [1, 1]} : vector<8x96xf32> to vector<8x32xf32>
    %217 = arith.addf %215, %216 : vector<8x32xf32>
    %218 = arith.negf %217 : vector<8x32xf32>
    %219 = math.exp %218 : vector<8x32xf32>
    %cst_80 = arith.constant 1.000000e+00 : f32
    %220 = vector.broadcast %cst_80 : f32 to vector<8x32xf32>
    %221 = arith.addf %220, %219 : vector<8x32xf32>
    %222 = arith.divf %220, %221 : vector<8x32xf32>
    %223 = vector.extract_strided_slice %213 {offsets = [0, 32], sizes = [8, 32], strides = [1, 1]} : vector<8x96xf32> to vector<8x32xf32>
    %224 = vector.extract_strided_slice %214 {offsets = [0, 32], sizes = [8, 32], strides = [1, 1]} : vector<8x96xf32> to vector<8x32xf32>
    %225 = arith.addf %223, %224 : vector<8x32xf32>
    %226 = arith.negf %225 : vector<8x32xf32>
    %227 = math.exp %226 : vector<8x32xf32>
    %cst_81 = arith.constant 1.000000e+00 : f32
    %228 = vector.broadcast %cst_81 : f32 to vector<8x32xf32>
    %229 = arith.addf %228, %227 : vector<8x32xf32>
    %230 = arith.divf %228, %229 : vector<8x32xf32>
    %231 = vector.extract_strided_slice %213 {offsets = [0, 64], sizes = [8, 32], strides = [1, 1]} : vector<8x96xf32> to vector<8x32xf32>
    %232 = vector.extract_strided_slice %214 {offsets = [0, 64], sizes = [8, 32], strides = [1, 1]} : vector<8x96xf32> to vector<8x32xf32>
    %233 = arith.addf %232, %24 : vector<8x32xf32>
    %234 = arith.mulf %222, %233 : vector<8x32xf32>
    %235 = arith.addf %231, %234 : vector<8x32xf32>
    %236 = math.tanh %235 : vector<8x32xf32>
    %cst_82 = arith.constant 1.000000e+00 : f32
    %237 = vector.broadcast %cst_82 : f32 to vector<8x32xf32>
    %238 = arith.subf %237, %230 : vector<8x32xf32>
    %239 = arith.mulf %238, %236 : vector<8x32xf32>
    %240 = arith.mulf %230, %181 : vector<8x32xf32>
    %241 = arith.addf %239, %240 : vector<8x32xf32>
    %c32 = arith.constant 32 : index
    %c0_83 = arith.constant 0 : index
    %242 = vector.load %arg14[%c32, %c0_83] : memref<64x96xf32, #tpu.memory_space<vmem>>, vector<8x96xf32>
    %cst_84 = arith.constant dense<0.000000e+00> : vector<8x96xf32>
    %243 = tpu.matmul %210, %20, %cst_84 {dimension_numbers = #tpu.dot_dimension_numbers<[1], [0], [0], [1], [0, 0, 1, 1], [], []>} : vector<8x32xf32>, vector<32x96xf32>, vector<8x96xf32> -> vector<8x96xf32>
    %244 = vector.extract_strided_slice %242 {offsets = [0, 0], sizes = [8, 32], strides = [1, 1]} : vector<8x96xf32> to vector<8x32xf32>
    %245 = vector.extract_strided_slice %243 {offsets = [0, 0], sizes = [8, 32], strides = [1, 1]} : vector<8x96xf32> to vector<8x32xf32>
    %246 = arith.addf %244, %245 : vector<8x32xf32>
    %247 = arith.negf %246 : vector<8x32xf32>
    %248 = math.exp %247 : vector<8x32xf32>
    %cst_85 = arith.constant 1.000000e+00 : f32
    %249 = vector.broadcast %cst_85 : f32 to vector<8x32xf32>
    %250 = arith.addf %249, %248 : vector<8x32xf32>
    %251 = arith.divf %249, %250 : vector<8x32xf32>
    %252 = vector.extract_strided_slice %242 {offsets = [0, 32], sizes = [8, 32], strides = [1, 1]} : vector<8x96xf32> to vector<8x32xf32>
    %253 = vector.extract_strided_slice %243 {offsets = [0, 32], sizes = [8, 32], strides = [1, 1]} : vector<8x96xf32> to vector<8x32xf32>
    %254 = arith.addf %252, %253 : vector<8x32xf32>
    %255 = arith.negf %254 : vector<8x32xf32>
    %256 = math.exp %255 : vector<8x32xf32>
    %cst_86 = arith.constant 1.000000e+00 : f32
    %257 = vector.broadcast %cst_86 : f32 to vector<8x32xf32>
    %258 = arith.addf %257, %256 : vector<8x32xf32>
    %259 = arith.divf %257, %258 : vector<8x32xf32>
    %260 = vector.extract_strided_slice %242 {offsets = [0, 64], sizes = [8, 32], strides = [1, 1]} : vector<8x96xf32> to vector<8x32xf32>
    %261 = vector.extract_strided_slice %243 {offsets = [0, 64], sizes = [8, 32], strides = [1, 1]} : vector<8x96xf32> to vector<8x32xf32>
    %262 = arith.addf %261, %28 : vector<8x32xf32>
    %263 = arith.mulf %251, %262 : vector<8x32xf32>
    %264 = arith.addf %260, %263 : vector<8x32xf32>
    %265 = math.tanh %264 : vector<8x32xf32>
    %cst_87 = arith.constant 1.000000e+00 : f32
    %266 = vector.broadcast %cst_87 : f32 to vector<8x32xf32>
    %267 = arith.subf %266, %259 : vector<8x32xf32>
    %268 = arith.mulf %267, %265 : vector<8x32xf32>
    %269 = arith.mulf %259, %210 : vector<8x32xf32>
    %270 = arith.addf %268, %269 : vector<8x32xf32>
    %c24_88 = arith.constant 24 : index
    %c0_89 = arith.constant 0 : index
    %271 = vector.load %arg15[%c24_88, %c0_89] : memref<64x32xf32, #tpu.memory_space<vmem>>, vector<8x32xf32>
    tpu.vector_store %arg15[%c24_88, %c0_89], %241 {strides = array<i32>} : memref<64x32xf32, #tpu.memory_space<vmem>>, vector<8x32xf32>,
    %c32_90 = arith.constant 32 : index
    %c0_91 = arith.constant 0 : index
    %272 = vector.load %arg16[%c32_90, %c0_91] : memref<64x32xf32, #tpu.memory_space<vmem>>, vector<8x32xf32>
    tpu.vector_store %arg16[%c32_90, %c0_91], %270 {strides = array<i32>} : memref<64x32xf32, #tpu.memory_space<vmem>>, vector<8x32xf32>,
    %c32_92 = arith.constant 32 : index
    %c0_93 = arith.constant 0 : index
    %273 = vector.load %arg13[%c32_92, %c0_93] : memref<64x96xf32, #tpu.memory_space<vmem>>, vector<8x96xf32>
    %cst_94 = arith.constant dense<0.000000e+00> : vector<8x96xf32>
    %274 = tpu.matmul %241, %18, %cst_94 {dimension_numbers = #tpu.dot_dimension_numbers<[1], [0], [0], [1], [0, 0, 1, 1], [], []>} : vector<8x32xf32>, vector<32x96xf32>, vector<8x96xf32> -> vector<8x96xf32>
    %275 = vector.extract_strided_slice %273 {offsets = [0, 0], sizes = [8, 32], strides = [1, 1]} : vector<8x96xf32> to vector<8x32xf32>
    %276 = vector.extract_strided_slice %274 {offsets = [0, 0], sizes = [8, 32], strides = [1, 1]} : vector<8x96xf32> to vector<8x32xf32>
    %277 = arith.addf %275, %276 : vector<8x32xf32>
    %278 = arith.negf %277 : vector<8x32xf32>
    %279 = math.exp %278 : vector<8x32xf32>
    %cst_95 = arith.constant 1.000000e+00 : f32
    %280 = vector.broadcast %cst_95 : f32 to vector<8x32xf32>
    %281 = arith.addf %280, %279 : vector<8x32xf32>
    %282 = arith.divf %280, %281 : vector<8x32xf32>
    %283 = vector.extract_strided_slice %273 {offsets = [0, 32], sizes = [8, 32], strides = [1, 1]} : vector<8x96xf32> to vector<8x32xf32>
    %284 = vector.extract_strided_slice %274 {offsets = [0, 32], sizes = [8, 32], strides = [1, 1]} : vector<8x96xf32> to vector<8x32xf32>
    %285 = arith.addf %283, %284 : vector<8x32xf32>
    %286 = arith.negf %285 : vector<8x32xf32>
    %287 = math.exp %286 : vector<8x32xf32>
    %cst_96 = arith.constant 1.000000e+00 : f32
    %288 = vector.broadcast %cst_96 : f32 to vector<8x32xf32>
    %289 = arith.addf %288, %287 : vector<8x32xf32>
    %290 = arith.divf %288, %289 : vector<8x32xf32>
    %291 = vector.extract_strided_slice %273 {offsets = [0, 64], sizes = [8, 32], strides = [1, 1]} : vector<8x96xf32> to vector<8x32xf32>
    %292 = vector.extract_strided_slice %274 {offsets = [0, 64], sizes = [8, 32], strides = [1, 1]} : vector<8x96xf32> to vector<8x32xf32>
    %293 = arith.addf %292, %24 : vector<8x32xf32>
    %294 = arith.mulf %282, %293 : vector<8x32xf32>
    %295 = arith.addf %291, %294 : vector<8x32xf32>
    %296 = math.tanh %295 : vector<8x32xf32>
    %cst_97 = arith.constant 1.000000e+00 : f32
    %297 = vector.broadcast %cst_97 : f32 to vector<8x32xf32>
    %298 = arith.subf %297, %290 : vector<8x32xf32>
    %299 = arith.mulf %298, %296 : vector<8x32xf32>
    %300 = arith.mulf %290, %241 : vector<8x32xf32>
    %301 = arith.addf %299, %300 : vector<8x32xf32>
    %c24_98 = arith.constant 24 : index
    %c0_99 = arith.constant 0 : index
    %302 = vector.load %arg14[%c24_98, %c0_99] : memref<64x96xf32, #tpu.memory_space<vmem>>, vector<8x96xf32>
    %cst_100 = arith.constant dense<0.000000e+00> : vector<8x96xf32>
    %303 = tpu.matmul %270, %20, %cst_100 {dimension_numbers = #tpu.dot_dimension_numbers<[1], [0], [0], [1], [0, 0, 1, 1], [], []>} : vector<8x32xf32>, vector<32x96xf32>, vector<8x96xf32> -> vector<8x96xf32>
    %304 = vector.extract_strided_slice %302 {offsets = [0, 0], sizes = [8, 32], strides = [1, 1]} : vector<8x96xf32> to vector<8x32xf32>
    %305 = vector.extract_strided_slice %303 {offsets = [0, 0], sizes = [8, 32], strides = [1, 1]} : vector<8x96xf32> to vector<8x32xf32>
    %306 = arith.addf %304, %305 : vector<8x32xf32>
    %307 = arith.negf %306 : vector<8x32xf32>
    %308 = math.exp %307 : vector<8x32xf32>
    %cst_101 = arith.constant 1.000000e+00 : f32
    %309 = vector.broadcast %cst_101 : f32 to vector<8x32xf32>
    %310 = arith.addf %309, %308 : vector<8x32xf32>
    %311 = arith.divf %309, %310 : vector<8x32xf32>
    %312 = vector.extract_strided_slice %302 {offsets = [0, 32], sizes = [8, 32], strides = [1, 1]} : vector<8x96xf32> to vector<8x32xf32>
    %313 = vector.extract_strided_slice %303 {offsets = [0, 32], sizes = [8, 32], strides = [1, 1]} : vector<8x96xf32> to vector<8x32xf32>
    %314 = arith.addf %312, %313 : vector<8x32xf32>
    %315 = arith.negf %314 : vector<8x32xf32>
    %316 = math.exp %315 : vector<8x32xf32>
    %cst_102 = arith.constant 1.000000e+00 : f32
    %317 = vector.broadcast %cst_102 : f32 to vector<8x32xf32>
    %318 = arith.addf %317, %316 : vector<8x32xf32>
    %319 = arith.divf %317, %318 : vector<8x32xf32>
    %320 = vector.extract_strided_slice %302 {offsets = [0, 64], sizes = [8, 32], strides = [1, 1]} : vector<8x96xf32> to vector<8x32xf32>
    %321 = vector.extract_strided_slice %303 {offsets = [0, 64], sizes = [8, 32], strides = [1, 1]} : vector<8x96xf32> to vector<8x32xf32>
    %322 = arith.addf %321, %28 : vector<8x32xf32>
    %323 = arith.mulf %311, %322 : vector<8x32xf32>
    %324 = arith.addf %320, %323 : vector<8x32xf32>
    %325 = math.tanh %324 : vector<8x32xf32>
    %cst_103 = arith.constant 1.000000e+00 : f32
    %326 = vector.broadcast %cst_103 : f32 to vector<8x32xf32>
    %327 = arith.subf %326, %319 : vector<8x32xf32>
    %328 = arith.mulf %327, %325 : vector<8x32xf32>
    %329 = arith.mulf %319, %270 : vector<8x32xf32>
    %330 = arith.addf %328, %329 : vector<8x32xf32>
    %c32_104 = arith.constant 32 : index
    %c0_105 = arith.constant 0 : index
    %331 = vector.load %arg15[%c32_104, %c0_105] : memref<64x32xf32, #tpu.memory_space<vmem>>, vector<8x32xf32>
    tpu.vector_store %arg15[%c32_104, %c0_105], %301 {strides = array<i32>} : memref<64x32xf32, #tpu.memory_space<vmem>>, vector<8x32xf32>,
    %c24_106 = arith.constant 24 : index
    %c0_107 = arith.constant 0 : index
    %332 = vector.load %arg16[%c24_106, %c0_107] : memref<64x32xf32, #tpu.memory_space<vmem>>, vector<8x32xf32>
    tpu.vector_store %arg16[%c24_106, %c0_107], %330 {strides = array<i32>} : memref<64x32xf32, #tpu.memory_space<vmem>>, vector<8x32xf32>,
    %c40_108 = arith.constant 40 : index
    %c0_109 = arith.constant 0 : index
    %333 = vector.load %arg13[%c40_108, %c0_109] : memref<64x96xf32, #tpu.memory_space<vmem>>, vector<8x96xf32>
    %cst_110 = arith.constant dense<0.000000e+00> : vector<8x96xf32>
    %334 = tpu.matmul %301, %18, %cst_110 {dimension_numbers = #tpu.dot_dimension_numbers<[1], [0], [0], [1], [0, 0, 1, 1], [], []>} : vector<8x32xf32>, vector<32x96xf32>, vector<8x96xf32> -> vector<8x96xf32>
    %335 = vector.extract_strided_slice %333 {offsets = [0, 0], sizes = [8, 32], strides = [1, 1]} : vector<8x96xf32> to vector<8x32xf32>
    %336 = vector.extract_strided_slice %334 {offsets = [0, 0], sizes = [8, 32], strides = [1, 1]} : vector<8x96xf32> to vector<8x32xf32>
    %337 = arith.addf %335, %336 : vector<8x32xf32>
    %338 = arith.negf %337 : vector<8x32xf32>
    %339 = math.exp %338 : vector<8x32xf32>
    %cst_111 = arith.constant 1.000000e+00 : f32
    %340 = vector.broadcast %cst_111 : f32 to vector<8x32xf32>
    %341 = arith.addf %340, %339 : vector<8x32xf32>
    %342 = arith.divf %340, %341 : vector<8x32xf32>
    %343 = vector.extract_strided_slice %333 {offsets = [0, 32], sizes = [8, 32], strides = [1, 1]} : vector<8x96xf32> to vector<8x32xf32>
    %344 = vector.extract_strided_slice %334 {offsets = [0, 32], sizes = [8, 32], strides = [1, 1]} : vector<8x96xf32> to vector<8x32xf32>
    %345 = arith.addf %343, %344 : vector<8x32xf32>
    %346 = arith.negf %345 : vector<8x32xf32>
    %347 = math.exp %346 : vector<8x32xf32>
    %cst_112 = arith.constant 1.000000e+00 : f32
    %348 = vector.broadcast %cst_112 : f32 to vector<8x32xf32>
    %349 = arith.addf %348, %347 : vector<8x32xf32>
    %350 = arith.divf %348, %349 : vector<8x32xf32>
    %351 = vector.extract_strided_slice %333 {offsets = [0, 64], sizes = [8, 32], strides = [1, 1]} : vector<8x96xf32> to vector<8x32xf32>
    %352 = vector.extract_strided_slice %334 {offsets = [0, 64], sizes = [8, 32], strides = [1, 1]} : vector<8x96xf32> to vector<8x32xf32>
    %353 = arith.addf %352, %24 : vector<8x32xf32>
    %354 = arith.mulf %342, %353 : vector<8x32xf32>
    %355 = arith.addf %351, %354 : vector<8x32xf32>
    %356 = math.tanh %355 : vector<8x32xf32>
    %cst_113 = arith.constant 1.000000e+00 : f32
    %357 = vector.broadcast %cst_113 : f32 to vector<8x32xf32>
    %358 = arith.subf %357, %350 : vector<8x32xf32>
    %359 = arith.mulf %358, %356 : vector<8x32xf32>
    %360 = arith.mulf %350, %301 : vector<8x32xf32>
    %361 = arith.addf %359, %360 : vector<8x32xf32>
    %c16_114 = arith.constant 16 : index
    %c0_115 = arith.constant 0 : index
    %362 = vector.load %arg14[%c16_114, %c0_115] : memref<64x96xf32, #tpu.memory_space<vmem>>, vector<8x96xf32>
    %cst_116 = arith.constant dense<0.000000e+00> : vector<8x96xf32>
    %363 = tpu.matmul %330, %20, %cst_116 {dimension_numbers = #tpu.dot_dimension_numbers<[1], [0], [0], [1], [0, 0, 1, 1], [], []>} : vector<8x32xf32>, vector<32x96xf32>, vector<8x96xf32> -> vector<8x96xf32>
    %364 = vector.extract_strided_slice %362 {offsets = [0, 0], sizes = [8, 32], strides = [1, 1]} : vector<8x96xf32> to vector<8x32xf32>
    %365 = vector.extract_strided_slice %363 {offsets = [0, 0], sizes = [8, 32], strides = [1, 1]} : vector<8x96xf32> to vector<8x32xf32>
    %366 = arith.addf %364, %365 : vector<8x32xf32>
    %367 = arith.negf %366 : vector<8x32xf32>
    %368 = math.exp %367 : vector<8x32xf32>
    %cst_117 = arith.constant 1.000000e+00 : f32
    %369 = vector.broadcast %cst_117 : f32 to vector<8x32xf32>
    %370 = arith.addf %369, %368 : vector<8x32xf32>
    %371 = arith.divf %369, %370 : vector<8x32xf32>
    %372 = vector.extract_strided_slice %362 {offsets = [0, 32], sizes = [8, 32], strides = [1, 1]} : vector<8x96xf32> to vector<8x32xf32>
    %373 = vector.extract_strided_slice %363 {offsets = [0, 32], sizes = [8, 32], strides = [1, 1]} : vector<8x96xf32> to vector<8x32xf32>
    %374 = arith.addf %372, %373 : vector<8x32xf32>
    %375 = arith.negf %374 : vector<8x32xf32>
    %376 = math.exp %375 : vector<8x32xf32>
    %cst_118 = arith.constant 1.000000e+00 : f32
    %377 = vector.broadcast %cst_118 : f32 to vector<8x32xf32>
    %378 = arith.addf %377, %376 : vector<8x32xf32>
    %379 = arith.divf %377, %378 : vector<8x32xf32>
    %380 = vector.extract_strided_slice %362 {offsets = [0, 64], sizes = [8, 32], strides = [1, 1]} : vector<8x96xf32> to vector<8x32xf32>
    %381 = vector.extract_strided_slice %363 {offsets = [0, 64], sizes = [8, 32], strides = [1, 1]} : vector<8x96xf32> to vector<8x32xf32>
    %382 = arith.addf %381, %28 : vector<8x32xf32>
    %383 = arith.mulf %371, %382 : vector<8x32xf32>
    %384 = arith.addf %380, %383 : vector<8x32xf32>
    %385 = math.tanh %384 : vector<8x32xf32>
    %cst_119 = arith.constant 1.000000e+00 : f32
    %386 = vector.broadcast %cst_119 : f32 to vector<8x32xf32>
    %387 = arith.subf %386, %379 : vector<8x32xf32>
    %388 = arith.mulf %387, %385 : vector<8x32xf32>
    %389 = arith.mulf %379, %330 : vector<8x32xf32>
    %390 = arith.addf %388, %389 : vector<8x32xf32>
    %c40_120 = arith.constant 40 : index
    %c0_121 = arith.constant 0 : index
    %391 = vector.load %arg15[%c40_120, %c0_121] : memref<64x32xf32, #tpu.memory_space<vmem>>, vector<8x32xf32>
    tpu.vector_store %arg15[%c40_120, %c0_121], %361 {strides = array<i32>} : memref<64x32xf32, #tpu.memory_space<vmem>>, vector<8x32xf32>,
    %c16_122 = arith.constant 16 : index
    %c0_123 = arith.constant 0 : index
    %392 = vector.load %arg16[%c16_122, %c0_123] : memref<64x32xf32, #tpu.memory_space<vmem>>, vector<8x32xf32>
    tpu.vector_store %arg16[%c16_122, %c0_123], %390 {strides = array<i32>} : memref<64x32xf32, #tpu.memory_space<vmem>>, vector<8x32xf32>,
    %c48_124 = arith.constant 48 : index
    %c0_125 = arith.constant 0 : index
    %393 = vector.load %arg13[%c48_124, %c0_125] : memref<64x96xf32, #tpu.memory_space<vmem>>, vector<8x96xf32>
    %cst_126 = arith.constant dense<0.000000e+00> : vector<8x96xf32>
    %394 = tpu.matmul %361, %18, %cst_126 {dimension_numbers = #tpu.dot_dimension_numbers<[1], [0], [0], [1], [0, 0, 1, 1], [], []>} : vector<8x32xf32>, vector<32x96xf32>, vector<8x96xf32> -> vector<8x96xf32>
    %395 = vector.extract_strided_slice %393 {offsets = [0, 0], sizes = [8, 32], strides = [1, 1]} : vector<8x96xf32> to vector<8x32xf32>
    %396 = vector.extract_strided_slice %394 {offsets = [0, 0], sizes = [8, 32], strides = [1, 1]} : vector<8x96xf32> to vector<8x32xf32>
    %397 = arith.addf %395, %396 : vector<8x32xf32>
    %398 = arith.negf %397 : vector<8x32xf32>
    %399 = math.exp %398 : vector<8x32xf32>
    %cst_127 = arith.constant 1.000000e+00 : f32
    %400 = vector.broadcast %cst_127 : f32 to vector<8x32xf32>
    %401 = arith.addf %400, %399 : vector<8x32xf32>
    %402 = arith.divf %400, %401 : vector<8x32xf32>
    %403 = vector.extract_strided_slice %393 {offsets = [0, 32], sizes = [8, 32], strides = [1, 1]} : vector<8x96xf32> to vector<8x32xf32>
    %404 = vector.extract_strided_slice %394 {offsets = [0, 32], sizes = [8, 32], strides = [1, 1]} : vector<8x96xf32> to vector<8x32xf32>
    %405 = arith.addf %403, %404 : vector<8x32xf32>
    %406 = arith.negf %405 : vector<8x32xf32>
    %407 = math.exp %406 : vector<8x32xf32>
    %cst_128 = arith.constant 1.000000e+00 : f32
    %408 = vector.broadcast %cst_128 : f32 to vector<8x32xf32>
    %409 = arith.addf %408, %407 : vector<8x32xf32>
    %410 = arith.divf %408, %409 : vector<8x32xf32>
    %411 = vector.extract_strided_slice %393 {offsets = [0, 64], sizes = [8, 32], strides = [1, 1]} : vector<8x96xf32> to vector<8x32xf32>
    %412 = vector.extract_strided_slice %394 {offsets = [0, 64], sizes = [8, 32], strides = [1, 1]} : vector<8x96xf32> to vector<8x32xf32>
    %413 = arith.addf %412, %24 : vector<8x32xf32>
    %414 = arith.mulf %402, %413 : vector<8x32xf32>
    %415 = arith.addf %411, %414 : vector<8x32xf32>
    %416 = math.tanh %415 : vector<8x32xf32>
    %cst_129 = arith.constant 1.000000e+00 : f32
    %417 = vector.broadcast %cst_129 : f32 to vector<8x32xf32>
    %418 = arith.subf %417, %410 : vector<8x32xf32>
    %419 = arith.mulf %418, %416 : vector<8x32xf32>
    %420 = arith.mulf %410, %361 : vector<8x32xf32>
    %421 = arith.addf %419, %420 : vector<8x32xf32>
    %c8_130 = arith.constant 8 : index
    %c0_131 = arith.constant 0 : index
    %422 = vector.load %arg14[%c8_130, %c0_131] : memref<64x96xf32, #tpu.memory_space<vmem>>, vector<8x96xf32>
    %cst_132 = arith.constant dense<0.000000e+00> : vector<8x96xf32>
    %423 = tpu.matmul %390, %20, %cst_132 {dimension_numbers = #tpu.dot_dimension_numbers<[1], [0], [0], [1], [0, 0, 1, 1], [], []>} : vector<8x32xf32>, vector<32x96xf32>, vector<8x96xf32> -> vector<8x96xf32>
    %424 = vector.extract_strided_slice %422 {offsets = [0, 0], sizes = [8, 32], strides = [1, 1]} : vector<8x96xf32> to vector<8x32xf32>
    %425 = vector.extract_strided_slice %423 {offsets = [0, 0], sizes = [8, 32], strides = [1, 1]} : vector<8x96xf32> to vector<8x32xf32>
    %426 = arith.addf %424, %425 : vector<8x32xf32>
    %427 = arith.negf %426 : vector<8x32xf32>
    %428 = math.exp %427 : vector<8x32xf32>
    %cst_133 = arith.constant 1.000000e+00 : f32
    %429 = vector.broadcast %cst_133 : f32 to vector<8x32xf32>
    %430 = arith.addf %429, %428 : vector<8x32xf32>
    %431 = arith.divf %429, %430 : vector<8x32xf32>
    %432 = vector.extract_strided_slice %422 {offsets = [0, 32], sizes = [8, 32], strides = [1, 1]} : vector<8x96xf32> to vector<8x32xf32>
    %433 = vector.extract_strided_slice %423 {offsets = [0, 32], sizes = [8, 32], strides = [1, 1]} : vector<8x96xf32> to vector<8x32xf32>
    %434 = arith.addf %432, %433 : vector<8x32xf32>
    %435 = arith.negf %434 : vector<8x32xf32>
    %436 = math.exp %435 : vector<8x32xf32>
    %cst_134 = arith.constant 1.000000e+00 : f32
    %437 = vector.broadcast %cst_134 : f32 to vector<8x32xf32>
    %438 = arith.addf %437, %436 : vector<8x32xf32>
    %439 = arith.divf %437, %438 : vector<8x32xf32>
    %440 = vector.extract_strided_slice %422 {offsets = [0, 64], sizes = [8, 32], strides = [1, 1]} : vector<8x96xf32> to vector<8x32xf32>
    %441 = vector.extract_strided_slice %423 {offsets = [0, 64], sizes = [8, 32], strides = [1, 1]} : vector<8x96xf32> to vector<8x32xf32>
    %442 = arith.addf %441, %28 : vector<8x32xf32>
    %443 = arith.mulf %431, %442 : vector<8x32xf32>
    %444 = arith.addf %440, %443 : vector<8x32xf32>
    %445 = math.tanh %444 : vector<8x32xf32>
    %cst_135 = arith.constant 1.000000e+00 : f32
    %446 = vector.broadcast %cst_135 : f32 to vector<8x32xf32>
    %447 = arith.subf %446, %439 : vector<8x32xf32>
    %448 = arith.mulf %447, %445 : vector<8x32xf32>
    %449 = arith.mulf %439, %390 : vector<8x32xf32>
    %450 = arith.addf %448, %449 : vector<8x32xf32>
    %c48_136 = arith.constant 48 : index
    %c0_137 = arith.constant 0 : index
    %451 = vector.load %arg15[%c48_136, %c0_137] : memref<64x32xf32, #tpu.memory_space<vmem>>, vector<8x32xf32>
    tpu.vector_store %arg15[%c48_136, %c0_137], %421 {strides = array<i32>} : memref<64x32xf32, #tpu.memory_space<vmem>>, vector<8x32xf32>,
    %c8_138 = arith.constant 8 : index
    %c0_139 = arith.constant 0 : index
    %452 = vector.load %arg16[%c8_138, %c0_139] : memref<64x32xf32, #tpu.memory_space<vmem>>, vector<8x32xf32>
    tpu.vector_store %arg16[%c8_138, %c0_139], %450 {strides = array<i32>} : memref<64x32xf32, #tpu.memory_space<vmem>>, vector<8x32xf32>,
    %c56_140 = arith.constant 56 : index
    %c0_141 = arith.constant 0 : index
    %453 = vector.load %arg13[%c56_140, %c0_141] : memref<64x96xf32, #tpu.memory_space<vmem>>, vector<8x96xf32>
    %cst_142 = arith.constant dense<0.000000e+00> : vector<8x96xf32>
    %454 = tpu.matmul %421, %18, %cst_142 {dimension_numbers = #tpu.dot_dimension_numbers<[1], [0], [0], [1], [0, 0, 1, 1], [], []>} : vector<8x32xf32>, vector<32x96xf32>, vector<8x96xf32> -> vector<8x96xf32>
    %455 = vector.extract_strided_slice %453 {offsets = [0, 0], sizes = [8, 32], strides = [1, 1]} : vector<8x96xf32> to vector<8x32xf32>
    %456 = vector.extract_strided_slice %454 {offsets = [0, 0], sizes = [8, 32], strides = [1, 1]} : vector<8x96xf32> to vector<8x32xf32>
    %457 = arith.addf %455, %456 : vector<8x32xf32>
    %458 = arith.negf %457 : vector<8x32xf32>
    %459 = math.exp %458 : vector<8x32xf32>
    %cst_143 = arith.constant 1.000000e+00 : f32
    %460 = vector.broadcast %cst_143 : f32 to vector<8x32xf32>
    %461 = arith.addf %460, %459 : vector<8x32xf32>
    %462 = arith.divf %460, %461 : vector<8x32xf32>
    %463 = vector.extract_strided_slice %453 {offsets = [0, 32], sizes = [8, 32], strides = [1, 1]} : vector<8x96xf32> to vector<8x32xf32>
    %464 = vector.extract_strided_slice %454 {offsets = [0, 32], sizes = [8, 32], strides = [1, 1]} : vector<8x96xf32> to vector<8x32xf32>
    %465 = arith.addf %463, %464 : vector<8x32xf32>
    %466 = arith.negf %465 : vector<8x32xf32>
    %467 = math.exp %466 : vector<8x32xf32>
    %cst_144 = arith.constant 1.000000e+00 : f32
    %468 = vector.broadcast %cst_144 : f32 to vector<8x32xf32>
    %469 = arith.addf %468, %467 : vector<8x32xf32>
    %470 = arith.divf %468, %469 : vector<8x32xf32>
    %471 = vector.extract_strided_slice %453 {offsets = [0, 64], sizes = [8, 32], strides = [1, 1]} : vector<8x96xf32> to vector<8x32xf32>
    %472 = vector.extract_strided_slice %454 {offsets = [0, 64], sizes = [8, 32], strides = [1, 1]} : vector<8x96xf32> to vector<8x32xf32>
    %473 = arith.addf %472, %24 : vector<8x32xf32>
    %474 = arith.mulf %462, %473 : vector<8x32xf32>
    %475 = arith.addf %471, %474 : vector<8x32xf32>
    %476 = math.tanh %475 : vector<8x32xf32>
    %cst_145 = arith.constant 1.000000e+00 : f32
    %477 = vector.broadcast %cst_145 : f32 to vector<8x32xf32>
    %478 = arith.subf %477, %470 : vector<8x32xf32>
    %479 = arith.mulf %478, %476 : vector<8x32xf32>
    %480 = arith.mulf %470, %421 : vector<8x32xf32>
    %481 = arith.addf %479, %480 : vector<8x32xf32>
    %c0_146 = arith.constant 0 : index
    %c0_147 = arith.constant 0 : index
    %482 = vector.load %arg14[%c0_146, %c0_147] : memref<64x96xf32, #tpu.memory_space<vmem>>, vector<8x96xf32>
    %cst_148 = arith.constant dense<0.000000e+00> : vector<8x96xf32>
    %483 = tpu.matmul %450, %20, %cst_148 {dimension_numbers = #tpu.dot_dimension_numbers<[1], [0], [0], [1], [0, 0, 1, 1], [], []>} : vector<8x32xf32>, vector<32x96xf32>, vector<8x96xf32> -> vector<8x96xf32>
    %484 = vector.extract_strided_slice %482 {offsets = [0, 0], sizes = [8, 32], strides = [1, 1]} : vector<8x96xf32> to vector<8x32xf32>
    %485 = vector.extract_strided_slice %483 {offsets = [0, 0], sizes = [8, 32], strides = [1, 1]} : vector<8x96xf32> to vector<8x32xf32>
    %486 = arith.addf %484, %485 : vector<8x32xf32>
    %487 = arith.negf %486 : vector<8x32xf32>
    %488 = math.exp %487 : vector<8x32xf32>
    %cst_149 = arith.constant 1.000000e+00 : f32
    %489 = vector.broadcast %cst_149 : f32 to vector<8x32xf32>
    %490 = arith.addf %489, %488 : vector<8x32xf32>
    %491 = arith.divf %489, %490 : vector<8x32xf32>
    %492 = vector.extract_strided_slice %482 {offsets = [0, 32], sizes = [8, 32], strides = [1, 1]} : vector<8x96xf32> to vector<8x32xf32>
    %493 = vector.extract_strided_slice %483 {offsets = [0, 32], sizes = [8, 32], strides = [1, 1]} : vector<8x96xf32> to vector<8x32xf32>
    %494 = arith.addf %492, %493 : vector<8x32xf32>
    %495 = arith.negf %494 : vector<8x32xf32>
    %496 = math.exp %495 : vector<8x32xf32>
    %cst_150 = arith.constant 1.000000e+00 : f32
    %497 = vector.broadcast %cst_150 : f32 to vector<8x32xf32>
    %498 = arith.addf %497, %496 : vector<8x32xf32>
    %499 = arith.divf %497, %498 : vector<8x32xf32>
    %500 = vector.extract_strided_slice %482 {offsets = [0, 64], sizes = [8, 32], strides = [1, 1]} : vector<8x96xf32> to vector<8x32xf32>
    %501 = vector.extract_strided_slice %483 {offsets = [0, 64], sizes = [8, 32], strides = [1, 1]} : vector<8x96xf32> to vector<8x32xf32>
    %502 = arith.addf %501, %28 : vector<8x32xf32>
    %503 = arith.mulf %491, %502 : vector<8x32xf32>
    %504 = arith.addf %500, %503 : vector<8x32xf32>
    %505 = math.tanh %504 : vector<8x32xf32>
    %cst_151 = arith.constant 1.000000e+00 : f32
    %506 = vector.broadcast %cst_151 : f32 to vector<8x32xf32>
    %507 = arith.subf %506, %499 : vector<8x32xf32>
    %508 = arith.mulf %507, %505 : vector<8x32xf32>
    %509 = arith.mulf %499, %450 : vector<8x32xf32>
    %510 = arith.addf %508, %509 : vector<8x32xf32>
    %c56_152 = arith.constant 56 : index
    %c0_153 = arith.constant 0 : index
    %511 = vector.load %arg15[%c56_152, %c0_153] : memref<64x32xf32, #tpu.memory_space<vmem>>, vector<8x32xf32>
    tpu.vector_store %arg15[%c56_152, %c0_153], %481 {strides = array<i32>} : memref<64x32xf32, #tpu.memory_space<vmem>>, vector<8x32xf32>,
    %c0_154 = arith.constant 0 : index
    %c0_155 = arith.constant 0 : index
    %512 = vector.load %arg16[%c0_154, %c0_155] : memref<64x32xf32, #tpu.memory_space<vmem>>, vector<8x32xf32>
    tpu.vector_store %arg16[%c0_154, %c0_155], %510 {strides = array<i32>} : memref<64x32xf32, #tpu.memory_space<vmem>>, vector<8x32xf32>,
    %c0_156 = arith.constant 0 : index
    %c0_157 = arith.constant 0 : index
    %513 = vector.load %arg15[%c0_156, %c0_157] : memref<64x32xf32, #tpu.memory_space<vmem>>, vector<64x32xf32>
    %c0_158 = arith.constant 0 : index
    %c0_159 = arith.constant 0 : index
    %514 = vector.load %arg16[%c0_158, %c0_159] : memref<64x32xf32, #tpu.memory_space<vmem>>, vector<64x32xf32>
    %c0_160 = arith.constant 0 : index
    %c0_161 = arith.constant 0 : index
    %c0_162 = arith.constant 0 : index
    %515 = vector.load %arg3[%c0_160, %c0_161, %c0_162] : memref<2x32x96xf32, #tpu.memory_space<vmem>>, vector<1x32x96xf32>
    %516 = vector.shape_cast %515 : vector<1x32x96xf32> to vector<32x96xf32>
    %cst_163 = arith.constant dense<0.000000e+00> : vector<64x96xf32>
    %517 = tpu.matmul %513, %516, %cst_163 {dimension_numbers = #tpu.dot_dimension_numbers<[1], [0], [0], [1], [0, 0, 1, 1], [], []>} : vector<64x32xf32>, vector<32x96xf32>, vector<64x96xf32> -> vector<64x96xf32>
    %c0_164 = arith.constant 0 : index
    %c0_165 = arith.constant 0 : index
    %c0_166 = arith.constant 0 : index
    %518 = vector.load %arg4[%c0_164, %c0_165, %c0_166] : memref<2x32x96xf32, #tpu.memory_space<vmem>>, vector<1x32x96xf32>
    %519 = vector.shape_cast %518 : vector<1x32x96xf32> to vector<32x96xf32>
    %cst_167 = arith.constant dense<0.000000e+00> : vector<64x96xf32>
    %520 = tpu.matmul %514, %519, %cst_167 {dimension_numbers = #tpu.dot_dimension_numbers<[1], [0], [0], [1], [0, 0, 1, 1], [], []>} : vector<64x32xf32>, vector<32x96xf32>, vector<64x96xf32> -> vector<64x96xf32>
    %521 = arith.addf %517, %520 : vector<64x96xf32>
    %c2 = arith.constant 2 : index
    %c0_168 = arith.constant 0 : index
    %c0_169 = arith.constant 0 : index
    %522 = vector.load %arg6[%c2, %c0_168, %c0_169] : memref<4x1x96xf32, #tpu.memory_space<vmem>>, vector<1x1x96xf32>
    %523 = vector.shape_cast %522 : vector<1x1x96xf32> to vector<1x96xf32>
    %524 = vector.broadcast %523 : vector<1x96xf32> to vector<64x96xf32>
    %525 = arith.addf %521, %524 : vector<64x96xf32>
    %c0_170 = arith.constant 0 : index
    %c0_171 = arith.constant 0 : index
    %526 = vector.load %arg13[%c0_170, %c0_171] : memref<64x96xf32, #tpu.memory_space<vmem>>, vector<64x96xf32>
    tpu.vector_store %arg13[%c0_170, %c0_171], %525 {strides = array<i32>} : memref<64x96xf32, #tpu.memory_space<vmem>>, vector<64x96xf32>,
    %c1_172 = arith.constant 1 : index
    %c0_173 = arith.constant 0 : index
    %c0_174 = arith.constant 0 : index
    %527 = vector.load %arg3[%c1_172, %c0_173, %c0_174] : memref<2x32x96xf32, #tpu.memory_space<vmem>>, vector<1x32x96xf32>
    %528 = vector.shape_cast %527 : vector<1x32x96xf32> to vector<32x96xf32>
    %cst_175 = arith.constant dense<0.000000e+00> : vector<64x96xf32>
    %529 = tpu.matmul %513, %528, %cst_175 {dimension_numbers = #tpu.dot_dimension_numbers<[1], [0], [0], [1], [0, 0, 1, 1], [], []>} : vector<64x32xf32>, vector<32x96xf32>, vector<64x96xf32> -> vector<64x96xf32>
    %c1_176 = arith.constant 1 : index
    %c0_177 = arith.constant 0 : index
    %c0_178 = arith.constant 0 : index
    %530 = vector.load %arg4[%c1_176, %c0_177, %c0_178] : memref<2x32x96xf32, #tpu.memory_space<vmem>>, vector<1x32x96xf32>
    %531 = vector.shape_cast %530 : vector<1x32x96xf32> to vector<32x96xf32>
    %cst_179 = arith.constant dense<0.000000e+00> : vector<64x96xf32>
    %532 = tpu.matmul %514, %531, %cst_179 {dimension_numbers = #tpu.dot_dimension_numbers<[1], [0], [0], [1], [0, 0, 1, 1], [], []>} : vector<64x32xf32>, vector<32x96xf32>, vector<64x96xf32> -> vector<64x96xf32>
    %533 = arith.addf %529, %532 : vector<64x96xf32>
    %c3 = arith.constant 3 : index
    %c0_180 = arith.constant 0 : index
    %c0_181 = arith.constant 0 : index
    %534 = vector.load %arg6[%c3, %c0_180, %c0_181] : memref<4x1x96xf32, #tpu.memory_space<vmem>>, vector<1x1x96xf32>
    %535 = vector.shape_cast %534 : vector<1x1x96xf32> to vector<1x96xf32>
    %536 = vector.broadcast %535 : vector<1x96xf32> to vector<64x96xf32>
    %537 = arith.addf %533, %536 : vector<64x96xf32>
    %c0_182 = arith.constant 0 : index
    %c0_183 = arith.constant 0 : index
    %538 = vector.load %arg14[%c0_182, %c0_183] : memref<64x96xf32, #tpu.memory_space<vmem>>, vector<64x96xf32>
    tpu.vector_store %arg14[%c0_182, %c0_183], %537 {strides = array<i32>} : memref<64x96xf32, #tpu.memory_space<vmem>>, vector<64x96xf32>,
    %c2_184 = arith.constant 2 : index
    %c0_185 = arith.constant 0 : index
    %c0_186 = arith.constant 0 : index
    %539 = vector.load %arg5[%c2_184, %c0_185, %c0_186] : memref<4x32x96xf32, #tpu.memory_space<vmem>>, vector<1x32x96xf32>
    %540 = vector.shape_cast %539 : vector<1x32x96xf32> to vector<32x96xf32>
    %c3_187 = arith.constant 3 : index
    %c0_188 = arith.constant 0 : index
    %c0_189 = arith.constant 0 : index
    %541 = vector.load %arg5[%c3_187, %c0_188, %c0_189] : memref<4x32x96xf32, #tpu.memory_space<vmem>>, vector<1x32x96xf32>
    %542 = vector.shape_cast %541 : vector<1x32x96xf32> to vector<32x96xf32>
    %c2_190 = arith.constant 2 : index
    %c0_191 = arith.constant 0 : index
    %c0_192 = arith.constant 0 : index
    %543 = vector.load %arg7[%c2_190, %c0_191, %c0_192] : memref<4x1x32xf32, #tpu.memory_space<vmem>>, vector<1x1x32xf32>
    %544 = vector.shape_cast %543 : vector<1x1x32xf32> to vector<1x32xf32>
    %545 = vector.shape_cast %544 : vector<1x32xf32> to vector<1x32xf32>
    %546 = vector.broadcast %545 : vector<1x32xf32> to vector<8x32xf32>
    %c3_193 = arith.constant 3 : index
    %c0_194 = arith.constant 0 : index
    %c0_195 = arith.constant 0 : index
    %547 = vector.load %arg7[%c3_193, %c0_194, %c0_195] : memref<4x1x32xf32, #tpu.memory_space<vmem>>, vector<1x1x32xf32>
    %548 = vector.shape_cast %547 : vector<1x1x32xf32> to vector<1x32xf32>
    %549 = vector.shape_cast %548 : vector<1x32xf32> to vector<1x32xf32>
    %550 = vector.broadcast %549 : vector<1x32xf32> to vector<8x32xf32>
    %c2_196 = arith.constant 2 : index
    %c0_197 = arith.constant 0 : index
    %c0_198 = arith.constant 0 : index
    %551 = vector.load %arg1[%c2_196, %c0_197, %c0_198] : memref<4x8x32xf32, #tpu.memory_space<vmem>>, vector<1x8x32xf32>
    %552 = vector.shape_cast %551 : vector<1x8x32xf32> to vector<8x32xf32>
    %c3_199 = arith.constant 3 : index
    %c0_200 = arith.constant 0 : index
    %c0_201 = arith.constant 0 : index
    %553 = vector.load %arg1[%c3_199, %c0_200, %c0_201] : memref<4x8x32xf32, #tpu.memory_space<vmem>>, vector<1x8x32xf32>
    %554 = vector.shape_cast %553 : vector<1x8x32xf32> to vector<8x32xf32>
    %c0_202 = arith.constant 0 : index
    %c0_203 = arith.constant 0 : index
    %555 = vector.load %arg13[%c0_202, %c0_203] : memref<64x96xf32, #tpu.memory_space<vmem>>, vector<8x96xf32>
    %cst_204 = arith.constant dense<0.000000e+00> : vector<8x96xf32>
    %556 = tpu.matmul %552, %540, %cst_204 {dimension_numbers = #tpu.dot_dimension_numbers<[1], [0], [0], [1], [0, 0, 1, 1], [], []>} : vector<8x32xf32>, vector<32x96xf32>, vector<8x96xf32> -> vector<8x96xf32>
    %557 = vector.extract_strided_slice %555 {offsets = [0, 0], sizes = [8, 32], strides = [1, 1]} : vector<8x96xf32> to vector<8x32xf32>
    %558 = vector.extract_strided_slice %556 {offsets = [0, 0], sizes = [8, 32], strides = [1, 1]} : vector<8x96xf32> to vector<8x32xf32>
    %559 = arith.addf %557, %558 : vector<8x32xf32>
    %560 = arith.negf %559 : vector<8x32xf32>
    %561 = math.exp %560 : vector<8x32xf32>
    %cst_205 = arith.constant 1.000000e+00 : f32
    %562 = vector.broadcast %cst_205 : f32 to vector<8x32xf32>
    %563 = arith.addf %562, %561 : vector<8x32xf32>
    %564 = arith.divf %562, %563 : vector<8x32xf32>
    %565 = vector.extract_strided_slice %555 {offsets = [0, 32], sizes = [8, 32], strides = [1, 1]} : vector<8x96xf32> to vector<8x32xf32>
    %566 = vector.extract_strided_slice %556 {offsets = [0, 32], sizes = [8, 32], strides = [1, 1]} : vector<8x96xf32> to vector<8x32xf32>
    %567 = arith.addf %565, %566 : vector<8x32xf32>
    %568 = arith.negf %567 : vector<8x32xf32>
    %569 = math.exp %568 : vector<8x32xf32>
    %cst_206 = arith.constant 1.000000e+00 : f32
    %570 = vector.broadcast %cst_206 : f32 to vector<8x32xf32>
    %571 = arith.addf %570, %569 : vector<8x32xf32>
    %572 = arith.divf %570, %571 : vector<8x32xf32>
    %573 = vector.extract_strided_slice %555 {offsets = [0, 64], sizes = [8, 32], strides = [1, 1]} : vector<8x96xf32> to vector<8x32xf32>
    %574 = vector.extract_strided_slice %556 {offsets = [0, 64], sizes = [8, 32], strides = [1, 1]} : vector<8x96xf32> to vector<8x32xf32>
    %575 = arith.addf %574, %546 : vector<8x32xf32>
    %576 = arith.mulf %564, %575 : vector<8x32xf32>
    %577 = arith.addf %573, %576 : vector<8x32xf32>
    %578 = math.tanh %577 : vector<8x32xf32>
    %cst_207 = arith.constant 1.000000e+00 : f32
    %579 = vector.broadcast %cst_207 : f32 to vector<8x32xf32>
    %580 = arith.subf %579, %572 : vector<8x32xf32>
    %581 = arith.mulf %580, %578 : vector<8x32xf32>
    %582 = arith.mulf %572, %552 : vector<8x32xf32>
    %583 = arith.addf %581, %582 : vector<8x32xf32>
    %c56_208 = arith.constant 56 : index
    %c0_209 = arith.constant 0 : index
    %584 = vector.load %arg14[%c56_208, %c0_209] : memref<64x96xf32, #tpu.memory_space<vmem>>, vector<8x96xf32>
    %cst_210 = arith.constant dense<0.000000e+00> : vector<8x96xf32>
    %585 = tpu.matmul %554, %542, %cst_210 {dimension_numbers = #tpu.dot_dimension_numbers<[1], [0], [0], [1], [0, 0, 1, 1], [], []>} : vector<8x32xf32>, vector<32x96xf32>, vector<8x96xf32> -> vector<8x96xf32>
    %586 = vector.extract_strided_slice %584 {offsets = [0, 0], sizes = [8, 32], strides = [1, 1]} : vector<8x96xf32> to vector<8x32xf32>
    %587 = vector.extract_strided_slice %585 {offsets = [0, 0], sizes = [8, 32], strides = [1, 1]} : vector<8x96xf32> to vector<8x32xf32>
    %588 = arith.addf %586, %587 : vector<8x32xf32>
    %589 = arith.negf %588 : vector<8x32xf32>
    %590 = math.exp %589 : vector<8x32xf32>
    %cst_211 = arith.constant 1.000000e+00 : f32
    %591 = vector.broadcast %cst_211 : f32 to vector<8x32xf32>
    %592 = arith.addf %591, %590 : vector<8x32xf32>
    %593 = arith.divf %591, %592 : vector<8x32xf32>
    %594 = vector.extract_strided_slice %584 {offsets = [0, 32], sizes = [8, 32], strides = [1, 1]} : vector<8x96xf32> to vector<8x32xf32>
    %595 = vector.extract_strided_slice %585 {offsets = [0, 32], sizes = [8, 32], strides = [1, 1]} : vector<8x96xf32> to vector<8x32xf32>
    %596 = arith.addf %594, %595 : vector<8x32xf32>
    %597 = arith.negf %596 : vector<8x32xf32>
    %598 = math.exp %597 : vector<8x32xf32>
    %cst_212 = arith.constant 1.000000e+00 : f32
    %599 = vector.broadcast %cst_212 : f32 to vector<8x32xf32>
    %600 = arith.addf %599, %598 : vector<8x32xf32>
    %601 = arith.divf %599, %600 : vector<8x32xf32>
    %602 = vector.extract_strided_slice %584 {offsets = [0, 64], sizes = [8, 32], strides = [1, 1]} : vector<8x96xf32> to vector<8x32xf32>
    %603 = vector.extract_strided_slice %585 {offsets = [0, 64], sizes = [8, 32], strides = [1, 1]} : vector<8x96xf32> to vector<8x32xf32>
    %604 = arith.addf %603, %550 : vector<8x32xf32>
    %605 = arith.mulf %593, %604 : vector<8x32xf32>
    %606 = arith.addf %602, %605 : vector<8x32xf32>
    %607 = math.tanh %606 : vector<8x32xf32>
    %cst_213 = arith.constant 1.000000e+00 : f32
    %608 = vector.broadcast %cst_213 : f32 to vector<8x32xf32>
    %609 = arith.subf %608, %601 : vector<8x32xf32>
    %610 = arith.mulf %609, %607 : vector<8x32xf32>
    %611 = arith.mulf %601, %554 : vector<8x32xf32>
    %612 = arith.addf %610, %611 : vector<8x32xf32>
    %c8_214 = arith.constant 8 : index
    %c0_215 = arith.constant 0 : index
    %613 = vector.load %arg13[%c8_214, %c0_215] : memref<64x96xf32, #tpu.memory_space<vmem>>, vector<8x96xf32>
    %cst_216 = arith.constant dense<0.000000e+00> : vector<8x96xf32>
    %614 = tpu.matmul %583, %540, %cst_216 {dimension_numbers = #tpu.dot_dimension_numbers<[1], [0], [0], [1], [0, 0, 1, 1], [], []>} : vector<8x32xf32>, vector<32x96xf32>, vector<8x96xf32> -> vector<8x96xf32>
    %615 = vector.extract_strided_slice %613 {offsets = [0, 0], sizes = [8, 32], strides = [1, 1]} : vector<8x96xf32> to vector<8x32xf32>
    %616 = vector.extract_strided_slice %614 {offsets = [0, 0], sizes = [8, 32], strides = [1, 1]} : vector<8x96xf32> to vector<8x32xf32>
    %617 = arith.addf %615, %616 : vector<8x32xf32>
    %618 = arith.negf %617 : vector<8x32xf32>
    %619 = math.exp %618 : vector<8x32xf32>
    %cst_217 = arith.constant 1.000000e+00 : f32
    %620 = vector.broadcast %cst_217 : f32 to vector<8x32xf32>
    %621 = arith.addf %620, %619 : vector<8x32xf32>
    %622 = arith.divf %620, %621 : vector<8x32xf32>
    %623 = vector.extract_strided_slice %613 {offsets = [0, 32], sizes = [8, 32], strides = [1, 1]} : vector<8x96xf32> to vector<8x32xf32>
    %624 = vector.extract_strided_slice %614 {offsets = [0, 32], sizes = [8, 32], strides = [1, 1]} : vector<8x96xf32> to vector<8x32xf32>
    %625 = arith.addf %623, %624 : vector<8x32xf32>
    %626 = arith.negf %625 : vector<8x32xf32>
    %627 = math.exp %626 : vector<8x32xf32>
    %cst_218 = arith.constant 1.000000e+00 : f32
    %628 = vector.broadcast %cst_218 : f32 to vector<8x32xf32>
    %629 = arith.addf %628, %627 : vector<8x32xf32>
    %630 = arith.divf %628, %629 : vector<8x32xf32>
    %631 = vector.extract_strided_slice %613 {offsets = [0, 64], sizes = [8, 32], strides = [1, 1]} : vector<8x96xf32> to vector<8x32xf32>
    %632 = vector.extract_strided_slice %614 {offsets = [0, 64], sizes = [8, 32], strides = [1, 1]} : vector<8x96xf32> to vector<8x32xf32>
    %633 = arith.addf %632, %546 : vector<8x32xf32>
    %634 = arith.mulf %622, %633 : vector<8x32xf32>
    %635 = arith.addf %631, %634 : vector<8x32xf32>
    %636 = math.tanh %635 : vector<8x32xf32>
    %cst_219 = arith.constant 1.000000e+00 : f32
    %637 = vector.broadcast %cst_219 : f32 to vector<8x32xf32>
    %638 = arith.subf %637, %630 : vector<8x32xf32>
    %639 = arith.mulf %638, %636 : vector<8x32xf32>
    %640 = arith.mulf %630, %583 : vector<8x32xf32>
    %641 = arith.addf %639, %640 : vector<8x32xf32>
    %c48_220 = arith.constant 48 : index
    %c0_221 = arith.constant 0 : index
    %642 = vector.load %arg14[%c48_220, %c0_221] : memref<64x96xf32, #tpu.memory_space<vmem>>, vector<8x96xf32>
    %cst_222 = arith.constant dense<0.000000e+00> : vector<8x96xf32>
    %643 = tpu.matmul %612, %542, %cst_222 {dimension_numbers = #tpu.dot_dimension_numbers<[1], [0], [0], [1], [0, 0, 1, 1], [], []>} : vector<8x32xf32>, vector<32x96xf32>, vector<8x96xf32> -> vector<8x96xf32>
    %644 = vector.extract_strided_slice %642 {offsets = [0, 0], sizes = [8, 32], strides = [1, 1]} : vector<8x96xf32> to vector<8x32xf32>
    %645 = vector.extract_strided_slice %643 {offsets = [0, 0], sizes = [8, 32], strides = [1, 1]} : vector<8x96xf32> to vector<8x32xf32>
    %646 = arith.addf %644, %645 : vector<8x32xf32>
    %647 = arith.negf %646 : vector<8x32xf32>
    %648 = math.exp %647 : vector<8x32xf32>
    %cst_223 = arith.constant 1.000000e+00 : f32
    %649 = vector.broadcast %cst_223 : f32 to vector<8x32xf32>
    %650 = arith.addf %649, %648 : vector<8x32xf32>
    %651 = arith.divf %649, %650 : vector<8x32xf32>
    %652 = vector.extract_strided_slice %642 {offsets = [0, 32], sizes = [8, 32], strides = [1, 1]} : vector<8x96xf32> to vector<8x32xf32>
    %653 = vector.extract_strided_slice %643 {offsets = [0, 32], sizes = [8, 32], strides = [1, 1]} : vector<8x96xf32> to vector<8x32xf32>
    %654 = arith.addf %652, %653 : vector<8x32xf32>
    %655 = arith.negf %654 : vector<8x32xf32>
    %656 = math.exp %655 : vector<8x32xf32>
    %cst_224 = arith.constant 1.000000e+00 : f32
    %657 = vector.broadcast %cst_224 : f32 to vector<8x32xf32>
    %658 = arith.addf %657, %656 : vector<8x32xf32>
    %659 = arith.divf %657, %658 : vector<8x32xf32>
    %660 = vector.extract_strided_slice %642 {offsets = [0, 64], sizes = [8, 32], strides = [1, 1]} : vector<8x96xf32> to vector<8x32xf32>
    %661 = vector.extract_strided_slice %643 {offsets = [0, 64], sizes = [8, 32], strides = [1, 1]} : vector<8x96xf32> to vector<8x32xf32>
    %662 = arith.addf %661, %550 : vector<8x32xf32>
    %663 = arith.mulf %651, %662 : vector<8x32xf32>
    %664 = arith.addf %660, %663 : vector<8x32xf32>
    %665 = math.tanh %664 : vector<8x32xf32>
    %cst_225 = arith.constant 1.000000e+00 : f32
    %666 = vector.broadcast %cst_225 : f32 to vector<8x32xf32>
    %667 = arith.subf %666, %659 : vector<8x32xf32>
    %668 = arith.mulf %667, %665 : vector<8x32xf32>
    %669 = arith.mulf %659, %612 : vector<8x32xf32>
    %670 = arith.addf %668, %669 : vector<8x32xf32>
    %c16_226 = arith.constant 16 : index
    %c0_227 = arith.constant 0 : index
    %671 = vector.load %arg13[%c16_226, %c0_227] : memref<64x96xf32, #tpu.memory_space<vmem>>, vector<8x96xf32>
    %cst_228 = arith.constant dense<0.000000e+00> : vector<8x96xf32>
    %672 = tpu.matmul %641, %540, %cst_228 {dimension_numbers = #tpu.dot_dimension_numbers<[1], [0], [0], [1], [0, 0, 1, 1], [], []>} : vector<8x32xf32>, vector<32x96xf32>, vector<8x96xf32> -> vector<8x96xf32>
    %673 = vector.extract_strided_slice %671 {offsets = [0, 0], sizes = [8, 32], strides = [1, 1]} : vector<8x96xf32> to vector<8x32xf32>
    %674 = vector.extract_strided_slice %672 {offsets = [0, 0], sizes = [8, 32], strides = [1, 1]} : vector<8x96xf32> to vector<8x32xf32>
    %675 = arith.addf %673, %674 : vector<8x32xf32>
    %676 = arith.negf %675 : vector<8x32xf32>
    %677 = math.exp %676 : vector<8x32xf32>
    %cst_229 = arith.constant 1.000000e+00 : f32
    %678 = vector.broadcast %cst_229 : f32 to vector<8x32xf32>
    %679 = arith.addf %678, %677 : vector<8x32xf32>
    %680 = arith.divf %678, %679 : vector<8x32xf32>
    %681 = vector.extract_strided_slice %671 {offsets = [0, 32], sizes = [8, 32], strides = [1, 1]} : vector<8x96xf32> to vector<8x32xf32>
    %682 = vector.extract_strided_slice %672 {offsets = [0, 32], sizes = [8, 32], strides = [1, 1]} : vector<8x96xf32> to vector<8x32xf32>
    %683 = arith.addf %681, %682 : vector<8x32xf32>
    %684 = arith.negf %683 : vector<8x32xf32>
    %685 = math.exp %684 : vector<8x32xf32>
    %cst_230 = arith.constant 1.000000e+00 : f32
    %686 = vector.broadcast %cst_230 : f32 to vector<8x32xf32>
    %687 = arith.addf %686, %685 : vector<8x32xf32>
    %688 = arith.divf %686, %687 : vector<8x32xf32>
    %689 = vector.extract_strided_slice %671 {offsets = [0, 64], sizes = [8, 32], strides = [1, 1]} : vector<8x96xf32> to vector<8x32xf32>
    %690 = vector.extract_strided_slice %672 {offsets = [0, 64], sizes = [8, 32], strides = [1, 1]} : vector<8x96xf32> to vector<8x32xf32>
    %691 = arith.addf %690, %546 : vector<8x32xf32>
    %692 = arith.mulf %680, %691 : vector<8x32xf32>
    %693 = arith.addf %689, %692 : vector<8x32xf32>
    %694 = math.tanh %693 : vector<8x32xf32>
    %cst_231 = arith.constant 1.000000e+00 : f32
    %695 = vector.broadcast %cst_231 : f32 to vector<8x32xf32>
    %696 = arith.subf %695, %688 : vector<8x32xf32>
    %697 = arith.mulf %696, %694 : vector<8x32xf32>
    %698 = arith.mulf %688, %641 : vector<8x32xf32>
    %699 = arith.addf %697, %698 : vector<8x32xf32>
    %c40_232 = arith.constant 40 : index
    %c0_233 = arith.constant 0 : index
    %700 = vector.load %arg14[%c40_232, %c0_233] : memref<64x96xf32, #tpu.memory_space<vmem>>, vector<8x96xf32>
    %cst_234 = arith.constant dense<0.000000e+00> : vector<8x96xf32>
    %701 = tpu.matmul %670, %542, %cst_234 {dimension_numbers = #tpu.dot_dimension_numbers<[1], [0], [0], [1], [0, 0, 1, 1], [], []>} : vector<8x32xf32>, vector<32x96xf32>, vector<8x96xf32> -> vector<8x96xf32>
    %702 = vector.extract_strided_slice %700 {offsets = [0, 0], sizes = [8, 32], strides = [1, 1]} : vector<8x96xf32> to vector<8x32xf32>
    %703 = vector.extract_strided_slice %701 {offsets = [0, 0], sizes = [8, 32], strides = [1, 1]} : vector<8x96xf32> to vector<8x32xf32>
    %704 = arith.addf %702, %703 : vector<8x32xf32>
    %705 = arith.negf %704 : vector<8x32xf32>
    %706 = math.exp %705 : vector<8x32xf32>
    %cst_235 = arith.constant 1.000000e+00 : f32
    %707 = vector.broadcast %cst_235 : f32 to vector<8x32xf32>
    %708 = arith.addf %707, %706 : vector<8x32xf32>
    %709 = arith.divf %707, %708 : vector<8x32xf32>
    %710 = vector.extract_strided_slice %700 {offsets = [0, 32], sizes = [8, 32], strides = [1, 1]} : vector<8x96xf32> to vector<8x32xf32>
    %711 = vector.extract_strided_slice %701 {offsets = [0, 32], sizes = [8, 32], strides = [1, 1]} : vector<8x96xf32> to vector<8x32xf32>
    %712 = arith.addf %710, %711 : vector<8x32xf32>
    %713 = arith.negf %712 : vector<8x32xf32>
    %714 = math.exp %713 : vector<8x32xf32>
    %cst_236 = arith.constant 1.000000e+00 : f32
    %715 = vector.broadcast %cst_236 : f32 to vector<8x32xf32>
    %716 = arith.addf %715, %714 : vector<8x32xf32>
    %717 = arith.divf %715, %716 : vector<8x32xf32>
    %718 = vector.extract_strided_slice %700 {offsets = [0, 64], sizes = [8, 32], strides = [1, 1]} : vector<8x96xf32> to vector<8x32xf32>
    %719 = vector.extract_strided_slice %701 {offsets = [0, 64], sizes = [8, 32], strides = [1, 1]} : vector<8x96xf32> to vector<8x32xf32>
    %720 = arith.addf %719, %550 : vector<8x32xf32>
    %721 = arith.mulf %709, %720 : vector<8x32xf32>
    %722 = arith.addf %718, %721 : vector<8x32xf32>
    %723 = math.tanh %722 : vector<8x32xf32>
    %cst_237 = arith.constant 1.000000e+00 : f32
    %724 = vector.broadcast %cst_237 : f32 to vector<8x32xf32>
    %725 = arith.subf %724, %717 : vector<8x32xf32>
    %726 = arith.mulf %725, %723 : vector<8x32xf32>
    %727 = arith.mulf %717, %670 : vector<8x32xf32>
    %728 = arith.addf %726, %727 : vector<8x32xf32>
    %c24_238 = arith.constant 24 : index
    %c0_239 = arith.constant 0 : index
    %729 = vector.load %arg13[%c24_238, %c0_239] : memref<64x96xf32, #tpu.memory_space<vmem>>, vector<8x96xf32>
    %cst_240 = arith.constant dense<0.000000e+00> : vector<8x96xf32>
    %730 = tpu.matmul %699, %540, %cst_240 {dimension_numbers = #tpu.dot_dimension_numbers<[1], [0], [0], [1], [0, 0, 1, 1], [], []>} : vector<8x32xf32>, vector<32x96xf32>, vector<8x96xf32> -> vector<8x96xf32>
    %731 = vector.extract_strided_slice %729 {offsets = [0, 0], sizes = [8, 32], strides = [1, 1]} : vector<8x96xf32> to vector<8x32xf32>
    %732 = vector.extract_strided_slice %730 {offsets = [0, 0], sizes = [8, 32], strides = [1, 1]} : vector<8x96xf32> to vector<8x32xf32>
    %733 = arith.addf %731, %732 : vector<8x32xf32>
    %734 = arith.negf %733 : vector<8x32xf32>
    %735 = math.exp %734 : vector<8x32xf32>
    %cst_241 = arith.constant 1.000000e+00 : f32
    %736 = vector.broadcast %cst_241 : f32 to vector<8x32xf32>
    %737 = arith.addf %736, %735 : vector<8x32xf32>
    %738 = arith.divf %736, %737 : vector<8x32xf32>
    %739 = vector.extract_strided_slice %729 {offsets = [0, 32], sizes = [8, 32], strides = [1, 1]} : vector<8x96xf32> to vector<8x32xf32>
    %740 = vector.extract_strided_slice %730 {offsets = [0, 32], sizes = [8, 32], strides = [1, 1]} : vector<8x96xf32> to vector<8x32xf32>
    %741 = arith.addf %739, %740 : vector<8x32xf32>
    %742 = arith.negf %741 : vector<8x32xf32>
    %743 = math.exp %742 : vector<8x32xf32>
    %cst_242 = arith.constant 1.000000e+00 : f32
    %744 = vector.broadcast %cst_242 : f32 to vector<8x32xf32>
    %745 = arith.addf %744, %743 : vector<8x32xf32>
    %746 = arith.divf %744, %745 : vector<8x32xf32>
    %747 = vector.extract_strided_slice %729 {offsets = [0, 64], sizes = [8, 32], strides = [1, 1]} : vector<8x96xf32> to vector<8x32xf32>
    %748 = vector.extract_strided_slice %730 {offsets = [0, 64], sizes = [8, 32], strides = [1, 1]} : vector<8x96xf32> to vector<8x32xf32>
    %749 = arith.addf %748, %546 : vector<8x32xf32>
    %750 = arith.mulf %738, %749 : vector<8x32xf32>
    %751 = arith.addf %747, %750 : vector<8x32xf32>
    %752 = math.tanh %751 : vector<8x32xf32>
    %cst_243 = arith.constant 1.000000e+00 : f32
    %753 = vector.broadcast %cst_243 : f32 to vector<8x32xf32>
    %754 = arith.subf %753, %746 : vector<8x32xf32>
    %755 = arith.mulf %754, %752 : vector<8x32xf32>
    %756 = arith.mulf %746, %699 : vector<8x32xf32>
    %757 = arith.addf %755, %756 : vector<8x32xf32>
    %c32_244 = arith.constant 32 : index
    %c0_245 = arith.constant 0 : index
    %758 = vector.load %arg14[%c32_244, %c0_245] : memref<64x96xf32, #tpu.memory_space<vmem>>, vector<8x96xf32>
    %cst_246 = arith.constant dense<0.000000e+00> : vector<8x96xf32>
    %759 = tpu.matmul %728, %542, %cst_246 {dimension_numbers = #tpu.dot_dimension_numbers<[1], [0], [0], [1], [0, 0, 1, 1], [], []>} : vector<8x32xf32>, vector<32x96xf32>, vector<8x96xf32> -> vector<8x96xf32>
    %760 = vector.extract_strided_slice %758 {offsets = [0, 0], sizes = [8, 32], strides = [1, 1]} : vector<8x96xf32> to vector<8x32xf32>
    %761 = vector.extract_strided_slice %759 {offsets = [0, 0], sizes = [8, 32], strides = [1, 1]} : vector<8x96xf32> to vector<8x32xf32>
    %762 = arith.addf %760, %761 : vector<8x32xf32>
    %763 = arith.negf %762 : vector<8x32xf32>
    %764 = math.exp %763 : vector<8x32xf32>
    %cst_247 = arith.constant 1.000000e+00 : f32
    %765 = vector.broadcast %cst_247 : f32 to vector<8x32xf32>
    %766 = arith.addf %765, %764 : vector<8x32xf32>
    %767 = arith.divf %765, %766 : vector<8x32xf32>
    %768 = vector.extract_strided_slice %758 {offsets = [0, 32], sizes = [8, 32], strides = [1, 1]} : vector<8x96xf32> to vector<8x32xf32>
    %769 = vector.extract_strided_slice %759 {offsets = [0, 32], sizes = [8, 32], strides = [1, 1]} : vector<8x96xf32> to vector<8x32xf32>
    %770 = arith.addf %768, %769 : vector<8x32xf32>
    %771 = arith.negf %770 : vector<8x32xf32>
    %772 = math.exp %771 : vector<8x32xf32>
    %cst_248 = arith.constant 1.000000e+00 : f32
    %773 = vector.broadcast %cst_248 : f32 to vector<8x32xf32>
    %774 = arith.addf %773, %772 : vector<8x32xf32>
    %775 = arith.divf %773, %774 : vector<8x32xf32>
    %776 = vector.extract_strided_slice %758 {offsets = [0, 64], sizes = [8, 32], strides = [1, 1]} : vector<8x96xf32> to vector<8x32xf32>
    %777 = vector.extract_strided_slice %759 {offsets = [0, 64], sizes = [8, 32], strides = [1, 1]} : vector<8x96xf32> to vector<8x32xf32>
    %778 = arith.addf %777, %550 : vector<8x32xf32>
    %779 = arith.mulf %767, %778 : vector<8x32xf32>
    %780 = arith.addf %776, %779 : vector<8x32xf32>
    %781 = math.tanh %780 : vector<8x32xf32>
    %cst_249 = arith.constant 1.000000e+00 : f32
    %782 = vector.broadcast %cst_249 : f32 to vector<8x32xf32>
    %783 = arith.subf %782, %775 : vector<8x32xf32>
    %784 = arith.mulf %783, %781 : vector<8x32xf32>
    %785 = arith.mulf %775, %728 : vector<8x32xf32>
    %786 = arith.addf %784, %785 : vector<8x32xf32>
    %c32_250 = arith.constant 32 : index
    %c0_251 = arith.constant 0 : index
    %787 = vector.load %arg13[%c32_250, %c0_251] : memref<64x96xf32, #tpu.memory_space<vmem>>, vector<8x96xf32>
    %cst_252 = arith.constant dense<0.000000e+00> : vector<8x96xf32>
    %788 = tpu.matmul %757, %540, %cst_252 {dimension_numbers = #tpu.dot_dimension_numbers<[1], [0], [0], [1], [0, 0, 1, 1], [], []>} : vector<8x32xf32>, vector<32x96xf32>, vector<8x96xf32> -> vector<8x96xf32>
    %789 = vector.extract_strided_slice %787 {offsets = [0, 0], sizes = [8, 32], strides = [1, 1]} : vector<8x96xf32> to vector<8x32xf32>
    %790 = vector.extract_strided_slice %788 {offsets = [0, 0], sizes = [8, 32], strides = [1, 1]} : vector<8x96xf32> to vector<8x32xf32>
    %791 = arith.addf %789, %790 : vector<8x32xf32>
    %792 = arith.negf %791 : vector<8x32xf32>
    %793 = math.exp %792 : vector<8x32xf32>
    %cst_253 = arith.constant 1.000000e+00 : f32
    %794 = vector.broadcast %cst_253 : f32 to vector<8x32xf32>
    %795 = arith.addf %794, %793 : vector<8x32xf32>
    %796 = arith.divf %794, %795 : vector<8x32xf32>
    %797 = vector.extract_strided_slice %787 {offsets = [0, 32], sizes = [8, 32], strides = [1, 1]} : vector<8x96xf32> to vector<8x32xf32>
    %798 = vector.extract_strided_slice %788 {offsets = [0, 32], sizes = [8, 32], strides = [1, 1]} : vector<8x96xf32> to vector<8x32xf32>
    %799 = arith.addf %797, %798 : vector<8x32xf32>
    %800 = arith.negf %799 : vector<8x32xf32>
    %801 = math.exp %800 : vector<8x32xf32>
    %cst_254 = arith.constant 1.000000e+00 : f32
    %802 = vector.broadcast %cst_254 : f32 to vector<8x32xf32>
    %803 = arith.addf %802, %801 : vector<8x32xf32>
    %804 = arith.divf %802, %803 : vector<8x32xf32>
    %805 = vector.extract_strided_slice %787 {offsets = [0, 64], sizes = [8, 32], strides = [1, 1]} : vector<8x96xf32> to vector<8x32xf32>
    %806 = vector.extract_strided_slice %788 {offsets = [0, 64], sizes = [8, 32], strides = [1, 1]} : vector<8x96xf32> to vector<8x32xf32>
    %807 = arith.addf %806, %546 : vector<8x32xf32>
    %808 = arith.mulf %796, %807 : vector<8x32xf32>
    %809 = arith.addf %805, %808 : vector<8x32xf32>
    %810 = math.tanh %809 : vector<8x32xf32>
    %cst_255 = arith.constant 1.000000e+00 : f32
    %811 = vector.broadcast %cst_255 : f32 to vector<8x32xf32>
    %812 = arith.subf %811, %804 : vector<8x32xf32>
    %813 = arith.mulf %812, %810 : vector<8x32xf32>
    %814 = arith.mulf %804, %757 : vector<8x32xf32>
    %815 = arith.addf %813, %814 : vector<8x32xf32>
    %c24_256 = arith.constant 24 : index
    %c0_257 = arith.constant 0 : index
    %816 = vector.load %arg14[%c24_256, %c0_257] : memref<64x96xf32, #tpu.memory_space<vmem>>, vector<8x96xf32>
    %cst_258 = arith.constant dense<0.000000e+00> : vector<8x96xf32>
    %817 = tpu.matmul %786, %542, %cst_258 {dimension_numbers = #tpu.dot_dimension_numbers<[1], [0], [0], [1], [0, 0, 1, 1], [], []>} : vector<8x32xf32>, vector<32x96xf32>, vector<8x96xf32> -> vector<8x96xf32>
    %818 = vector.extract_strided_slice %816 {offsets = [0, 0], sizes = [8, 32], strides = [1, 1]} : vector<8x96xf32> to vector<8x32xf32>
    %819 = vector.extract_strided_slice %817 {offsets = [0, 0], sizes = [8, 32], strides = [1, 1]} : vector<8x96xf32> to vector<8x32xf32>
    %820 = arith.addf %818, %819 : vector<8x32xf32>
    %821 = arith.negf %820 : vector<8x32xf32>
    %822 = math.exp %821 : vector<8x32xf32>
    %cst_259 = arith.constant 1.000000e+00 : f32
    %823 = vector.broadcast %cst_259 : f32 to vector<8x32xf32>
    %824 = arith.addf %823, %822 : vector<8x32xf32>
    %825 = arith.divf %823, %824 : vector<8x32xf32>
    %826 = vector.extract_strided_slice %816 {offsets = [0, 32], sizes = [8, 32], strides = [1, 1]} : vector<8x96xf32> to vector<8x32xf32>
    %827 = vector.extract_strided_slice %817 {offsets = [0, 32], sizes = [8, 32], strides = [1, 1]} : vector<8x96xf32> to vector<8x32xf32>
    %828 = arith.addf %826, %827 : vector<8x32xf32>
    %829 = arith.negf %828 : vector<8x32xf32>
    %830 = math.exp %829 : vector<8x32xf32>
    %cst_260 = arith.constant 1.000000e+00 : f32
    %831 = vector.broadcast %cst_260 : f32 to vector<8x32xf32>
    %832 = arith.addf %831, %830 : vector<8x32xf32>
    %833 = arith.divf %831, %832 : vector<8x32xf32>
    %834 = vector.extract_strided_slice %816 {offsets = [0, 64], sizes = [8, 32], strides = [1, 1]} : vector<8x96xf32> to vector<8x32xf32>
    %835 = vector.extract_strided_slice %817 {offsets = [0, 64], sizes = [8, 32], strides = [1, 1]} : vector<8x96xf32> to vector<8x32xf32>
    %836 = arith.addf %835, %550 : vector<8x32xf32>
    %837 = arith.mulf %825, %836 : vector<8x32xf32>
    %838 = arith.addf %834, %837 : vector<8x32xf32>
    %839 = math.tanh %838 : vector<8x32xf32>
    %cst_261 = arith.constant 1.000000e+00 : f32
    %840 = vector.broadcast %cst_261 : f32 to vector<8x32xf32>
    %841 = arith.subf %840, %833 : vector<8x32xf32>
    %842 = arith.mulf %841, %839 : vector<8x32xf32>
    %843 = arith.mulf %833, %786 : vector<8x32xf32>
    %844 = arith.addf %842, %843 : vector<8x32xf32>
    %c40_262 = arith.constant 40 : index
    %c0_263 = arith.constant 0 : index
    %845 = vector.load %arg13[%c40_262, %c0_263] : memref<64x96xf32, #tpu.memory_space<vmem>>, vector<8x96xf32>
    %cst_264 = arith.constant dense<0.000000e+00> : vector<8x96xf32>
    %846 = tpu.matmul %815, %540, %cst_264 {dimension_numbers = #tpu.dot_dimension_numbers<[1], [0], [0], [1], [0, 0, 1, 1], [], []>} : vector<8x32xf32>, vector<32x96xf32>, vector<8x96xf32> -> vector<8x96xf32>
    %847 = vector.extract_strided_slice %845 {offsets = [0, 0], sizes = [8, 32], strides = [1, 1]} : vector<8x96xf32> to vector<8x32xf32>
    %848 = vector.extract_strided_slice %846 {offsets = [0, 0], sizes = [8, 32], strides = [1, 1]} : vector<8x96xf32> to vector<8x32xf32>
    %849 = arith.addf %847, %848 : vector<8x32xf32>
    %850 = arith.negf %849 : vector<8x32xf32>
    %851 = math.exp %850 : vector<8x32xf32>
    %cst_265 = arith.constant 1.000000e+00 : f32
    %852 = vector.broadcast %cst_265 : f32 to vector<8x32xf32>
    %853 = arith.addf %852, %851 : vector<8x32xf32>
    %854 = arith.divf %852, %853 : vector<8x32xf32>
    %855 = vector.extract_strided_slice %845 {offsets = [0, 32], sizes = [8, 32], strides = [1, 1]} : vector<8x96xf32> to vector<8x32xf32>
    %856 = vector.extract_strided_slice %846 {offsets = [0, 32], sizes = [8, 32], strides = [1, 1]} : vector<8x96xf32> to vector<8x32xf32>
    %857 = arith.addf %855, %856 : vector<8x32xf32>
    %858 = arith.negf %857 : vector<8x32xf32>
    %859 = math.exp %858 : vector<8x32xf32>
    %cst_266 = arith.constant 1.000000e+00 : f32
    %860 = vector.broadcast %cst_266 : f32 to vector<8x32xf32>
    %861 = arith.addf %860, %859 : vector<8x32xf32>
    %862 = arith.divf %860, %861 : vector<8x32xf32>
    %863 = vector.extract_strided_slice %845 {offsets = [0, 64], sizes = [8, 32], strides = [1, 1]} : vector<8x96xf32> to vector<8x32xf32>
    %864 = vector.extract_strided_slice %846 {offsets = [0, 64], sizes = [8, 32], strides = [1, 1]} : vector<8x96xf32> to vector<8x32xf32>
    %865 = arith.addf %864, %546 : vector<8x32xf32>
    %866 = arith.mulf %854, %865 : vector<8x32xf32>
    %867 = arith.addf %863, %866 : vector<8x32xf32>
    %868 = math.tanh %867 : vector<8x32xf32>
    %cst_267 = arith.constant 1.000000e+00 : f32
    %869 = vector.broadcast %cst_267 : f32 to vector<8x32xf32>
    %870 = arith.subf %869, %862 : vector<8x32xf32>
    %871 = arith.mulf %870, %868 : vector<8x32xf32>
    %872 = arith.mulf %862, %815 : vector<8x32xf32>
    %873 = arith.addf %871, %872 : vector<8x32xf32>
    %c16_268 = arith.constant 16 : index
    %c0_269 = arith.constant 0 : index
    %874 = vector.load %arg14[%c16_268, %c0_269] : memref<64x96xf32, #tpu.memory_space<vmem>>, vector<8x96xf32>
    %cst_270 = arith.constant dense<0.000000e+00> : vector<8x96xf32>
    %875 = tpu.matmul %844, %542, %cst_270 {dimension_numbers = #tpu.dot_dimension_numbers<[1], [0], [0], [1], [0, 0, 1, 1], [], []>} : vector<8x32xf32>, vector<32x96xf32>, vector<8x96xf32> -> vector<8x96xf32>
    %876 = vector.extract_strided_slice %874 {offsets = [0, 0], sizes = [8, 32], strides = [1, 1]} : vector<8x96xf32> to vector<8x32xf32>
    %877 = vector.extract_strided_slice %875 {offsets = [0, 0], sizes = [8, 32], strides = [1, 1]} : vector<8x96xf32> to vector<8x32xf32>
    %878 = arith.addf %876, %877 : vector<8x32xf32>
    %879 = arith.negf %878 : vector<8x32xf32>
    %880 = math.exp %879 : vector<8x32xf32>
    %cst_271 = arith.constant 1.000000e+00 : f32
    %881 = vector.broadcast %cst_271 : f32 to vector<8x32xf32>
    %882 = arith.addf %881, %880 : vector<8x32xf32>
    %883 = arith.divf %881, %882 : vector<8x32xf32>
    %884 = vector.extract_strided_slice %874 {offsets = [0, 32], sizes = [8, 32], strides = [1, 1]} : vector<8x96xf32> to vector<8x32xf32>
    %885 = vector.extract_strided_slice %875 {offsets = [0, 32], sizes = [8, 32], strides = [1, 1]} : vector<8x96xf32> to vector<8x32xf32>
    %886 = arith.addf %884, %885 : vector<8x32xf32>
    %887 = arith.negf %886 : vector<8x32xf32>
    %888 = math.exp %887 : vector<8x32xf32>
    %cst_272 = arith.constant 1.000000e+00 : f32
    %889 = vector.broadcast %cst_272 : f32 to vector<8x32xf32>
    %890 = arith.addf %889, %888 : vector<8x32xf32>
    %891 = arith.divf %889, %890 : vector<8x32xf32>
    %892 = vector.extract_strided_slice %874 {offsets = [0, 64], sizes = [8, 32], strides = [1, 1]} : vector<8x96xf32> to vector<8x32xf32>
    %893 = vector.extract_strided_slice %875 {offsets = [0, 64], sizes = [8, 32], strides = [1, 1]} : vector<8x96xf32> to vector<8x32xf32>
    %894 = arith.addf %893, %550 : vector<8x32xf32>
    %895 = arith.mulf %883, %894 : vector<8x32xf32>
    %896 = arith.addf %892, %895 : vector<8x32xf32>
    %897 = math.tanh %896 : vector<8x32xf32>
    %cst_273 = arith.constant 1.000000e+00 : f32
    %898 = vector.broadcast %cst_273 : f32 to vector<8x32xf32>
    %899 = arith.subf %898, %891 : vector<8x32xf32>
    %900 = arith.mulf %899, %897 : vector<8x32xf32>
    %901 = arith.mulf %891, %844 : vector<8x32xf32>
    %902 = arith.addf %900, %901 : vector<8x32xf32>
    %c48_274 = arith.constant 48 : index
    %c0_275 = arith.constant 0 : index
    %903 = vector.load %arg13[%c48_274, %c0_275] : memref<64x96xf32, #tpu.memory_space<vmem>>, vector<8x96xf32>
    %cst_276 = arith.constant dense<0.000000e+00> : vector<8x96xf32>
    %904 = tpu.matmul %873, %540, %cst_276 {dimension_numbers = #tpu.dot_dimension_numbers<[1], [0], [0], [1], [0, 0, 1, 1], [], []>} : vector<8x32xf32>, vector<32x96xf32>, vector<8x96xf32> -> vector<8x96xf32>
    %905 = vector.extract_strided_slice %903 {offsets = [0, 0], sizes = [8, 32], strides = [1, 1]} : vector<8x96xf32> to vector<8x32xf32>
    %906 = vector.extract_strided_slice %904 {offsets = [0, 0], sizes = [8, 32], strides = [1, 1]} : vector<8x96xf32> to vector<8x32xf32>
    %907 = arith.addf %905, %906 : vector<8x32xf32>
    %908 = arith.negf %907 : vector<8x32xf32>
    %909 = math.exp %908 : vector<8x32xf32>
    %cst_277 = arith.constant 1.000000e+00 : f32
    %910 = vector.broadcast %cst_277 : f32 to vector<8x32xf32>
    %911 = arith.addf %910, %909 : vector<8x32xf32>
    %912 = arith.divf %910, %911 : vector<8x32xf32>
    %913 = vector.extract_strided_slice %903 {offsets = [0, 32], sizes = [8, 32], strides = [1, 1]} : vector<8x96xf32> to vector<8x32xf32>
    %914 = vector.extract_strided_slice %904 {offsets = [0, 32], sizes = [8, 32], strides = [1, 1]} : vector<8x96xf32> to vector<8x32xf32>
    %915 = arith.addf %913, %914 : vector<8x32xf32>
    %916 = arith.negf %915 : vector<8x32xf32>
    %917 = math.exp %916 : vector<8x32xf32>
    %cst_278 = arith.constant 1.000000e+00 : f32
    %918 = vector.broadcast %cst_278 : f32 to vector<8x32xf32>
    %919 = arith.addf %918, %917 : vector<8x32xf32>
    %920 = arith.divf %918, %919 : vector<8x32xf32>
    %921 = vector.extract_strided_slice %903 {offsets = [0, 64], sizes = [8, 32], strides = [1, 1]} : vector<8x96xf32> to vector<8x32xf32>
    %922 = vector.extract_strided_slice %904 {offsets = [0, 64], sizes = [8, 32], strides = [1, 1]} : vector<8x96xf32> to vector<8x32xf32>
    %923 = arith.addf %922, %546 : vector<8x32xf32>
    %924 = arith.mulf %912, %923 : vector<8x32xf32>
    %925 = arith.addf %921, %924 : vector<8x32xf32>
    %926 = math.tanh %925 : vector<8x32xf32>
    %cst_279 = arith.constant 1.000000e+00 : f32
    %927 = vector.broadcast %cst_279 : f32 to vector<8x32xf32>
    %928 = arith.subf %927, %920 : vector<8x32xf32>
    %929 = arith.mulf %928, %926 : vector<8x32xf32>
    %930 = arith.mulf %920, %873 : vector<8x32xf32>
    %931 = arith.addf %929, %930 : vector<8x32xf32>
    %c8_280 = arith.constant 8 : index
    %c0_281 = arith.constant 0 : index
    %932 = vector.load %arg14[%c8_280, %c0_281] : memref<64x96xf32, #tpu.memory_space<vmem>>, vector<8x96xf32>
    %cst_282 = arith.constant dense<0.000000e+00> : vector<8x96xf32>
    %933 = tpu.matmul %902, %542, %cst_282 {dimension_numbers = #tpu.dot_dimension_numbers<[1], [0], [0], [1], [0, 0, 1, 1], [], []>} : vector<8x32xf32>, vector<32x96xf32>, vector<8x96xf32> -> vector<8x96xf32>
    %934 = vector.extract_strided_slice %932 {offsets = [0, 0], sizes = [8, 32], strides = [1, 1]} : vector<8x96xf32> to vector<8x32xf32>
    %935 = vector.extract_strided_slice %933 {offsets = [0, 0], sizes = [8, 32], strides = [1, 1]} : vector<8x96xf32> to vector<8x32xf32>
    %936 = arith.addf %934, %935 : vector<8x32xf32>
    %937 = arith.negf %936 : vector<8x32xf32>
    %938 = math.exp %937 : vector<8x32xf32>
    %cst_283 = arith.constant 1.000000e+00 : f32
    %939 = vector.broadcast %cst_283 : f32 to vector<8x32xf32>
    %940 = arith.addf %939, %938 : vector<8x32xf32>
    %941 = arith.divf %939, %940 : vector<8x32xf32>
    %942 = vector.extract_strided_slice %932 {offsets = [0, 32], sizes = [8, 32], strides = [1, 1]} : vector<8x96xf32> to vector<8x32xf32>
    %943 = vector.extract_strided_slice %933 {offsets = [0, 32], sizes = [8, 32], strides = [1, 1]} : vector<8x96xf32> to vector<8x32xf32>
    %944 = arith.addf %942, %943 : vector<8x32xf32>
    %945 = arith.negf %944 : vector<8x32xf32>
    %946 = math.exp %945 : vector<8x32xf32>
    %cst_284 = arith.constant 1.000000e+00 : f32
    %947 = vector.broadcast %cst_284 : f32 to vector<8x32xf32>
    %948 = arith.addf %947, %946 : vector<8x32xf32>
    %949 = arith.divf %947, %948 : vector<8x32xf32>
    %950 = vector.extract_strided_slice %932 {offsets = [0, 64], sizes = [8, 32], strides = [1, 1]} : vector<8x96xf32> to vector<8x32xf32>
    %951 = vector.extract_strided_slice %933 {offsets = [0, 64], sizes = [8, 32], strides = [1, 1]} : vector<8x96xf32> to vector<8x32xf32>
    %952 = arith.addf %951, %550 : vector<8x32xf32>
    %953 = arith.mulf %941, %952 : vector<8x32xf32>
    %954 = arith.addf %950, %953 : vector<8x32xf32>
    %955 = math.tanh %954 : vector<8x32xf32>
    %cst_285 = arith.constant 1.000000e+00 : f32
    %956 = vector.broadcast %cst_285 : f32 to vector<8x32xf32>
    %957 = arith.subf %956, %949 : vector<8x32xf32>
    %958 = arith.mulf %957, %955 : vector<8x32xf32>
    %959 = arith.mulf %949, %902 : vector<8x32xf32>
    %960 = arith.addf %958, %959 : vector<8x32xf32>
    %c56_286 = arith.constant 56 : index
    %c0_287 = arith.constant 0 : index
    %961 = vector.load %arg13[%c56_286, %c0_287] : memref<64x96xf32, #tpu.memory_space<vmem>>, vector<8x96xf32>
    %cst_288 = arith.constant dense<0.000000e+00> : vector<8x96xf32>
    %962 = tpu.matmul %931, %540, %cst_288 {dimension_numbers = #tpu.dot_dimension_numbers<[1], [0], [0], [1], [0, 0, 1, 1], [], []>} : vector<8x32xf32>, vector<32x96xf32>, vector<8x96xf32> -> vector<8x96xf32>
    %963 = vector.extract_strided_slice %961 {offsets = [0, 0], sizes = [8, 32], strides = [1, 1]} : vector<8x96xf32> to vector<8x32xf32>
    %964 = vector.extract_strided_slice %962 {offsets = [0, 0], sizes = [8, 32], strides = [1, 1]} : vector<8x96xf32> to vector<8x32xf32>
    %965 = arith.addf %963, %964 : vector<8x32xf32>
    %966 = arith.negf %965 : vector<8x32xf32>
    %967 = math.exp %966 : vector<8x32xf32>
    %cst_289 = arith.constant 1.000000e+00 : f32
    %968 = vector.broadcast %cst_289 : f32 to vector<8x32xf32>
    %969 = arith.addf %968, %967 : vector<8x32xf32>
    %970 = arith.divf %968, %969 : vector<8x32xf32>
    %971 = vector.extract_strided_slice %961 {offsets = [0, 32], sizes = [8, 32], strides = [1, 1]} : vector<8x96xf32> to vector<8x32xf32>
    %972 = vector.extract_strided_slice %962 {offsets = [0, 32], sizes = [8, 32], strides = [1, 1]} : vector<8x96xf32> to vector<8x32xf32>
    %973 = arith.addf %971, %972 : vector<8x32xf32>
    %974 = arith.negf %973 : vector<8x32xf32>
    %975 = math.exp %974 : vector<8x32xf32>
    %cst_290 = arith.constant 1.000000e+00 : f32
    %976 = vector.broadcast %cst_290 : f32 to vector<8x32xf32>
    %977 = arith.addf %976, %975 : vector<8x32xf32>
    %978 = arith.divf %976, %977 : vector<8x32xf32>
    %979 = vector.extract_strided_slice %961 {offsets = [0, 64], sizes = [8, 32], strides = [1, 1]} : vector<8x96xf32> to vector<8x32xf32>
    %980 = vector.extract_strided_slice %962 {offsets = [0, 64], sizes = [8, 32], strides = [1, 1]} : vector<8x96xf32> to vector<8x32xf32>
    %981 = arith.addf %980, %546 : vector<8x32xf32>
    %982 = arith.mulf %970, %981 : vector<8x32xf32>
    %983 = arith.addf %979, %982 : vector<8x32xf32>
    %984 = math.tanh %983 : vector<8x32xf32>
    %cst_291 = arith.constant 1.000000e+00 : f32
    %985 = vector.broadcast %cst_291 : f32 to vector<8x32xf32>
    %986 = arith.subf %985, %978 : vector<8x32xf32>
    %987 = arith.mulf %986, %984 : vector<8x32xf32>
    %988 = arith.mulf %978, %931 : vector<8x32xf32>
    %989 = arith.addf %987, %988 : vector<8x32xf32>
    %c0_292 = arith.constant 0 : index
    %c0_293 = arith.constant 0 : index
    %990 = vector.load %arg14[%c0_292, %c0_293] : memref<64x96xf32, #tpu.memory_space<vmem>>, vector<8x96xf32>
    %cst_294 = arith.constant dense<0.000000e+00> : vector<8x96xf32>
    %991 = tpu.matmul %960, %542, %cst_294 {dimension_numbers = #tpu.dot_dimension_numbers<[1], [0], [0], [1], [0, 0, 1, 1], [], []>} : vector<8x32xf32>, vector<32x96xf32>, vector<8x96xf32> -> vector<8x96xf32>
    %992 = vector.extract_strided_slice %990 {offsets = [0, 0], sizes = [8, 32], strides = [1, 1]} : vector<8x96xf32> to vector<8x32xf32>
    %993 = vector.extract_strided_slice %991 {offsets = [0, 0], sizes = [8, 32], strides = [1, 1]} : vector<8x96xf32> to vector<8x32xf32>
    %994 = arith.addf %992, %993 : vector<8x32xf32>
    %995 = arith.negf %994 : vector<8x32xf32>
    %996 = math.exp %995 : vector<8x32xf32>
    %cst_295 = arith.constant 1.000000e+00 : f32
    %997 = vector.broadcast %cst_295 : f32 to vector<8x32xf32>
    %998 = arith.addf %997, %996 : vector<8x32xf32>
    %999 = arith.divf %997, %998 : vector<8x32xf32>
    %1000 = vector.extract_strided_slice %990 {offsets = [0, 32], sizes = [8, 32], strides = [1, 1]} : vector<8x96xf32> to vector<8x32xf32>
    %1001 = vector.extract_strided_slice %991 {offsets = [0, 32], sizes = [8, 32], strides = [1, 1]} : vector<8x96xf32> to vector<8x32xf32>
    %1002 = arith.addf %1000, %1001 : vector<8x32xf32>
    %1003 = arith.negf %1002 : vector<8x32xf32>
    %1004 = math.exp %1003 : vector<8x32xf32>
    %cst_296 = arith.constant 1.000000e+00 : f32
    %1005 = vector.broadcast %cst_296 : f32 to vector<8x32xf32>
    %1006 = arith.addf %1005, %1004 : vector<8x32xf32>
    %1007 = arith.divf %1005, %1006 : vector<8x32xf32>
    %1008 = vector.extract_strided_slice %990 {offsets = [0, 64], sizes = [8, 32], strides = [1, 1]} : vector<8x96xf32> to vector<8x32xf32>
    %1009 = vector.extract_strided_slice %991 {offsets = [0, 64], sizes = [8, 32], strides = [1, 1]} : vector<8x96xf32> to vector<8x32xf32>
    %1010 = arith.addf %1009, %550 : vector<8x32xf32>
    %1011 = arith.mulf %999, %1010 : vector<8x32xf32>
    %1012 = arith.addf %1008, %1011 : vector<8x32xf32>
    %1013 = math.tanh %1012 : vector<8x32xf32>
    %cst_297 = arith.constant 1.000000e+00 : f32
    %1014 = vector.broadcast %cst_297 : f32 to vector<8x32xf32>
    %1015 = arith.subf %1014, %1007 : vector<8x32xf32>
    %1016 = arith.mulf %1015, %1013 : vector<8x32xf32>
    %1017 = arith.mulf %1007, %960 : vector<8x32xf32>
    %1018 = arith.addf %1016, %1017 : vector<8x32xf32>
    %1019 = tpu.concatenate %481, %510, %989, %1018 in 1 : vector<8x32xf32>, vector<8x32xf32>, vector<8x32xf32>, vector<8x32xf32> -> vector<8x128xf32>
    %c0_298 = arith.constant 0 : index
    %c0_299 = arith.constant 0 : index
    %1020 = vector.load %arg8[%c0_298, %c0_299] : memref<128x32xf32, #tpu.memory_space<vmem>>, vector<128x32xf32>
    %cst_300 = arith.constant dense<0.000000e+00> : vector<8x32xf32>
    %1021 = tpu.matmul %1019, %1020, %cst_300 {dimension_numbers = #tpu.dot_dimension_numbers<[1], [0], [0], [1], [0, 0, 1, 1], [], []>} : vector<8x128xf32>, vector<128x32xf32>, vector<8x32xf32> -> vector<8x32xf32>
    %c0_301 = arith.constant 0 : index
    %c0_302 = arith.constant 0 : index
    %1022 = vector.load %arg9[%c0_301, %c0_302] : memref<1x32xf32, #tpu.memory_space<vmem>>, vector<1x32xf32>
    %1023 = vector.broadcast %1022 : vector<1x32xf32> to vector<8x32xf32>
    %1024 = arith.addf %1021, %1023 : vector<8x32xf32>
    %1025 = math.tanh %1024 : vector<8x32xf32>
    %c0_303 = arith.constant 0 : index
    %c0_304 = arith.constant 0 : index
    %1026 = vector.load %arg10[%c0_303, %c0_304] : memref<1x32xf32, #tpu.memory_space<vmem>>, vector<1x32xf32>
    %1027 = vector.broadcast %1026 : vector<1x32xf32> to vector<8x32xf32>
    %1028 = arith.mulf %1025, %1027 : vector<8x32xf32>
    %cst_305 = arith.constant dense<0.000000e+00> : vector<8xf32>
    %1029 = vector.multi_reduction <add>, %1028, %cst_305 [1] : vector<8x32xf32> to vector<8xf32>
    %1030 = vector.shape_cast %1029 : vector<8xf32> to vector<8x1xf32>
    %c0_306 = arith.constant 0 : index
    %c0_307 = arith.constant 0 : index
    %1031 = vector.load %arg11[%c0_306, %c0_307] : memref<1x1xf32, #tpu.memory_space<vmem>>, vector<1x1xf32>
    %1032 = vector.broadcast %1031 : vector<1x1xf32> to vector<8x1xf32>
    %1033 = arith.addf %1030, %1032 : vector<8x1xf32>
    %1034 = arith.negf %1033 : vector<8x1xf32>
    %1035 = math.exp %1034 : vector<8x1xf32>
    %cst_308 = arith.constant 1.000000e+00 : f32
    %1036 = vector.broadcast %cst_308 : f32 to vector<8x1xf32>
    %1037 = arith.addf %1036, %1035 : vector<8x1xf32>
    %1038 = arith.divf %1036, %1037 : vector<8x1xf32>
    %1039 = vector.shape_cast %1038 : vector<8x1xf32> to vector<8x1xf32>
    %1040 = vector.broadcast %1039 : vector<8x1xf32> to vector<8x128xf32>
    %c0_309 = arith.constant 0 : index
    %c0_310 = arith.constant 0 : index
    %1041 = vector.load %arg12[%c0_309, %c0_310] : memref<8x128xf32, #tpu.memory_space<vmem>>, vector<8x128xf32>
    tpu.vector_store %arg12[%c0_309, %c0_310], %1040 {strides = array<i32>} : memref<8x128xf32, #tpu.memory_space<vmem>>, vector<8x128xf32>,
    return
  }
}

</mosaic_0001>

<llo_original>
// kernel: tpu_custom_call.1
$region0: #{tpu_custom_call.1}
  #allocation0 [shape = 'u32[]', space=smem, size = 0x4, offset = 0x4, fixed_abs, tag = 'smem constant byte address 0x4 - core index']
  #allocation1 [shape = 'u32[144,128]{1,0:T(1,128)}', space=vmem, size = 0x12000, scoped, tag = 'internal scratch']
  #allocation2 [shape = 'f32[64,96]{1,0:T(8,128)}', space=vmem, size = 0x8000, scoped, tag = 'scratch operand']
  #allocation3 [shape = 'f32[64,96]{1,0:T(8,128)}', space=vmem, size = 0x8000, scoped, tag = 'scratch operand']
  #allocation4 [shape = 'f32[64,32]{1,0:T(8,128)}', space=vmem, size = 0x8000, scoped, tag = 'scratch operand']
  #allocation5 [shape = 'f32[64,32]{1,0:T(8,128)}', space=vmem, size = 0x8000, scoped, tag = 'scratch operand']
  #allocation6 [shape = 'f32[1,1]{1,0:T(1,128)S(1)}', space=vmem, size = 0x200, scoped, tag = 'scoped memory for tpu_custom_call.1']
  %s0 = inlined_call_operand.hbm [shape: f32[64,64], index: 0, kind: input, shape index: {}]
  %s1 = inlined_call_operand.vmem [shape: f32[4,8,32], index: 1, kind: input, shape index: {}]
  %s2 = inlined_call_operand.vmem [shape: f32[2,64,96], index: 2, kind: input, shape index: {}]
  %s3 = inlined_call_operand.hbm [shape: f32[2,32,96], index: 3, kind: input, shape index: {}]
  %s4 = inlined_call_operand.hbm [shape: f32[2,32,96], index: 4, kind: input, shape index: {}]
  %s5 = inlined_call_operand.hbm [shape: f32[4,32,96], index: 5, kind: input, shape index: {}]
  %s6 = inlined_call_operand.hbm [shape: f32[4,1,96], index: 6, kind: input, shape index: {}]
  %s7 = inlined_call_operand.hbm [shape: f32[4,1,32], index: 7, kind: input, shape index: {}]
  %s8 = inlined_call_operand.vmem [shape: f32[128,32], index: 8, kind: input, shape index: {}]
  %s9 = inlined_call_operand.vmem [shape: f32[1,32], index: 9, kind: input, shape index: {}]
  %s10 = inlined_call_operand.vmem [shape: f32[1,32], index: 10, kind: input, shape index: {}]
  %s11 = inlined_call_operand.<no memory space> [shape: f32[1,1], index: 11, kind: input, shape index: {}]
  %s12 = inlined_call_operand.hbm [shape: f32[8,128], index: 12, kind: output, shape index: {}]
  %s13 = sld [smem:[#allocation0]]
  $region82: #{tpu_custom_call.1} parent=0
    _
  %s15 = ssub.s32 1, %s13
  %s16 = scalar_select 0, %s15, %s13
  %v17 = vstv %s11
  %18 = vst [vmem:[#allocation6] sm:$0x1] %v17
  $region1: #{tpu_custom_call.1} parent=0
    #allocation7 [shape = 'u8[32768]{0}', space=vmem, size = 0x8000, scoped, tag = 'input window, operand 0, single buffered']
    #allocation8 [shape = 's32[1]{0}', space=sflag, size = 0x4, scoped, tag = 'scoped memory for tpu_custom_call.1']
    #allocation9 [shape = 's32[1]{0}', space=sflag, size = 0x4, scoped, tag = 'scoped memory for tpu_custom_call.1']
    #allocation10 [shape = 'u8[32768]{0}', space=vmem, size = 0x8000, scoped, tag = 'input window, operand 3, single buffered']
    #allocation11 [shape = 's32[1]{0}', space=sflag, size = 0x4, scoped, tag = 'scoped memory for tpu_custom_call.1']
    #allocation12 [shape = 'u8[32768]{0}', space=vmem, size = 0x8000, scoped, tag = 'input window, operand 4, single buffered']
    #allocation13 [shape = 'u8[65536]{0}', space=vmem, size = 0x10000, scoped, tag = 'input window, operand 5, single buffered']
    #allocation14 [shape = 's32[1]{0}', space=sflag, size = 0x4, scoped, tag = 'scoped memory for tpu_custom_call.1']
    #allocation15 [shape = 'u8[2048]{0}', space=vmem, size = 0x800, scoped, tag = 'input window, operand 6, single buffered']
    #allocation16 [shape = 'u8[2048]{0}', space=vmem, size = 0x800, scoped, tag = 'input window, operand 7, single buffered']
    #allocation17 [shape = 's32[1]{0}', space=sflag, size = 0x4, scoped, tag = 'scoped memory for tpu_custom_call.1']
    #allocation18 [shape = 'u8[4096]{0}', space=vmem, size = 0x1000, scoped, tag = 'output window, operand 0, single buffered']
    %19 = vsyncpa [#allocation8], 0
    %20 = vsyncpa [#allocation11], 0
    %21 = vsyncpa [#allocation14], 0
    %22 = vsyncpa [#allocation17], 0
    %23 = vsyncpa [#allocation9], 0
    // Predicated region
    $region2: #{tpu_custom_call.1} parent=1 // pred_check
      _
    $region3: #{tpu_custom_call.1} parent=1 // pred_check_branch
      %25 = sbr.rel (0) target = $region5
    $region4: #{tpu_custom_call.1} parent=1 // pred_region
      %s27 = ssub.s32 1024, 1024
      %28 = vsyncadd [#allocation8], %s27
      %s29 = sshll.u32 [#allocation7], 4
      %s30 = int_to_ptr.vmem [resolvable:$true] %s29
      %35 = dma.hbm_to_vmem [thread:$0]  %s0, 1024, %s30, [#allocation8], 128, 128, 8
    $region5: #{tpu_custom_call.1} parent=1 // pred_fallthru
      _
    // Predicated region
    $region6: #{tpu_custom_call.1} parent=1 // pred_check
      _
    $region7: #{tpu_custom_call.1} parent=1 // pred_check_branch
      %37 = sbr.rel (0) target = $region9
    $region8: #{tpu_custom_call.1} parent=1 // pred_region
      _
    $region9: #{tpu_custom_call.1} parent=1 // pred_fallthru
      _
    // Predicated region
    $region10: #{tpu_custom_call.1} parent=1 // pred_check
      _
    $region11: #{tpu_custom_call.1} parent=1 // pred_check_branch
      %39 = sbr.rel (0) target = $region13
    $region12: #{tpu_custom_call.1} parent=1 // pred_region
      _
    $region13: #{tpu_custom_call.1} parent=1 // pred_fallthru
      _
    // Predicated region
    $region14: #{tpu_custom_call.1} parent=1 // pred_check
      _
    $region15: #{tpu_custom_call.1} parent=1 // pred_check_branch
      %41 = sbr.rel (0) target = $region17
    $region16: #{tpu_custom_call.1} parent=1 // pred_region
      %s43 = ssub.s32 1024, 1024
      %44 = vsyncadd [#allocation11], %s43
      %s45 = sshll.u32 [#allocation10], 4
      %s46 = int_to_ptr.vmem [resolvable:$true] %s45
      %51 = dma.hbm_to_vmem [thread:$0]  %s3, 1024, %s46, [#allocation11], 128, 128, 8
    $region17: #{tpu_custom_call.1} parent=1 // pred_fallthru
      _
    // Predicated region
    $region18: #{tpu_custom_call.1} parent=1 // pred_check
      _
    $region19: #{tpu_custom_call.1} parent=1 // pred_check_branch
      %53 = sbr.rel (0) target = $region21
    $region20: #{tpu_custom_call.1} parent=1 // pred_region
      %s55 = ssub.s32 1024, 1024
      %56 = vsyncadd [#allocation11], %s55
      %s57 = sshll.u32 [#allocation12], 4
      %s58 = int_to_ptr.vmem [resolvable:$true] %s57
      %63 = dma.hbm_to_vmem [thread:$0]  %s4, 1024, %s58, [#allocation11], 128, 128, 8
    $region21: #{tpu_custom_call.1} parent=1 // pred_fallthru
      _
    // Predicated region
    $region22: #{tpu_custom_call.1} parent=1 // pred_check
      _
    $region23: #{tpu_custom_call.1} parent=1 // pred_check_branch
      %65 = sbr.rel (0) target = $region25
    $region24: #{tpu_custom_call.1} parent=1 // pred_region
      %s67 = ssub.s32 2048, 2048
      %68 = vsyncadd [#allocation14], %s67
      %s69 = sshll.u32 [#allocation13], 4
      %s70 = int_to_ptr.vmem [resolvable:$true] %s69
      %75 = dma.hbm_to_vmem [thread:$0]  %s5, 2048, %s70, [#allocation14], 128, 128, 8
    $region25: #{tpu_custom_call.1} parent=1 // pred_fallthru
      _
    // Predicated region
    $region26: #{tpu_custom_call.1} parent=1 // pred_check
      _
    $region27: #{tpu_custom_call.1} parent=1 // pred_check_branch
      %77 = sbr.rel (0) target = $region29
    $region28: #{tpu_custom_call.1} parent=1 // pred_region
      %s79 = ssub.s32 64, 64
      %80 = vsyncadd [#allocation14], %s79
      %s81 = sshll.u32 [#allocation15], 4
      %s82 = int_to_ptr.vmem [resolvable:$true] %s81
      %87 = dma.hbm_to_vmem [thread:$0]  %s6, 64, %s82, [#allocation14], 16, 16, 1
    $region29: #{tpu_custom_call.1} parent=1 // pred_fallthru
      _
    // Predicated region
    $region30: #{tpu_custom_call.1} parent=1 // pred_check
      _
    $region31: #{tpu_custom_call.1} parent=1 // pred_check_branch
      %89 = sbr.rel (0) target = $region33
    $region32: #{tpu_custom_call.1} parent=1 // pred_region
      %s91 = ssub.s32 64, 64
      %92 = vsyncadd [#allocation17], %s91
      %s93 = sshll.u32 [#allocation16], 4
      %s94 = int_to_ptr.vmem [resolvable:$true] %s93
      %99 = dma.hbm_to_vmem [thread:$0]  %s7, 64, %s94, [#allocation17], 16, 16, 1
    $region33: #{tpu_custom_call.1} parent=1 // pred_fallthru
      _
    // Predicated region
    $region34: #{tpu_custom_call.1} parent=1 // pred_check
      _
    $region35: #{tpu_custom_call.1} parent=1 // pred_check_branch
      %101 = sbr.rel (0) target = $region37
    $region36: #{tpu_custom_call.1} parent=1 // pred_region
      _
    $region37: #{tpu_custom_call.1} parent=1 // pred_fallthru
      _
    // Predicated region
    $region38: #{tpu_custom_call.1} parent=1 // pred_check
      _
    $region39: #{tpu_custom_call.1} parent=1 // pred_check_branch
      %103 = sbr.rel (0) target = $region41
    $region40: #{tpu_custom_call.1} parent=1 // pred_region
      _
    $region41: #{tpu_custom_call.1} parent=1 // pred_fallthru
      _
    // Predicated region
    $region42: #{tpu_custom_call.1} parent=1 // pred_check
      _
    $region43: #{tpu_custom_call.1} parent=1 // pred_check_branch
      %105 = sbr.rel (0) target = $region45
    $region44: #{tpu_custom_call.1} parent=1 // pred_region
      _
    $region45: #{tpu_custom_call.1} parent=1 // pred_fallthru
      _
    // Predicated region
    $region46: #{tpu_custom_call.1} parent=1 // pred_check
      _
    $region47: #{tpu_custom_call.1} parent=1 // pred_check_branch
      %107 = sbr.rel (0) target = $region49
    $region48: #{tpu_custom_call.1} parent=1 // pred_region
      _
    $region49: #{tpu_custom_call.1} parent=1 // pred_fallthru
      _
    // Predicated region
    $region50: #{tpu_custom_call.1} parent=1 // pred_check
      _
    $region51: #{tpu_custom_call.1} parent=1 // pred_check_branch
      %109 = sbr.rel (0) target = $region53
    $region52: #{tpu_custom_call.1} parent=1 // pred_region
      %110 = dma.done [#allocation8], 1024
    $region53: #{tpu_custom_call.1} parent=1 // pred_fallthru
      _
    // Predicated region
    $region54: #{tpu_custom_call.1} parent=1 // pred_check
      _
    $region55: #{tpu_custom_call.1} parent=1 // pred_check_branch
      %112 = sbr.rel (0) target = $region57
    $region56: #{tpu_custom_call.1} parent=1 // pred_region
      %113 = dma.done [#allocation11], 1024
    $region57: #{tpu_custom_call.1} parent=1 // pred_fallthru
      _
    // Predicated region
    $region58: #{tpu_custom_call.1} parent=1 // pred_check
      _
    $region59: #{tpu_custom_call.1} parent=1 // pred_check_branch
      %115 = sbr.rel (0) target = $region61
    $region60: #{tpu_custom_call.1} parent=1 // pred_region
      %116 = dma.done [#allocation11], 1024
    $region61: #{tpu_custom_call.1} parent=1 // pred_fallthru
      _
    // Predicated region
    $region62: #{tpu_custom_call.1} parent=1 // pred_check
      _
    $region63: #{tpu_custom_call.1} parent=1 // pred_check_branch
      %118 = sbr.rel (0) target = $region65
    $region64: #{tpu_custom_call.1} parent=1 // pred_region
      %119 = dma.done [#allocation14], 2048
    $region65: #{tpu_custom_call.1} parent=1 // pred_fallthru
      _
    // Predicated region
    $region66: #{tpu_custom_call.1} parent=1 // pred_check
      _
    $region67: #{tpu_custom_call.1} parent=1 // pred_check_branch
      %121 = sbr.rel (0) target = $region69
    $region68: #{tpu_custom_call.1} parent=1 // pred_region
      %122 = dma.done [#allocation14], 64
    $region69: #{tpu_custom_call.1} parent=1 // pred_fallthru
      _
    // Predicated region
    $region70: #{tpu_custom_call.1} parent=1 // pred_check
      _
    $region71: #{tpu_custom_call.1} parent=1 // pred_check_branch
      %124 = sbr.rel (0) target = $region73
    $region72: #{tpu_custom_call.1} parent=1 // pred_region
      %125 = dma.done [#allocation17], 64
    $region73: #{tpu_custom_call.1} parent=1 // pred_fallthru
      _
    %v126 = vld [vmem:[#allocation7] sm:$0xff]
    %v127 = vld [vmem:[#allocation7 + $0x8] sm:$0xff]
    %v128 = vld [vmem:[#allocation7 + $0x10] sm:$0xff]
    %v129 = vld [vmem:[#allocation7 + $0x18] sm:$0xff]
    %v130 = vld [vmem:[#allocation7 + $0x20] sm:$0xff]
    %v131 = vld [vmem:[#allocation7 + $0x28] sm:$0xff]
    %v132 = vld [vmem:[#allocation7 + $0x30] sm:$0xff]
    %v133 = vld [vmem:[#allocation7 + $0x38] sm:$0xff]
    %v134 = vld [vmem:[%s2] sm:$0xff]
    %v135 = vld [vmem:[%s2 + $0x8] sm:$0xff]
    %v136 = vld [vmem:[%s2 + $0x10] sm:$0xff]
    %v137 = vld [vmem:[%s2 + $0x18] sm:$0xff]
    %v138 = vld [vmem:[%s2 + $0x20] sm:$0xff]
    %v139 = vld [vmem:[%s2 + $0x28] sm:$0xff]
    %v140 = vld [vmem:[%s2 + $0x30] sm:$0xff]
    %v141 = vld [vmem:[%s2 + $0x38] sm:$0xff]
    %v142 = vld [vmem:[#allocation15] sm:$0x1]
    %v144 = vlaneseq
    %v145 = vshrl.u32 %v144, 7
    %v146 = vsub.s32 0, %v145
    %v147 = vrot.slane %v142, %v146
    %vm149 = vcmask 523264
    %v151 = vsel %vm149, %v126, 0
    %v154 = vsel %vm149, %v127, 0
    %v157 = vsel %vm149, %v128, 0
    %v160 = vsel %vm149, %v129, 0
    %v163 = vsel %vm149, %v130, 0
    %v166 = vsel %vm149, %v131, 0
    %v169 = vsel %vm149, %v132, 0
    %v172 = vsel %vm149, %v133, 0
    %174 = vmatprep.subr.mxu0 0.0
    %175 = vmatpush1.msra.mxu0 %v134
    %176 = vmatprep.subr.mxu0 0.0
    %177 = vmatpush1.msra.mxu0 %v135
    %178 = vmatprep.subr.mxu0 0.0
    %179 = vmatpush1.msra.mxu0 %v136
    %180 = vmatprep.subr.mxu0 0.0
    %181 = vmatpush1.msra.mxu0 %v137
    %182 = vmatprep.subr.mxu0 0.0
    %183 = vmatpush1.msra.mxu0 %v138
    %184 = vmatprep.subr.mxu0 0.0
    %185 = vmatpush1.msra.mxu0 %v139
    %186 = vmatprep.subr.mxu0 0.0
    %187 = vmatpush1.msra.mxu0 %v140
    %188 = vmatprep.subr.mxu0 0.0
    %189 = vmatpush1.msra.mxu0 %v141
    %190 = vmatprep.subr.mxu0 0.0
    %191 = vmatpush1.msra.mxu0 0.0
    %192 = vmatprep.subr.mxu0 0.0
    %193 = vmatpush1.msra.mxu0 0.0
    %194 = vmatprep.subr.mxu0 0.0
    %195 = vmatpush1.msra.mxu0 0.0
    %196 = vmatprep.subr.mxu0 0.0
    %197 = vmatpush1.msra.mxu0 0.0
    %198 = vmatprep.subr.mxu0 0.0
    %199 = vmatpush1.msra.mxu0 0.0
    %200 = vmatprep.subr.mxu0 0.0
    %201 = vmatpush1.msra.mxu0 0.0
    %202 = vmatprep.subr.mxu0 0.0
    %203 = vmatpush1.msra.mxu0 0.0
    %204 = vmatprep.subr.mxu0 0.0
    %205 = vmatpush1.msra.mxu0 0.0
    %206 = vmatprep.subr.mxu0 0.0
    %207 = vmatpush1.msra.mxu0 0.0
    %208 = vmatprep.subr.mxu0 0.0
    %209 = vmatpush1.msra.mxu0 0.0
    %210 = vmatprep.subr.mxu0 0.0
    %211 = vmatpush1.msra.mxu0 0.0
    %212 = vmatprep.subr.mxu0 0.0
    %213 = vmatpush1.msra.mxu0 0.0
    %214 = vmatprep.subr.mxu0 0.0
    %215 = vmatpush1.msra.mxu0 0.0
    %216 = vmatprep.subr.mxu0 0.0
    %217 = vmatpush1.msra.mxu0 0.0
    %218 = vmatprep.subr.mxu0 0.0
    %219 = vmatpush1.msra.mxu0 0.0
    %220 = vmatprep.subr.mxu0 0.0
    %221 = vmatpush1.msra.mxu0 0.0
    %222 = vmatprep.subr.mxu0 0.0
    %223 = vmatpush1.msra.mxu0 0.0
    %224 = vmatprep.subr.mxu0 0.0
    %225 = vmatpush1.msra.mxu0 0.0
    %226 = vmatprep.subr.mxu0 0.0
    %227 = vmatpush1.msra.mxu0 0.0
    %228 = vmatprep.subr.mxu0 0.0
    %229 = vmatpush1.msra.mxu0 0.0
    %230 = vmatprep.subr.mxu0 0.0
    %231 = vmatpush1.msra.mxu0 0.0
    %232 = vmatprep.subr.mxu0 0.0
    %233 = vmatpush1.msra.mxu0 0.0
    %234 = vmatprep.subr.mxu0 0.0
    %235 = vmatpush1.msra.mxu0 0.0
    %236 = vmatprep.subr.mxu0 0.0
    %237 = vmatpush1.msra.mxu0 0.0
    %238 = vmatprep.mubr.f32.mxu0 0.0
    %239 = vmatmul.mubr.f32.gmra.mrb[0].mxu0 %v151
    %v240 = vpop.f32.mrb[0].mxu0
    %v241 = vadd.f32 %v147, %v240
    %v242 = vpop.f32.mrb[0].mxu0
    %243 = vmatprep.mubr.f32.mxu0 0.0
    %244 = vmatmul.mubr.f32.gmra.mrb[0].mxu0 %v154
    %v245 = vpop.f32.mrb[0].mxu0
    %v246 = vadd.f32 %v147, %v245
    %v247 = vpop.f32.mrb[0].mxu0
    %248 = vmatprep.mubr.f32.mxu0 0.0
    %249 = vmatmul.mubr.f32.gmra.mrb[0].mxu0 %v157
    %v250 = vpop.f32.mrb[0].mxu0
    %v251 = vadd.f32 %v147, %v250
    %v252 = vpop.f32.mrb[0].mxu0
    %253 = vmatprep.mubr.f32.mxu0 0.0
    %254 = vmatmul.mubr.f32.gmra.mrb[0].mxu0 %v160
    %v255 = vpop.f32.mrb[0].mxu0
    %v256 = vadd.f32 %v147, %v255
    %v257 = vpop.f32.mrb[0].mxu0
    %258 = vmatprep.mubr.f32.mxu0 0.0
    %259 = vmatmul.mubr.f32.gmra.mrb[0].mxu0 %v163
    %v260 = vpop.f32.mrb[0].mxu0
    %v261 = vadd.f32 %v147, %v260
    %v262 = vpop.f32.mrb[0].mxu0
    %263 = vmatprep.mubr.f32.mxu0 0.0
    %264 = vmatmul.mubr.f32.gmra.mrb[0].mxu0 %v166
    %v265 = vpop.f32.mrb[0].mxu0
    %v266 = vadd.f32 %v147, %v265
    %v267 = vpop.f32.mrb[0].mxu0
    %268 = vmatprep.mubr.f32.mxu0 0.0
    %269 = vmatmul.mubr.f32.gmra.mrb[0].mxu0 %v169
    %v270 = vpop.f32.mrb[0].mxu0
    %v271 = vadd.f32 %v147, %v270
    %v272 = vpop.f32.mrb[0].mxu0
    %273 = vmatprep.mubr.f32.mxu0 0.0
    %274 = vmatmul.mubr.f32.gmra.mrb[0].mxu0 %v172
    %v275 = vpop.f32.mrb[0].mxu0
    %v276 = vadd.f32 %v147, %v275
    %v277 = vpop.f32.mrb[0].mxu0
    %278 = vdwg.mxu0
    %vm279 = vcmask 785408
    %280 = vst.msk [vmem:[#allocation2] sm:$0xff] %vm279, %v241
    %281 = vst.msk [vmem:[#allocation2 + $0x8] sm:$0xff] %vm279, %v246
    %282 = vst.msk [vmem:[#allocation2 + $0x10] sm:$0xff] %vm279, %v251
    %283 = vst.msk [vmem:[#allocation2 + $0x18] sm:$0xff] %vm279, %v256
    %284 = vst.msk [vmem:[#allocation2 + $0x20] sm:$0xff] %vm279, %v261
    %285 = vst.msk [vmem:[#allocation2 + $0x28] sm:$0xff] %vm279, %v266
    %286 = vst.msk [vmem:[#allocation2 + $0x30] sm:$0xff] %vm279, %v271
    %287 = vst.msk [vmem:[#allocation2 + $0x38] sm:$0xff] %vm279, %v276
    %s288 = scalar_lea.vmem %s2, 64
    %v289 = vld [vmem:[%s288] sm:$0xff]
    %v290 = vld [vmem:[%s288 + $0x8] sm:$0xff]
    %v291 = vld [vmem:[%s288 + $0x10] sm:$0xff]
    %v292 = vld [vmem:[%s288 + $0x18] sm:$0xff]
    %v293 = vld [vmem:[%s288 + $0x20] sm:$0xff]
    %v294 = vld [vmem:[%s288 + $0x28] sm:$0xff]
    %v295 = vld [vmem:[%s288 + $0x30] sm:$0xff]
    %v296 = vld [vmem:[%s288 + $0x38] sm:$0xff]
    %s297 = scalar_lea.vmem [#allocation15], 1
    %v298 = vld [vmem:[%s297] sm:$0x1]
    %v300 = vlaneseq
    %v301 = vshrl.u32 %v300, 7
    %v302 = vsub.s32 0, %v301
    %v303 = vrot.slane %v298, %v302
    %305 = vmatprep.subr.mxu0 0.0
    %306 = vmatpush1.msra.mxu0 %v289
    %307 = vmatprep.subr.mxu0 0.0
    %308 = vmatpush1.msra.mxu0 %v290
    %309 = vmatprep.subr.mxu0 0.0
    %310 = vmatpush1.msra.mxu0 %v291
    %311 = vmatprep.subr.mxu0 0.0
    %312 = vmatpush1.msra.mxu0 %v292
    %313 = vmatprep.subr.mxu0 0.0
    %314 = vmatpush1.msra.mxu0 %v293
    %315 = vmatprep.subr.mxu0 0.0
    %316 = vmatpush1.msra.mxu0 %v294
    %317 = vmatprep.subr.mxu0 0.0
    %318 = vmatpush1.msra.mxu0 %v295
    %319 = vmatprep.subr.mxu0 0.0
    %320 = vmatpush1.msra.mxu0 %v296
    %321 = vmatprep.subr.mxu0 0.0
    %322 = vmatpush1.msra.mxu0 0.0
    %323 = vmatprep.subr.mxu0 0.0
    %324 = vmatpush1.msra.mxu0 0.0
    %325 = vmatprep.subr.mxu0 0.0
    %326 = vmatpush1.msra.mxu0 0.0
    %327 = vmatprep.subr.mxu0 0.0
    %328 = vmatpush1.msra.mxu0 0.0
    %329 = vmatprep.subr.mxu0 0.0
    %330 = vmatpush1.msra.mxu0 0.0
    %331 = vmatprep.subr.mxu0 0.0
    %332 = vmatpush1.msra.mxu0 0.0
    %333 = vmatprep.subr.mxu0 0.0
    %334 = vmatpush1.msra.mxu0 0.0
    %335 = vmatprep.subr.mxu0 0.0
    %336 = vmatpush1.msra.mxu0 0.0
    %337 = vmatprep.subr.mxu0 0.0
    %338 = vmatpush1.msra.mxu0 0.0
    %339 = vmatprep.subr.mxu0 0.0
    %340 = vmatpush1.msra.mxu0 0.0
    %341 = vmatprep.subr.mxu0 0.0
    %342 = vmatpush1.msra.mxu0 0.0
    %343 = vmatprep.subr.mxu0 0.0
    %344 = vmatpush1.msra.mxu0 0.0
    %345 = vmatprep.subr.mxu0 0.0
    %346 = vmatpush1.msra.mxu0 0.0
    %347 = vmatprep.subr.mxu0 0.0
    %348 = vmatpush1.msra.mxu0 0.0
    %349 = vmatprep.subr.mxu0 0.0
    %350 = vmatpush1.msra.mxu0 0.0
    %351 = vmatprep.subr.mxu0 0.0
    %352 = vmatpush1.msra.mxu0 0.0
    %353 = vmatprep.subr.mxu0 0.0
    %354 = vmatpush1.msra.mxu0 0.0
    %355 = vmatprep.subr.mxu0 0.0
    %356 = vmatpush1.msra.mxu0 0.0
    %357 = vmatprep.subr.mxu0 0.0
    %358 = vmatpush1.msra.mxu0 0.0
    %359 = vmatprep.subr.mxu0 0.0
    %360 = vmatpush1.msra.mxu0 0.0
    %361 = vmatprep.subr.mxu0 0.0
    %362 = vmatpush1.msra.mxu0 0.0
    %363 = vmatprep.subr.mxu0 0.0
    %364 = vmatpush1.msra.mxu0 0.0
    %365 = vmatprep.subr.mxu0 0.0
    %366 = vmatpush1.msra.mxu0 0.0
    %367 = vmatprep.subr.mxu0 0.0
    %368 = vmatpush1.msra.mxu0 0.0
    %369 = vmatprep.mubr.f32.mxu0 0.0
    %370 = vmatmul.mubr.f32.gmra.mrb[0].mxu0 %v151
    %v371 = vpop.f32.mrb[0].mxu0
    %v372 = vadd.f32 %v303, %v371
    %v373 = vpop.f32.mrb[0].mxu0
    %374 = vmatprep.mubr.f32.mxu0 0.0
    %375 = vmatmul.mubr.f32.gmra.mrb[0].mxu0 %v154
    %v376 = vpop.f32.mrb[0].mxu0
    %v377 = vadd.f32 %v303, %v376
    %v378 = vpop.f32.mrb[0].mxu0
    %379 = vmatprep.mubr.f32.mxu0 0.0
    %380 = vmatmul.mubr.f32.gmra.mrb[0].mxu0 %v157
    %v381 = vpop.f32.mrb[0].mxu0
    %v382 = vadd.f32 %v303, %v381
    %v383 = vpop.f32.mrb[0].mxu0
    %384 = vmatprep.mubr.f32.mxu0 0.0
    %385 = vmatmul.mubr.f32.gmra.mrb[0].mxu0 %v160
    %v386 = vpop.f32.mrb[0].mxu0
    %v387 = vadd.f32 %v303, %v386
    %v388 = vpop.f32.mrb[0].mxu0
    %389 = vmatprep.mubr.f32.mxu0 0.0
    %390 = vmatmul.mubr.f32.gmra.mrb[0].mxu0 %v163
    %v391 = vpop.f32.mrb[0].mxu0
    %v392 = vadd.f32 %v303, %v391
    %v393 = vpop.f32.mrb[0].mxu0
    %394 = vmatprep.mubr.f32.mxu0 0.0
    %395 = vmatmul.mubr.f32.gmra.mrb[0].mxu0 %v166
    %v396 = vpop.f32.mrb[0].mxu0
    %v397 = vadd.f32 %v303, %v396
    %v398 = vpop.f32.mrb[0].mxu0
    %399 = vmatprep.mubr.f32.mxu0 0.0
    %400 = vmatmul.mubr.f32.gmra.mrb[0].mxu0 %v169
    %v401 = vpop.f32.mrb[0].mxu0
    %v402 = vadd.f32 %v303, %v401
    %v403 = vpop.f32.mrb[0].mxu0
    %404 = vmatprep.mubr.f32.mxu0 0.0
    %405 = vmatmul.mubr.f32.gmra.mrb[0].mxu0 %v172
    %v406 = vpop.f32.mrb[0].mxu0
    %v407 = vadd.f32 %v303, %v406
    %v408 = vpop.f32.mrb[0].mxu0
    %409 = vdwg.mxu0
    %410 = vst.msk [vmem:[#allocation3] sm:$0xff] %vm279, %v372
    %411 = vst.msk [vmem:[#allocation3 + $0x8] sm:$0xff] %vm279, %v377
    %412 = vst.msk [vmem:[#allocation3 + $0x10] sm:$0xff] %vm279, %v382
    %413 = vst.msk [vmem:[#allocation3 + $0x18] sm:$0xff] %vm279, %v387
    %414 = vst.msk [vmem:[#allocation3 + $0x20] sm:$0xff] %vm279, %v392
    %415 = vst.msk [vmem:[#allocation3 + $0x28] sm:$0xff] %vm279, %v397
    %416 = vst.msk [vmem:[#allocation3 + $0x30] sm:$0xff] %vm279, %v402
    %417 = vst.msk [vmem:[#allocation3 + $0x38] sm:$0xff] %vm279, %v407
    %v418 = vld [vmem:[#allocation13] sm:$0xff]
    %v419 = vld [vmem:[#allocation13 + $0x8] sm:$0xff]
    %v420 = vld [vmem:[#allocation13 + $0x10] sm:$0xff]
    %v421 = vld [vmem:[#allocation13 + $0x18] sm:$0xff]
    %s422 = scalar_lea.vmem [#allocation13], 32
    %v423 = vld [vmem:[%s422] sm:$0xff]
    %v424 = vld [vmem:[%s422 + $0x8] sm:$0xff]
    %v425 = vld [vmem:[%s422 + $0x10] sm:$0xff]
    %v426 = vld [vmem:[%s422 + $0x18] sm:$0xff]
    %v427 = vld [vmem:[#allocation16] sm:$0x1]
    %v429 = vlaneseq
    %v430 = vshrl.u32 %v429, 7
    %v431 = vsub.s32 0, %v430
    %v432 = vrot.slane %v427, %v431
    %s433 = scalar_lea.vmem [#allocation16], 1
    %v434 = vld [vmem:[%s433] sm:$0x1]
    %v436 = vlaneseq
    %v437 = vshrl.u32 %v436, 7
    %v438 = vsub.s32 0, %v437
    %v439 = vrot.slane %v434, %v438
    %v440 = vld [vmem:[%s1] sm:$0xff]
    %s441 = scalar_lea.vmem %s1, 8
    %v442 = vld [vmem:[%s441] sm:$0xff]
    %v443 = vld [vmem:[#allocation2] sm:$0xff]
    %vm444 = vcmask 261120
    %v446 = vsel %vm444, %v440, 0
    %448 = vmatprep.subr.mxu0 0.0
    %449 = vmatpush1.msra.mxu0 %v418
    %450 = vmatprep.subr.mxu0 0.0
    %451 = vmatpush1.msra.mxu0 %v419
    %452 = vmatprep.subr.mxu0 0.0
    %453 = vmatpush1.msra.mxu0 %v420
    %454 = vmatprep.subr.mxu0 0.0
    %455 = vmatpush1.msra.mxu0 %v421
    %456 = vmatprep.subr.mxu0 0.0
    %457 = vmatpush1.msra.mxu0 0.0
    %458 = vmatprep.subr.mxu0 0.0
    %459 = vmatpush1.msra.mxu0 0.0
    %460 = vmatprep.subr.mxu0 0.0
    %461 = vmatpush1.msra.mxu0 0.0
    %462 = vmatprep.subr.mxu0 0.0
    %463 = vmatpush1.msra.mxu0 0.0
    %464 = vmatprep.subr.mxu0 0.0
    %465 = vmatpush1.msra.mxu0 0.0
    %466 = vmatprep.subr.mxu0 0.0
    %467 = vmatpush1.msra.mxu0 0.0
    %468 = vmatprep.subr.mxu0 0.0
    %469 = vmatpush1.msra.mxu0 0.0
    %470 = vmatprep.subr.mxu0 0.0
    %471 = vmatpush1.msra.mxu0 0.0
    %472 = vmatprep.subr.mxu0 0.0
    %473 = vmatpush1.msra.mxu0 0.0
    %474 = vmatprep.subr.mxu0 0.0
    %475 = vmatpush1.msra.mxu0 0.0
    %476 = vmatprep.subr.mxu0 0.0
    %477 = vmatpush1.msra.mxu0 0.0
    %478 = vmatprep.subr.mxu0 0.0
    %479 = vmatpush1.msra.mxu0 0.0
    %480 = vmatprep.subr.mxu0 0.0
    %481 = vmatpush1.msra.mxu0 0.0
    %482 = vmatprep.subr.mxu0 0.0
    %483 = vmatpush1.msra.mxu0 0.0
    %484 = vmatprep.subr.mxu0 0.0
    %485 = vmatpush1.msra.mxu0 0.0
    %486 = vmatprep.subr.mxu0 0.0
    %487 = vmatpush1.msra.mxu0 0.0
    %488 = vmatprep.subr.mxu0 0.0
    %489 = vmatpush1.msra.mxu0 0.0
    %490 = vmatprep.subr.mxu0 0.0
    %491 = vmatpush1.msra.mxu0 0.0
    %492 = vmatprep.subr.mxu0 0.0
    %493 = vmatpush1.msra.mxu0 0.0
    %494 = vmatprep.subr.mxu0 0.0
    %495 = vmatpush1.msra.mxu0 0.0
    %496 = vmatprep.subr.mxu0 0.0
    %497 = vmatpush1.msra.mxu0 0.0
    %498 = vmatprep.subr.mxu0 0.0
    %499 = vmatpush1.msra.mxu0 0.0
    %500 = vmatprep.subr.mxu0 0.0
    %501 = vmatpush1.msra.mxu0 0.0
    %502 = vmatprep.subr.mxu0 0.0
    %503 = vmatpush1.msra.mxu0 0.0
    %504 = vmatprep.subr.mxu0 0.0
    %505 = vmatpush1.msra.mxu0 0.0
    %506 = vmatprep.subr.mxu0 0.0
    %507 = vmatpush1.msra.mxu0 0.0
    %508 = vmatprep.subr.mxu0 0.0
    %509 = vmatpush1.msra.mxu0 0.0
    %510 = vmatprep.subr.mxu0 0.0
    %511 = vmatpush1.msra.mxu0 0.0
    %512 = vmatprep.mubr.f32.mxu0 0.0
    %513 = vmatmul.mubr.f32.gmra.mrb[0].mxu0 %v446
    %v514 = vpop.f32.mrb[0].mxu0
    %v515 = vadd.f32 0.0, %v514
    %v516 = vpop.f32.mrb[0].mxu0
    %517 = vdwg.mxu0
    %v518 = vadd.f32 %v443, %v515
    %v519 = vxor.u32 %v518, 2147483648
    %v520 = vmul.f32 %v519, 1.442695
    %v521 = vpow.pop %v520
    %v522 = vadd.f32 %v521, 1.0
    %v523 = vrcp.pop %v522
    %v524 = vmul.f32 1.0, %v523
    %525 = vrot.lane.b32.xlu0 %v432, 64
    %v526 = vpop.permute.xlu0 %525
    %v528 = vadd.f32 %v515, %v526
    %530 = vrot.lane.b32.xlu0 %v528, 64
    %v531 = vpop.permute.xlu0 %530
    %v533 = vmul.f32 %v524, %v531
    %535 = vrot.lane.b32.xlu0 %v533, 64
    %v536 = vpop.permute.xlu0 %535
    %v538 = vadd.f32 %v443, %v536
    %v539 = vtanh.pop %v538
    %v540 = vsub.f32 1.0, %v524
    %542 = vrot.lane.b32.xlu0 %v539, 96
    %v543 = vpop.permute.xlu0 %542
    %v545 = vmul.f32 %v540, %v543
    %546 = vrot.lane.b32.xlu0 %v440, 32
    %v547 = vpop.permute.xlu0 %546
    %v549 = vmul.f32 %v524, %v547
    %v550 = vadd.f32 %v545, %v549
    %v551 = vld [vmem:[#allocation3 + $0x38] sm:$0xff]
    %v553 = vsel %vm444, %v442, 0
    %555 = vmatprep.subr.mxu0 0.0
    %556 = vmatpush1.msra.mxu0 %v423
    %557 = vmatprep.subr.mxu0 0.0
    %558 = vmatpush1.msra.mxu0 %v424
    %559 = vmatprep.subr.mxu0 0.0
    %560 = vmatpush1.msra.mxu0 %v425
    %561 = vmatprep.subr.mxu0 0.0
    %562 = vmatpush1.msra.mxu0 %v426
    %563 = vmatprep.subr.mxu0 0.0
    %564 = vmatpush1.msra.mxu0 0.0
    %565 = vmatprep.subr.mxu0 0.0
    %566 = vmatpush1.msra.mxu0 0.0
    %567 = vmatprep.subr.mxu0 0.0
    %568 = vmatpush1.msra.mxu0 0.0
    %569 = vmatprep.subr.mxu0 0.0
    %570 = vmatpush1.msra.mxu0 0.0
    %571 = vmatprep.subr.mxu0 0.0
    %572 = vmatpush1.msra.mxu0 0.0
    %573 = vmatprep.subr.mxu0 0.0
    %574 = vmatpush1.msra.mxu0 0.0
    %575 = vmatprep.subr.mxu0 0.0
    %576 = vmatpush1.msra.mxu0 0.0
    %577 = vmatprep.subr.mxu0 0.0
    %578 = vmatpush1.msra.mxu0 0.0
    %579 = vmatprep.subr.mxu0 0.0
    %580 = vmatpush1.msra.mxu0 0.0
    %581 = vmatprep.subr.mxu0 0.0
    %582 = vmatpush1.msra.mxu0 0.0
    %583 = vmatprep.subr.mxu0 0.0
    %584 = vmatpush1.msra.mxu0 0.0
    %585 = vmatprep.subr.mxu0 0.0
    %586 = vmatpush1.msra.mxu0 0.0
    %587 = vmatprep.subr.mxu0 0.0
    %588 = vmatpush1.msra.mxu0 0.0
    %589 = vmatprep.subr.mxu0 0.0
    %590 = vmatpush1.msra.mxu0 0.0
    %591 = vmatprep.subr.mxu0 0.0
    %592 = vmatpush1.msra.mxu0 0.0
    %593 = vmatprep.subr.mxu0 0.0
    %594 = vmatpush1.msra.mxu0 0.0
    %595 = vmatprep.subr.mxu0 0.0
    %596 = vmatpush1.msra.mxu0 0.0
    %597 = vmatprep.subr.mxu0 0.0
    %598 = vmatpush1.msra.mxu0 0.0
    %599 = vmatprep.subr.mxu0 0.0
    %600 = vmatpush1.msra.mxu0 0.0
    %601 = vmatprep.subr.mxu0 0.0
    %602 = vmatpush1.msra.mxu0 0.0
    %603 = vmatprep.subr.mxu0 0.0
    %604 = vmatpush1.msra.mxu0 0.0
    %605 = vmatprep.subr.mxu0 0.0
    %606 = vmatpush1.msra.mxu0 0.0
    %607 = vmatprep.subr.mxu0 0.0
    %608 = vmatpush1.msra.mxu0 0.0
    %609 = vmatprep.subr.mxu0 0.0
    %610 = vmatpush1.msra.mxu0 0.0
    %611 = vmatprep.subr.mxu0 0.0
    %612 = vmatpush1.msra.mxu0 0.0
    %613 = vmatprep.subr.mxu0 0.0
    %614 = vmatpush1.msra.mxu0 0.0
    %615 = vmatprep.subr.mxu0 0.0
    %616 = vmatpush1.msra.mxu0 0.0
    %617 = vmatprep.subr.mxu0 0.0
    %618 = vmatpush1.msra.mxu0 0.0
    %619 = vmatprep.mubr.f32.mxu0 0.0
    %620 = vmatmul.mubr.f32.gmra.mrb[0].mxu0 %v553
    %v621 = vpop.f32.mrb[0].mxu0
    %v622 = vadd.f32 0.0, %v621
    %v623 = vpop.f32.mrb[0].mxu0
    %624 = vdwg.mxu0
    %v625 = vadd.f32 %v551, %v622
    %v626 = vxor.u32 %v625, 2147483648
    %v627 = vmul.f32 %v626, 1.442695
    %v628 = vpow.pop %v627
    %v629 = vadd.f32 %v628, 1.0
    %v630 = vrcp.pop %v629
    %v631 = vmul.f32 1.0, %v630
    %632 = vrot.lane.b32.xlu0 %v439, 64
    %v633 = vpop.permute.xlu0 %632
    %v635 = vadd.f32 %v622, %v633
    %637 = vrot.lane.b32.xlu0 %v635, 64
    %v638 = vpop.permute.xlu0 %637
    %v640 = vmul.f32 %v631, %v638
    %642 = vrot.lane.b32.xlu0 %v640, 64
    %v643 = vpop.permute.xlu0 %642
    %v645 = vadd.f32 %v551, %v643
    %v646 = vtanh.pop %v645
    %v647 = vsub.f32 1.0, %v631
    %649 = vrot.lane.b32.xlu0 %v646, 96
    %v650 = vpop.permute.xlu0 %649
    %v652 = vmul.f32 %v647, %v650
    %653 = vrot.lane.b32.xlu0 %v442, 32
    %v654 = vpop.permute.xlu0 %653
    %v656 = vmul.f32 %v631, %v654
    %v657 = vadd.f32 %v652, %v656
    %659 = vrot.lane.b32.xlu0 %v550, 96
    %v660 = vpop.permute.xlu0 %659
    %662 = vst.msk [vmem:[#allocation4] sm:$0xff] %vm444, %v660
    %664 = vrot.lane.b32.xlu0 %v657, 96
    %v665 = vpop.permute.xlu0 %664
    %667 = vst.msk [vmem:[#allocation5 + $0x38] sm:$0xff] %vm444, %v665
    %v668 = vld [vmem:[#allocation2 + $0x8] sm:$0xff]
    %v669 = vsel %vm444, %v660, 0
    %671 = vmatprep.subr.mxu0 0.0
    %672 = vmatpush1.msra.mxu0 %v418
    %673 = vmatprep.subr.mxu0 0.0
    %674 = vmatpush1.msra.mxu0 %v419
    %675 = vmatprep.subr.mxu0 0.0
    %676 = vmatpush1.msra.mxu0 %v420
    %677 = vmatprep.subr.mxu0 0.0
    %678 = vmatpush1.msra.mxu0 %v421
    %679 = vmatprep.subr.mxu0 0.0
    %680 = vmatpush1.msra.mxu0 0.0
    %681 = vmatprep.subr.mxu0 0.0
    %682 = vmatpush1.msra.mxu0 0.0
    %683 = vmatprep.subr.mxu0 0.0
    %684 = vmatpush1.msra.mxu0 0.0
    %685 = vmatprep.subr.mxu0 0.0
    %686 = vmatpush1.msra.mxu0 0.0
    %687 = vmatprep.subr.mxu0 0.0
    %688 = vmatpush1.msra.mxu0 0.0
    %689 = vmatprep.subr.mxu0 0.0
    %690 = vmatpush1.msra.mxu0 0.0
    %691 = vmatprep.subr.mxu0 0.0
    %692 = vmatpush1.msra.mxu0 0.0
    %693 = vmatprep.subr.mxu0 0.0
    %694 = vmatpush1.msra.mxu0 0.0
    %695 = vmatprep.subr.mxu0 0.0
    %696 = vmatpush1.msra.mxu0 0.0
    %697 = vmatprep.subr.mxu0 0.0
    %698 = vmatpush1.msra.mxu0 0.0
    %699 = vmatprep.subr.mxu0 0.0
    %700 = vmatpush1.msra.mxu0 0.0
    %701 = vmatprep.subr.mxu0 0.0
    %702 = vmatpush1.msra.mxu0 0.0
    %703 = vmatprep.subr.mxu0 0.0
    %704 = vmatpush1.msra.mxu0 0.0
    %705 = vmatprep.subr.mxu0 0.0
    %706 = vmatpush1.msra.mxu0 0.0
    %707 = vmatprep.subr.mxu0 0.0
    %708 = vmatpush1.msra.mxu0 0.0
    %709 = vmatprep.subr.mxu0 0.0
    %710 = vmatpush1.msra.mxu0 0.0
    %711 = vmatprep.subr.mxu0 0.0
    %712 = vmatpush1.msra.mxu0 0.0
    %713 = vmatprep.subr.mxu0 0.0
    %714 = vmatpush1.msra.mxu0 0.0
    %715 = vmatprep.subr.mxu0 0.0
    %716 = vmatpush1.msra.mxu0 0.0
    %717 = vmatprep.subr.mxu0 0.0
    %718 = vmatpush1.msra.mxu0 0.0
    %719 = vmatprep.subr.mxu0 0.0
    %720 = vmatpush1.msra.mxu0 0.0
    %721 = vmatprep.subr.mxu0 0.0
    %722 = vmatpush1.msra.mxu0 0.0
    %723 = vmatprep.subr.mxu0 0.0
    %724 = vmatpush1.msra.mxu0 0.0
    %725 = vmatprep.subr.mxu0 0.0
    %726 = vmatpush1.msra.mxu0 0.0
    %727 = vmatprep.subr.mxu0 0.0
    %728 = vmatpush1.msra.mxu0 0.0
    %729 = vmatprep.subr.mxu0 0.0
    %730 = vmatpush1.msra.mxu0 0.0
    %731 = vmatprep.subr.mxu0 0.0
    %732 = vmatpush1.msra.mxu0 0.0
    %733 = vmatprep.subr.mxu0 0.0
    %734 = vmatpush1.msra.mxu0 0.0
    %735 = vmatprep.mubr.f32.mxu0 0.0
    %736 = vmatmul.mubr.f32.gmra.mrb[0].mxu0 %v669
    %v737 = vpop.f32.mrb[0].mxu0
    %v738 = vadd.f32 0.0, %v737
    %v739 = vpop.f32.mrb[0].mxu0
    %740 = vdwg.mxu0
    %v741 = vadd.f32 %v668, %v738
    %v742 = vxor.u32 %v741, 2147483648
    %v743 = vmul.f32 %v742, 1.442695
    %v744 = vpow.pop %v743
    %v745 = vadd.f32 %v744, 1.0
    %v746 = vrcp.pop %v745
    %v747 = vmul.f32 1.0, %v746
    %v748 = vadd.f32 %v738, %v526
    %750 = vrot.lane.b32.xlu0 %v748, 64
    %v751 = vpop.permute.xlu0 %750
    %v753 = vmul.f32 %v747, %v751
    %755 = vrot.lane.b32.xlu0 %v753, 64
    %v756 = vpop.permute.xlu0 %755
    %v758 = vadd.f32 %v668, %v756
    %v759 = vtanh.pop %v758
    %v760 = vsub.f32 1.0, %v747
    %762 = vrot.lane.b32.xlu0 %v759, 96
    %v763 = vpop.permute.xlu0 %762
    %v765 = vmul.f32 %v760, %v763
    %v766 = vmul.f32 %v747, %v550
    %v767 = vadd.f32 %v765, %v766
    %v768 = vld [vmem:[#allocation3 + $0x30] sm:$0xff]
    %v769 = vsel %vm444, %v665, 0
    %771 = vmatprep.subr.mxu0 0.0
    %772 = vmatpush1.msra.mxu0 %v423
    %773 = vmatprep.subr.mxu0 0.0
    %774 = vmatpush1.msra.mxu0 %v424
    %775 = vmatprep.subr.mxu0 0.0
    %776 = vmatpush1.msra.mxu0 %v425
    %777 = vmatprep.subr.mxu0 0.0
    %778 = vmatpush1.msra.mxu0 %v426
    %779 = vmatprep.subr.mxu0 0.0
    %780 = vmatpush1.msra.mxu0 0.0
    %781 = vmatprep.subr.mxu0 0.0
    %782 = vmatpush1.msra.mxu0 0.0
    %783 = vmatprep.subr.mxu0 0.0
    %784 = vmatpush1.msra.mxu0 0.0
    %785 = vmatprep.subr.mxu0 0.0
    %786 = vmatpush1.msra.mxu0 0.0
    %787 = vmatprep.subr.mxu0 0.0
    %788 = vmatpush1.msra.mxu0 0.0
    %789 = vmatprep.subr.mxu0 0.0
    %790 = vmatpush1.msra.mxu0 0.0
    %791 = vmatprep.subr.mxu0 0.0
    %792 = vmatpush1.msra.mxu0 0.0
    %793 = vmatprep.subr.mxu0 0.0
    %794 = vmatpush1.msra.mxu0 0.0
    %795 = vmatprep.subr.mxu0 0.0
    %796 = vmatpush1.msra.mxu0 0.0
    %797 = vmatprep.subr.mxu0 0.0
    %798 = vmatpush1.msra.mxu0 0.0
    %799 = vmatprep.subr.mxu0 0.0
    %800 = vmatpush1.msra.mxu0 0.0
    %801 = vmatprep.subr.mxu0 0.0
    %802 = vmatpush1.msra.mxu0 0.0
    %803 = vmatprep.subr.mxu0 0.0
    %804 = vmatpush1.msra.mxu0 0.0
    %805 = vmatprep.subr.mxu0 0.0
    %806 = vmatpush1.msra.mxu0 0.0
    %807 = vmatprep.subr.mxu0 0.0
    %808 = vmatpush1.msra.mxu0 0.0
    %809 = vmatprep.subr.mxu0 0.0
    %810 = vmatpush1.msra.mxu0 0.0
    %811 = vmatprep.subr.mxu0 0.0
    %812 = vmatpush1.msra.mxu0 0.0
    %813 = vmatprep.subr.mxu0 0.0
    %814 = vmatpush1.msra.mxu0 0.0
    %815 = vmatprep.subr.mxu0 0.0
    %816 = vmatpush1.msra.mxu0 0.0
    %817 = vmatprep.subr.mxu0 0.0
    %818 = vmatpush1.msra.mxu0 0.0
    %819 = vmatprep.subr.mxu0 0.0
    %820 = vmatpush1.msra.mxu0 0.0
    %821 = vmatprep.subr.mxu0 0.0
    %822 = vmatpush1.msra.mxu0 0.0
    %823 = vmatprep.subr.mxu0 0.0
    %824 = vmatpush1.msra.mxu0 0.0
    %825 = vmatprep.subr.mxu0 0.0
    %826 = vmatpush1.msra.mxu0 0.0
    %827 = vmatprep.subr.mxu0 0.0
    %828 = vmatpush1.msra.mxu0 0.0
    %829 = vmatprep.subr.mxu0 0.0
    %830 = vmatpush1.msra.mxu0 0.0
    %831 = vmatprep.subr.mxu0 0.0
    %832 = vmatpush1.msra.mxu0 0.0
    %833 = vmatprep.subr.mxu0 0.0
    %834 = vmatpush1.msra.mxu0 0.0
    %835 = vmatprep.mubr.f32.mxu0 0.0
    %836 = vmatmul.mubr.f32.gmra.mrb[0].mxu0 %v769
    %v837 = vpop.f32.mrb[0].mxu0
    %v838 = vadd.f32 0.0, %v837
    %v839 = vpop.f32.mrb[0].mxu0
    %840 = vdwg.mxu0
    %v841 = vadd.f32 %v768, %v838
    %v842 = vxor.u32 %v841, 2147483648
    %v843 = vmul.f32 %v842, 1.442695
    %v844 = vpow.pop %v843
    %v845 = vadd.f32 %v844, 1.0
    %v846 = vrcp.pop %v845
    %v847 = vmul.f32 1.0, %v846
    %v848 = vadd.f32 %v838, %v633
    %850 = vrot.lane.b32.xlu0 %v848, 64
    %v851 = vpop.permute.xlu0 %850
    %v853 = vmul.f32 %v847, %v851
    %855 = vrot.lane.b32.xlu0 %v853, 64
    %v856 = vpop.permute.xlu0 %855
    %v858 = vadd.f32 %v768, %v856
    %v859 = vtanh.pop %v858
    %v860 = vsub.f32 1.0, %v847
    %862 = vrot.lane.b32.xlu0 %v859, 96
    %v863 = vpop.permute.xlu0 %862
    %v865 = vmul.f32 %v860, %v863
    %v866 = vmul.f32 %v847, %v657
    %v867 = vadd.f32 %v865, %v866
    %869 = vrot.lane.b32.xlu0 %v767, 96
    %v870 = vpop.permute.xlu0 %869
    %872 = vst.msk [vmem:[#allocation4 + $0x8] sm:$0xff] %vm444, %v870
    %874 = vrot.lane.b32.xlu0 %v867, 96
    %v875 = vpop.permute.xlu0 %874
    %877 = vst.msk [vmem:[#allocation5 + $0x30] sm:$0xff] %vm444, %v875
    %v878 = vld [vmem:[#allocation2 + $0x10] sm:$0xff]
    %v879 = vsel %vm444, %v870, 0
    %881 = vmatprep.subr.mxu0 0.0
    %882 = vmatpush1.msra.mxu0 %v418
    %883 = vmatprep.subr.mxu0 0.0
    %884 = vmatpush1.msra.mxu0 %v419
    %885 = vmatprep.subr.mxu0 0.0
    %886 = vmatpush1.msra.mxu0 %v420
    %887 = vmatprep.subr.mxu0 0.0
    %888 = vmatpush1.msra.mxu0 %v421
    %889 = vmatprep.subr.mxu0 0.0
    %890 = vmatpush1.msra.mxu0 0.0
    %891 = vmatprep.subr.mxu0 0.0
    %892 = vmatpush1.msra.mxu0 0.0
    %893 = vmatprep.subr.mxu0 0.0
    %894 = vmatpush1.msra.mxu0 0.0
    %895 = vmatprep.subr.mxu0 0.0
    %896 = vmatpush1.msra.mxu0 0.0
    %897 = vmatprep.subr.mxu0 0.0
    %898 = vmatpush1.msra.mxu0 0.0
    %899 = vmatprep.subr.mxu0 0.0
    %900 = vmatpush1.msra.mxu0 0.0
    %901 = vmatprep.subr.mxu0 0.0
    %902 = vmatpush1.msra.mxu0 0.0
    %903 = vmatprep.subr.mxu0 0.0
    %904 = vmatpush1.msra.mxu0 0.0
    %905 = vmatprep.subr.mxu0 0.0
    %906 = vmatpush1.msra.mxu0 0.0
    %907 = vmatprep.subr.mxu0 0.0
    %908 = vmatpush1.msra.mxu0 0.0
    %909 = vmatprep.subr.mxu0 0.0
    %910 = vmatpush1.msra.mxu0 0.0
    %911 = vmatprep.subr.mxu0 0.0
    %912 = vmatpush1.msra.mxu0 0.0
    %913 = vmatprep.subr.mxu0 0.0
    %914 = vmatpush1.msra.mxu0 0.0
    %915 = vmatprep.subr.mxu0 0.0
    %916 = vmatpush1.msra.mxu0 0.0
    %917 = vmatprep.subr.mxu0 0.0
    %918 = vmatpush1.msra.mxu0 0.0
    %919 = vmatprep.subr.mxu0 0.0
    %920 = vmatpush1.msra.mxu0 0.0
    %921 = vmatprep.subr.mxu0 0.0
    %922 = vmatpush1.msra.mxu0 0.0
    %923 = vmatprep.subr.mxu0 0.0
    %924 = vmatpush1.msra.mxu0 0.0
    %925 = vmatprep.subr.mxu0 0.0
    %926 = vmatpush1.msra.mxu0 0.0
    %927 = vmatprep.subr.mxu0 0.0
    %928 = vmatpush1.msra.mxu0 0.0
    %929 = vmatprep.subr.mxu0 0.0
    %930 = vmatpush1.msra.mxu0 0.0
    %931 = vmatprep.subr.mxu0 0.0
    %932 = vmatpush1.msra.mxu0 0.0
    %933 = vmatprep.subr.mxu0 0.0
    %934 = vmatpush1.msra.mxu0 0.0
    %935 = vmatprep.subr.mxu0 0.0
    %936 = vmatpush1.msra.mxu0 0.0
    %937 = vmatprep.subr.mxu0 0.0
    %938 = vmatpush1.msra.mxu0 0.0
    %939 = vmatprep.subr.mxu0 0.0
    %940 = vmatpush1.msra.mxu0 0.0
    %941 = vmatprep.subr.mxu0 0.0
    %942 = vmatpush1.msra.mxu0 0.0
    %943 = vmatprep.subr.mxu0 0.0
    %944 = vmatpush1.msra.mxu0 0.0
    %945 = vmatprep.mubr.f32.mxu0 0.0
    %946 = vmatmul.mubr.f32.gmra.mrb[0].mxu0 %v879
    %v947 = vpop.f32.mrb[0].mxu0
    %v948 = vadd.f32 0.0, %v947
    %v949 = vpop.f32.mrb[0].mxu0
    %950 = vdwg.mxu0
    %v951 = vadd.f32 %v878, %v948
    %v952 = vxor.u32 %v951, 2147483648
    %v953 = vmul.f32 %v952, 1.442695
    %v954 = vpow.pop %v953
    %v955 = vadd.f32 %v954, 1.0
    %v956 = vrcp.pop %v955
    %v957 = vmul.f32 1.0, %v956
    %v958 = vadd.f32 %v948, %v526
    %960 = vrot.lane.b32.xlu0 %v958, 64
    %v961 = vpop.permute.xlu0 %960
    %v963 = vmul.f32 %v957, %v961
    %965 = vrot.lane.b32.xlu0 %v963, 64
    %v966 = vpop.permute.xlu0 %965
    %v968 = vadd.f32 %v878, %v966
    %v969 = vtanh.pop %v968
    %v970 = vsub.f32 1.0, %v957
    %972 = vrot.lane.b32.xlu0 %v969, 96
    %v973 = vpop.permute.xlu0 %972
    %v975 = vmul.f32 %v970, %v973
    %v976 = vmul.f32 %v957, %v767
    %v977 = vadd.f32 %v975, %v976
    %v978 = vld [vmem:[#allocation3 + $0x28] sm:$0xff]
    %v979 = vsel %vm444, %v875, 0
    %981 = vmatprep.subr.mxu0 0.0
    %982 = vmatpush1.msra.mxu0 %v423
    %983 = vmatprep.subr.mxu0 0.0
    %984 = vmatpush1.msra.mxu0 %v424
    %985 = vmatprep.subr.mxu0 0.0
    %986 = vmatpush1.msra.mxu0 %v425
    %987 = vmatprep.subr.mxu0 0.0
    %988 = vmatpush1.msra.mxu0 %v426
    %989 = vmatprep.subr.mxu0 0.0
    %990 = vmatpush1.msra.mxu0 0.0
    %991 = vmatprep.subr.mxu0 0.0
    %992 = vmatpush1.msra.mxu0 0.0
    %993 = vmatprep.subr.mxu0 0.0
    %994 = vmatpush1.msra.mxu0 0.0
    %995 = vmatprep.subr.mxu0 0.0
    %996 = vmatpush1.msra.mxu0 0.0
    %997 = vmatprep.subr.mxu0 0.0
    %998 = vmatpush1.msra.mxu0 0.0
    %999 = vmatprep.subr.mxu0 0.0
    %1000 = vmatpush1.msra.mxu0 0.0
    %1001 = vmatprep.subr.mxu0 0.0
    %1002 = vmatpush1.msra.mxu0 0.0
    %1003 = vmatprep.subr.mxu0 0.0
    %1004 = vmatpush1.msra.mxu0 0.0
    %1005 = vmatprep.subr.mxu0 0.0
    %1006 = vmatpush1.msra.mxu0 0.0
    %1007 = vmatprep.subr.mxu0 0.0
    %1008 = vmatpush1.msra.mxu0 0.0
    %1009 = vmatprep.subr.mxu0 0.0
    %1010 = vmatpush1.msra.mxu0 0.0
    %1011 = vmatprep.subr.mxu0 0.0
    %1012 = vmatpush1.msra.mxu0 0.0
    %1013 = vmatprep.subr.mxu0 0.0
    %1014 = vmatpush1.msra.mxu0 0.0
    %1015 = vmatprep.subr.mxu0 0.0
    %1016 = vmatpush1.msra.mxu0 0.0
    %1017 = vmatprep.subr.mxu0 0.0
    %1018 = vmatpush1.msra.mxu0 0.0
    %1019 = vmatprep.subr.mxu0 0.0
    %1020 = vmatpush1.msra.mxu0 0.0
    %1021 = vmatprep.subr.mxu0 0.0
    %1022 = vmatpush1.msra.mxu0 0.0
    %1023 = vmatprep.subr.mxu0 0.0
    %1024 = vmatpush1.msra.mxu0 0.0
    %1025 = vmatprep.subr.mxu0 0.0
    %1026 = vmatpush1.msra.mxu0 0.0
    %1027 = vmatprep.subr.mxu0 0.0
    %1028 = vmatpush1.msra.mxu0 0.0
    %1029 = vmatprep.subr.mxu0 0.0
    %1030 = vmatpush1.msra.mxu0 0.0
    %1031 = vmatprep.subr.mxu0 0.0
    %1032 = vmatpush1.msra.mxu0 0.0
    %1033 = vmatprep.subr.mxu0 0.0
    %1034 = vmatpush1.msra.mxu0 0.0
    %1035 = vmatprep.subr.mxu0 0.0
    %1036 = vmatpush1.msra.mxu0 0.0
    %1037 = vmatprep.subr.mxu0 0.0
    %1038 = vmatpush1.msra.mxu0 0.0
    %1039 = vmatprep.subr.mxu0 0.0
    %1040 = vmatpush1.msra.mxu0 0.0
    %1041 = vmatprep.subr.mxu0 0.0
    %1042 = vmatpush1.msra.mxu0 0.0
    %1043 = vmatprep.subr.mxu0 0.0
    %1044 = vmatpush1.msra.mxu0 0.0
    %1045 = vmatprep.mubr.f32.mxu0 0.0
    %1046 = vmatmul.mubr.f32.gmra.mrb[0].mxu0 %v979
    %v1047 = vpop.f32.mrb[0].mxu0
    %v1048 = vadd.f32 0.0, %v1047
    %v1049 = vpop.f32.mrb[0].mxu0
    %1050 = vdwg.mxu0
    %v1051 = vadd.f32 %v978, %v1048
    %v1052 = vxor.u32 %v1051, 2147483648
    %v1053 = vmul.f32 %v1052, 1.442695
    %v1054 = vpow.pop %v1053
    %v1055 = vadd.f32 %v1054, 1.0
    %v1056 = vrcp.pop %v1055
    %v1057 = vmul.f32 1.0, %v1056
    %v1058 = vadd.f32 %v1048, %v633
    %1060 = vrot.lane.b32.xlu0 %v1058, 64
    %v1061 = vpop.permute.xlu0 %1060
    %v1063 = vmul.f32 %v1057, %v1061
    %1065 = vrot.lane.b32.xlu0 %v1063, 64
    %v1066 = vpop.permute.xlu0 %1065
    %v1068 = vadd.f32 %v978, %v1066
    %v1069 = vtanh.pop %v1068
    %v1070 = vsub.f32 1.0, %v1057
    %1072 = vrot.lane.b32.xlu0 %v1069, 96
    %v1073 = vpop.permute.xlu0 %1072
    %v1075 = vmul.f32 %v1070, %v1073
    %v1076 = vmul.f32 %v1057, %v867
    %v1077 = vadd.f32 %v1075, %v1076
    %1079 = vrot.lane.b32.xlu0 %v977, 96
    %v1080 = vpop.permute.xlu0 %1079
    %1082 = vst.msk [vmem:[#allocation4 + $0x10] sm:$0xff] %vm444, %v1080
    %1084 = vrot.lane.b32.xlu0 %v1077, 96
    %v1085 = vpop.permute.xlu0 %1084
    %1087 = vst.msk [vmem:[#allocation5 + $0x28] sm:$0xff] %vm444, %v1085
    %v1088 = vld [vmem:[#allocation2 + $0x18] sm:$0xff]
    %v1089 = vsel %vm444, %v1080, 0
    %1091 = vmatprep.subr.mxu0 0.0
    %1092 = vmatpush1.msra.mxu0 %v418
    %1093 = vmatprep.subr.mxu0 0.0
    %1094 = vmatpush1.msra.mxu0 %v419
    %1095 = vmatprep.subr.mxu0 0.0
    %1096 = vmatpush1.msra.mxu0 %v420
    %1097 = vmatprep.subr.mxu0 0.0
    %1098 = vmatpush1.msra.mxu0 %v421
    %1099 = vmatprep.subr.mxu0 0.0
    %1100 = vmatpush1.msra.mxu0 0.0
    %1101 = vmatprep.subr.mxu0 0.0
    %1102 = vmatpush1.msra.mxu0 0.0
    %1103 = vmatprep.subr.mxu0 0.0
    %1104 = vmatpush1.msra.mxu0 0.0
    %1105 = vmatprep.subr.mxu0 0.0
    %1106 = vmatpush1.msra.mxu0 0.0
    %1107 = vmatprep.subr.mxu0 0.0
    %1108 = vmatpush1.msra.mxu0 0.0
    %1109 = vmatprep.subr.mxu0 0.0
    %1110 = vmatpush1.msra.mxu0 0.0
    %1111 = vmatprep.subr.mxu0 0.0
    %1112 = vmatpush1.msra.mxu0 0.0
    %1113 = vmatprep.subr.mxu0 0.0
    %1114 = vmatpush1.msra.mxu0 0.0
    %1115 = vmatprep.subr.mxu0 0.0
    %1116 = vmatpush1.msra.mxu0 0.0
    %1117 = vmatprep.subr.mxu0 0.0
    %1118 = vmatpush1.msra.mxu0 0.0
    %1119 = vmatprep.subr.mxu0 0.0
    %1120 = vmatpush1.msra.mxu0 0.0
    %1121 = vmatprep.subr.mxu0 0.0
    %1122 = vmatpush1.msra.mxu0 0.0
    %1123 = vmatprep.subr.mxu0 0.0
    %1124 = vmatpush1.msra.mxu0 0.0
    %1125 = vmatprep.subr.mxu0 0.0
    %1126 = vmatpush1.msra.mxu0 0.0
    %1127 = vmatprep.subr.mxu0 0.0
    %1128 = vmatpush1.msra.mxu0 0.0
    %1129 = vmatprep.subr.mxu0 0.0
    %1130 = vmatpush1.msra.mxu0 0.0
    %1131 = vmatprep.subr.mxu0 0.0
    %1132 = vmatpush1.msra.mxu0 0.0
    %1133 = vmatprep.subr.mxu0 0.0
    %1134 = vmatpush1.msra.mxu0 0.0
    %1135 = vmatprep.subr.mxu0 0.0
    %1136 = vmatpush1.msra.mxu0 0.0
    %1137 = vmatprep.subr.mxu0 0.0
    %1138 = vmatpush1.msra.mxu0 0.0
    %1139 = vmatprep.subr.mxu0 0.0
    %1140 = vmatpush1.msra.mxu0 0.0
    %1141 = vmatprep.subr.mxu0 0.0
    %1142 = vmatpush1.msra.mxu0 0.0
    %1143 = vmatprep.subr.mxu0 0.0
    %1144 = vmatpush1.msra.mxu0 0.0
    %1145 = vmatprep.subr.mxu0 0.0
    %1146 = vmatpush1.msra.mxu0 0.0
    %1147 = vmatprep.subr.mxu0 0.0
    %1148 = vmatpush1.msra.mxu0 0.0
    %1149 = vmatprep.subr.mxu0 0.0
    %1150 = vmatpush1.msra.mxu0 0.0
    %1151 = vmatprep.subr.mxu0 0.0
    %1152 = vmatpush1.msra.mxu0 0.0
    %1153 = vmatprep.subr.mxu0 0.0
    %1154 = vmatpush1.msra.mxu0 0.0
    %1155 = vmatprep.mubr.f32.mxu0 0.0
    %1156 = vmatmul.mubr.f32.gmra.mrb[0].mxu0 %v1089
    %v1157 = vpop.f32.mrb[0].mxu0
    %v1158 = vadd.f32 0.0, %v1157
    %v1159 = vpop.f32.mrb[0].mxu0
    %1160 = vdwg.mxu0
    %v1161 = vadd.f32 %v1088, %v1158
    %v1162 = vxor.u32 %v1161, 2147483648
    %v1163 = vmul.f32 %v1162, 1.442695
    %v1164 = vpow.pop %v1163
    %v1165 = vadd.f32 %v1164, 1.0
    %v1166 = vrcp.pop %v1165
    %v1167 = vmul.f32 1.0, %v1166
    %v1168 = vadd.f32 %v1158, %v526
    %1170 = vrot.lane.b32.xlu0 %v1168, 64
    %v1171 = vpop.permute.xlu0 %1170
    %v1173 = vmul.f32 %v1167, %v1171
    %1175 = vrot.lane.b32.xlu0 %v1173, 64
    %v1176 = vpop.permute.xlu0 %1175
    %v1178 = vadd.f32 %v1088, %v1176
    %v1179 = vtanh.pop %v1178
    %v1180 = vsub.f32 1.0, %v1167
    %1182 = vrot.lane.b32.xlu0 %v1179, 96
    %v1183 = vpop.permute.xlu0 %1182
    %v1185 = vmul.f32 %v1180, %v1183
    %v1186 = vmul.f32 %v1167, %v977
    %v1187 = vadd.f32 %v1185, %v1186
    %v1188 = vld [vmem:[#allocation3 + $0x20] sm:$0xff]
    %v1189 = vsel %vm444, %v1085, 0
    %1191 = vmatprep.subr.mxu0 0.0
    %1192 = vmatpush1.msra.mxu0 %v423
    %1193 = vmatprep.subr.mxu0 0.0
    %1194 = vmatpush1.msra.mxu0 %v424
    %1195 = vmatprep.subr.mxu0 0.0
    %1196 = vmatpush1.msra.mxu0 %v425
    %1197 = vmatprep.subr.mxu0 0.0
    %1198 = vmatpush1.msra.mxu0 %v426
    %1199 = vmatprep.subr.mxu0 0.0
    %1200 = vmatpush1.msra.mxu0 0.0
    %1201 = vmatprep.subr.mxu0 0.0
    %1202 = vmatpush1.msra.mxu0 0.0
    %1203 = vmatprep.subr.mxu0 0.0
    %1204 = vmatpush1.msra.mxu0 0.0
    %1205 = vmatprep.subr.mxu0 0.0
    %1206 = vmatpush1.msra.mxu0 0.0
    %1207 = vmatprep.subr.mxu0 0.0
    %1208 = vmatpush1.msra.mxu0 0.0
    %1209 = vmatprep.subr.mxu0 0.0
    %1210 = vmatpush1.msra.mxu0 0.0
    %1211 = vmatprep.subr.mxu0 0.0
    %1212 = vmatpush1.msra.mxu0 0.0
    %1213 = vmatprep.subr.mxu0 0.0
    %1214 = vmatpush1.msra.mxu0 0.0
    %1215 = vmatprep.subr.mxu0 0.0
    %1216 = vmatpush1.msra.mxu0 0.0
    %1217 = vmatprep.subr.mxu0 0.0
    %1218 = vmatpush1.msra.mxu0 0.0
    %1219 = vmatprep.subr.mxu0 0.0
    %1220 = vmatpush1.msra.mxu0 0.0
    %1221 = vmatprep.subr.mxu0 0.0
    %1222 = vmatpush1.msra.mxu0 0.0
    %1223 = vmatprep.subr.mxu0 0.0
    %1224 = vmatpush1.msra.mxu0 0.0
    %1225 = vmatprep.subr.mxu0 0.0
    %1226 = vmatpush1.msra.mxu0 0.0
    %1227 = vmatprep.subr.mxu0 0.0
    %1228 = vmatpush1.msra.mxu0 0.0
    %1229 = vmatprep.subr.mxu0 0.0
    %1230 = vmatpush1.msra.mxu0 0.0
    %1231 = vmatprep.subr.mxu0 0.0
    %1232 = vmatpush1.msra.mxu0 0.0
    %1233 = vmatprep.subr.mxu0 0.0
    %1234 = vmatpush1.msra.mxu0 0.0
    %1235 = vmatprep.subr.mxu0 0.0
    %1236 = vmatpush1.msra.mxu0 0.0
    %1237 = vmatprep.subr.mxu0 0.0
    %1238 = vmatpush1.msra.mxu0 0.0
    %1239 = vmatprep.subr.mxu0 0.0
    %1240 = vmatpush1.msra.mxu0 0.0
    %1241 = vmatprep.subr.mxu0 0.0
    %1242 = vmatpush1.msra.mxu0 0.0
    %1243 = vmatprep.subr.mxu0 0.0
    %1244 = vmatpush1.msra.mxu0 0.0
    %1245 = vmatprep.subr.mxu0 0.0
    %1246 = vmatpush1.msra.mxu0 0.0
    %1247 = vmatprep.subr.mxu0 0.0
    %1248 = vmatpush1.msra.mxu0 0.0
    %1249 = vmatprep.subr.mxu0 0.0
    %1250 = vmatpush1.msra.mxu0 0.0
    %1251 = vmatprep.subr.mxu0 0.0
    %1252 = vmatpush1.msra.mxu0 0.0
    %1253 = vmatprep.subr.mxu0 0.0
    %1254 = vmatpush1.msra.mxu0 0.0
    %1255 = vmatprep.mubr.f32.mxu0 0.0
    %1256 = vmatmul.mubr.f32.gmra.mrb[0].mxu0 %v1189
    %v1257 = vpop.f32.mrb[0].mxu0
    %v1258 = vadd.f32 0.0, %v1257
    %v1259 = vpop.f32.mrb[0].mxu0
    %1260 = vdwg.mxu0
    %v1261 = vadd.f32 %v1188, %v1258
    %v1262 = vxor.u32 %v1261, 2147483648
    %v1263 = vmul.f32 %v1262, 1.442695
    %v1264 = vpow.pop %v1263
    %v1265 = vadd.f32 %v1264, 1.0
    %v1266 = vrcp.pop %v1265
    %v1267 = vmul.f32 1.0, %v1266
    %v1268 = vadd.f32 %v1258, %v633
    %1270 = vrot.lane.b32.xlu0 %v1268, 64
    %v1271 = vpop.permute.xlu0 %1270
    %v1273 = vmul.f32 %v1267, %v1271
    %1275 = vrot.lane.b32.xlu0 %v1273, 64
    %v1276 = vpop.permute.xlu0 %1275
    %v1278 = vadd.f32 %v1188, %v1276
    %v1279 = vtanh.pop %v1278
    %v1280 = vsub.f32 1.0, %v1267
    %1282 = vrot.lane.b32.xlu0 %v1279, 96
    %v1283 = vpop.permute.xlu0 %1282
    %v1285 = vmul.f32 %v1280, %v1283
    %v1286 = vmul.f32 %v1267, %v1077
    %v1287 = vadd.f32 %v1285, %v1286
    %1289 = vrot.lane.b32.xlu0 %v1187, 96
    %v1290 = vpop.permute.xlu0 %1289
    %1292 = vst.msk [vmem:[#allocation4 + $0x18] sm:$0xff] %vm444, %v1290
    %1294 = vrot.lane.b32.xlu0 %v1287, 96
    %v1295 = vpop.permute.xlu0 %1294
    %1297 = vst.msk [vmem:[#allocation5 + $0x20] sm:$0xff] %vm444, %v1295
    %v1298 = vld [vmem:[#allocation2 + $0x20] sm:$0xff]
    %v1299 = vsel %vm444, %v1290, 0
    %1301 = vmatprep.subr.mxu0 0.0
    %1302 = vmatpush1.msra.mxu0 %v418
    %1303 = vmatprep.subr.mxu0 0.0
    %1304 = vmatpush1.msra.mxu0 %v419
    %1305 = vmatprep.subr.mxu0 0.0
    %1306 = vmatpush1.msra.mxu0 %v420
    %1307 = vmatprep.subr.mxu0 0.0
    %1308 = vmatpush1.msra.mxu0 %v421
    %1309 = vmatprep.subr.mxu0 0.0
    %1310 = vmatpush1.msra.mxu0 0.0
    %1311 = vmatprep.subr.mxu0 0.0
    %1312 = vmatpush1.msra.mxu0 0.0
    %1313 = vmatprep.subr.mxu0 0.0
    %1314 = vmatpush1.msra.mxu0 0.0
    %1315 = vmatprep.subr.mxu0 0.0
    %1316 = vmatpush1.msra.mxu0 0.0
    %1317 = vmatprep.subr.mxu0 0.0
    %1318 = vmatpush1.msra.mxu0 0.0
    %1319 = vmatprep.subr.mxu0 0.0
    %1320 = vmatpush1.msra.mxu0 0.0
    %1321 = vmatprep.subr.mxu0 0.0
    %1322 = vmatpush1.msra.mxu0 0.0
    %1323 = vmatprep.subr.mxu0 0.0
    %1324 = vmatpush1.msra.mxu0 0.0
    %1325 = vmatprep.subr.mxu0 0.0
    %1326 = vmatpush1.msra.mxu0 0.0
    %1327 = vmatprep.subr.mxu0 0.0
    %1328 = vmatpush1.msra.mxu0 0.0
    %1329 = vmatprep.subr.mxu0 0.0
    %1330 = vmatpush1.msra.mxu0 0.0
    %1331 = vmatprep.subr.mxu0 0.0
    %1332 = vmatpush1.msra.mxu0 0.0
    %1333 = vmatprep.subr.mxu0 0.0
    %1334 = vmatpush1.msra.mxu0 0.0
    %1335 = vmatprep.subr.mxu0 0.0
    %1336 = vmatpush1.msra.mxu0 0.0
    %1337 = vmatprep.subr.mxu0 0.0
    %1338 = vmatpush1.msra.mxu0 0.0
    %1339 = vmatprep.subr.mxu0 0.0
    %1340 = vmatpush1.msra.mxu0 0.0
    %1341 = vmatprep.subr.mxu0 0.0
    %1342 = vmatpush1.msra.mxu0 0.0
    %1343 = vmatprep.subr.mxu0 0.0
    %1344 = vmatpush1.msra.mxu0 0.0
    %1345 = vmatprep.subr.mxu0 0.0
    %1346 = vmatpush1.msra.mxu0 0.0
    %1347 = vmatprep.subr.mxu0 0.0
    %1348 = vmatpush1.msra.mxu0 0.0
    %1349 = vmatprep.subr.mxu0 0.0
    %1350 = vmatpush1.msra.mxu0 0.0
    %1351 = vmatprep.subr.mxu0 0.0
    %1352 = vmatpush1.msra.mxu0 0.0
    %1353 = vmatprep.subr.mxu0 0.0
    %1354 = vmatpush1.msra.mxu0 0.0
    %1355 = vmatprep.subr.mxu0 0.0
    %1356 = vmatpush1.msra.mxu0 0.0
    %1357 = vmatprep.subr.mxu0 0.0
    %1358 = vmatpush1.msra.mxu0 0.0
    %1359 = vmatprep.subr.mxu0 0.0
    %1360 = vmatpush1.msra.mxu0 0.0
    %1361 = vmatprep.subr.mxu0 0.0
    %1362 = vmatpush1.msra.mxu0 0.0
    %1363 = vmatprep.subr.mxu0 0.0
    %1364 = vmatpush1.msra.mxu0 0.0
    %1365 = vmatprep.mubr.f32.mxu0 0.0
    %1366 = vmatmul.mubr.f32.gmra.mrb[0].mxu0 %v1299
    %v1367 = vpop.f32.mrb[0].mxu0
    %v1368 = vadd.f32 0.0, %v1367
    %v1369 = vpop.f32.mrb[0].mxu0
    %1370 = vdwg.mxu0
    %v1371 = vadd.f32 %v1298, %v1368
    %v1372 = vxor.u32 %v1371, 2147483648
    %v1373 = vmul.f32 %v1372, 1.442695
    %v1374 = vpow.pop %v1373
    %v1375 = vadd.f32 %v1374, 1.0
    %v1376 = vrcp.pop %v1375
    %v1377 = vmul.f32 1.0, %v1376
    %v1378 = vadd.f32 %v1368, %v526
    %1380 = vrot.lane.b32.xlu0 %v1378, 64
    %v1381 = vpop.permute.xlu0 %1380
    %v1383 = vmul.f32 %v1377, %v1381
    %1385 = vrot.lane.b32.xlu0 %v1383, 64
    %v1386 = vpop.permute.xlu0 %1385
    %v1388 = vadd.f32 %v1298, %v1386
    %v1389 = vtanh.pop %v1388
    %v1390 = vsub.f32 1.0, %v1377
    %1392 = vrot.lane.b32.xlu0 %v1389, 96
    %v1393 = vpop.permute.xlu0 %1392
    %v1395 = vmul.f32 %v1390, %v1393
    %v1396 = vmul.f32 %v1377, %v1187
    %v1397 = vadd.f32 %v1395, %v1396
    %v1398 = vld [vmem:[#allocation3 + $0x18] sm:$0xff]
    %v1399 = vsel %vm444, %v1295, 0
    %1401 = vmatprep.subr.mxu0 0.0
    %1402 = vmatpush1.msra.mxu0 %v423
    %1403 = vmatprep.subr.mxu0 0.0
    %1404 = vmatpush1.msra.mxu0 %v424
    %1405 = vmatprep.subr.mxu0 0.0
    %1406 = vmatpush1.msra.mxu0 %v425
    %1407 = vmatprep.subr.mxu0 0.0
    %1408 = vmatpush1.msra.mxu0 %v426
    %1409 = vmatprep.subr.mxu0 0.0
    %1410 = vmatpush1.msra.mxu0 0.0
    %1411 = vmatprep.subr.mxu0 0.0
    %1412 = vmatpush1.msra.mxu0 0.0
    %1413 = vmatprep.subr.mxu0 0.0
    %1414 = vmatpush1.msra.mxu0 0.0
    %1415 = vmatprep.subr.mxu0 0.0
    %1416 = vmatpush1.msra.mxu0 0.0
    %1417 = vmatprep.subr.mxu0 0.0
    %1418 = vmatpush1.msra.mxu0 0.0
    %1419 = vmatprep.subr.mxu0 0.0
    %1420 = vmatpush1.msra.mxu0 0.0
    %1421 = vmatprep.subr.mxu0 0.0
    %1422 = vmatpush1.msra.mxu0 0.0
    %1423 = vmatprep.subr.mxu0 0.0
    %1424 = vmatpush1.msra.mxu0 0.0
    %1425 = vmatprep.subr.mxu0 0.0
    %1426 = vmatpush1.msra.mxu0 0.0
    %1427 = vmatprep.subr.mxu0 0.0
    %1428 = vmatpush1.msra.mxu0 0.0
    %1429 = vmatprep.subr.mxu0 0.0
    %1430 = vmatpush1.msra.mxu0 0.0
    %1431 = vmatprep.subr.mxu0 0.0
    %1432 = vmatpush1.msra.mxu0 0.0
    %1433 = vmatprep.subr.mxu0 0.0
    %1434 = vmatpush1.msra.mxu0 0.0
    %1435 = vmatprep.subr.mxu0 0.0
    %1436 = vmatpush1.msra.mxu0 0.0
    %1437 = vmatprep.subr.mxu0 0.0
    %1438 = vmatpush1.msra.mxu0 0.0
    %1439 = vmatprep.subr.mxu0 0.0
    %1440 = vmatpush1.msra.mxu0 0.0
    %1441 = vmatprep.subr.mxu0 0.0
    %1442 = vmatpush1.msra.mxu0 0.0
    %1443 = vmatprep.subr.mxu0 0.0
    %1444 = vmatpush1.msra.mxu0 0.0
    %1445 = vmatprep.subr.mxu0 0.0
    %1446 = vmatpush1.msra.mxu0 0.0
    %1447 = vmatprep.subr.mxu0 0.0
    %1448 = vmatpush1.msra.mxu0 0.0
    %1449 = vmatprep.subr.mxu0 0.0
    %1450 = vmatpush1.msra.mxu0 0.0
    %1451 = vmatprep.subr.mxu0 0.0
    %1452 = vmatpush1.msra.mxu0 0.0
    %1453 = vmatprep.subr.mxu0 0.0
    %1454 = vmatpush1.msra.mxu0 0.0
    %1455 = vmatprep.subr.mxu0 0.0
    %1456 = vmatpush1.msra.mxu0 0.0
    %1457 = vmatprep.subr.mxu0 0.0
    %1458 = vmatpush1.msra.mxu0 0.0
    %1459 = vmatprep.subr.mxu0 0.0
    %1460 = vmatpush1.msra.mxu0 0.0
    %1461 = vmatprep.subr.mxu0 0.0
    %1462 = vmatpush1.msra.mxu0 0.0
    %1463 = vmatprep.subr.mxu0 0.0
    %1464 = vmatpush1.msra.mxu0 0.0
    %1465 = vmatprep.mubr.f32.mxu0 0.0
    %1466 = vmatmul.mubr.f32.gmra.mrb[0].mxu0 %v1399
    %v1467 = vpop.f32.mrb[0].mxu0
    %v1468 = vadd.f32 0.0, %v1467
    %v1469 = vpop.f32.mrb[0].mxu0
    %1470 = vdwg.mxu0
    %v1471 = vadd.f32 %v1398, %v1468
    %v1472 = vxor.u32 %v1471, 2147483648
    %v1473 = vmul.f32 %v1472, 1.442695
    %v1474 = vpow.pop %v1473
    %v1475 = vadd.f32 %v1474, 1.0
    %v1476 = vrcp.pop %v1475
    %v1477 = vmul.f32 1.0, %v1476
    %v1478 = vadd.f32 %v1468, %v633
    %1480 = vrot.lane.b32.xlu0 %v1478, 64
    %v1481 = vpop.permute.xlu0 %1480
    %v1483 = vmul.f32 %v1477, %v1481
    %1485 = vrot.lane.b32.xlu0 %v1483, 64
    %v1486 = vpop.permute.xlu0 %1485
    %v1488 = vadd.f32 %v1398, %v1486
    %v1489 = vtanh.pop %v1488
    %v1490 = vsub.f32 1.0, %v1477
    %1492 = vrot.lane.b32.xlu0 %v1489, 96
    %v1493 = vpop.permute.xlu0 %1492
    %v1495 = vmul.f32 %v1490, %v1493
    %v1496 = vmul.f32 %v1477, %v1287
    %v1497 = vadd.f32 %v1495, %v1496
    %1499 = vrot.lane.b32.xlu0 %v1397, 96
    %v1500 = vpop.permute.xlu0 %1499
    %1502 = vst.msk [vmem:[#allocation4 + $0x20] sm:$0xff] %vm444, %v1500
    %1504 = vrot.lane.b32.xlu0 %v1497, 96
    %v1505 = vpop.permute.xlu0 %1504
    %1507 = vst.msk [vmem:[#allocation5 + $0x18] sm:$0xff] %vm444, %v1505
    %v1508 = vld [vmem:[#allocation2 + $0x28] sm:$0xff]
    %v1509 = vsel %vm444, %v1500, 0
    %1511 = vmatprep.subr.mxu0 0.0
    %1512 = vmatpush1.msra.mxu0 %v418
    %1513 = vmatprep.subr.mxu0 0.0
    %1514 = vmatpush1.msra.mxu0 %v419
    %1515 = vmatprep.subr.mxu0 0.0
    %1516 = vmatpush1.msra.mxu0 %v420
    %1517 = vmatprep.subr.mxu0 0.0
    %1518 = vmatpush1.msra.mxu0 %v421
    %1519 = vmatprep.subr.mxu0 0.0
    %1520 = vmatpush1.msra.mxu0 0.0
    %1521 = vmatprep.subr.mxu0 0.0
    %1522 = vmatpush1.msra.mxu0 0.0
    %1523 = vmatprep.subr.mxu0 0.0
    %1524 = vmatpush1.msra.mxu0 0.0
    %1525 = vmatprep.subr.mxu0 0.0
    %1526 = vmatpush1.msra.mxu0 0.0
    %1527 = vmatprep.subr.mxu0 0.0
    %1528 = vmatpush1.msra.mxu0 0.0
    %1529 = vmatprep.subr.mxu0 0.0
    %1530 = vmatpush1.msra.mxu0 0.0
    %1531 = vmatprep.subr.mxu0 0.0
    %1532 = vmatpush1.msra.mxu0 0.0
    %1533 = vmatprep.subr.mxu0 0.0
    %1534 = vmatpush1.msra.mxu0 0.0
    %1535 = vmatprep.subr.mxu0 0.0
    %1536 = vmatpush1.msra.mxu0 0.0
    %1537 = vmatprep.subr.mxu0 0.0
    %1538 = vmatpush1.msra.mxu0 0.0
    %1539 = vmatprep.subr.mxu0 0.0
    %1540 = vmatpush1.msra.mxu0 0.0
    %1541 = vmatprep.subr.mxu0 0.0
    %1542 = vmatpush1.msra.mxu0 0.0
    %1543 = vmatprep.subr.mxu0 0.0
    %1544 = vmatpush1.msra.mxu0 0.0
    %1545 = vmatprep.subr.mxu0 0.0
    %1546 = vmatpush1.msra.mxu0 0.0
    %1547 = vmatprep.subr.mxu0 0.0
    %1548 = vmatpush1.msra.mxu0 0.0
    %1549 = vmatprep.subr.mxu0 0.0
    %1550 = vmatpush1.msra.mxu0 0.0
    %1551 = vmatprep.subr.mxu0 0.0
    %1552 = vmatpush1.msra.mxu0 0.0
    %1553 = vmatprep.subr.mxu0 0.0
    %1554 = vmatpush1.msra.mxu0 0.0
    %1555 = vmatprep.subr.mxu0 0.0
    %1556 = vmatpush1.msra.mxu0 0.0
    %1557 = vmatprep.subr.mxu0 0.0
    %1558 = vmatpush1.msra.mxu0 0.0
    %1559 = vmatprep.subr.mxu0 0.0
    %1560 = vmatpush1.msra.mxu0 0.0
    %1561 = vmatprep.subr.mxu0 0.0
    %1562 = vmatpush1.msra.mxu0 0.0
    %1563 = vmatprep.subr.mxu0 0.0
    %1564 = vmatpush1.msra.mxu0 0.0
    %1565 = vmatprep.subr.mxu0 0.0
    %1566 = vmatpush1.msra.mxu0 0.0
    %1567 = vmatprep.subr.mxu0 0.0
    %1568 = vmatpush1.msra.mxu0 0.0
    %1569 = vmatprep.subr.mxu0 0.0
    %1570 = vmatpush1.msra.mxu0 0.0
    %1571 = vmatprep.subr.mxu0 0.0
    %1572 = vmatpush1.msra.mxu0 0.0
    %1573 = vmatprep.subr.mxu0 0.0
    %1574 = vmatpush1.msra.mxu0 0.0
    %1575 = vmatprep.mubr.f32.mxu0 0.0
    %1576 = vmatmul.mubr.f32.gmra.mrb[0].mxu0 %v1509
    %v1577 = vpop.f32.mrb[0].mxu0
    %v1578 = vadd.f32 0.0, %v1577
    %v1579 = vpop.f32.mrb[0].mxu0
    %1580 = vdwg.mxu0
    %v1581 = vadd.f32 %v1508, %v1578
    %v1582 = vxor.u32 %v1581, 2147483648
    %v1583 = vmul.f32 %v1582, 1.442695
    %v1584 = vpow.pop %v1583
    %v1585 = vadd.f32 %v1584, 1.0
    %v1586 = vrcp.pop %v1585
    %v1587 = vmul.f32 1.0, %v1586
    %v1588 = vadd.f32 %v1578, %v526
    %1590 = vrot.lane.b32.xlu0 %v1588, 64
    %v1591 = vpop.permute.xlu0 %1590
    %v1593 = vmul.f32 %v1587, %v1591
    %1595 = vrot.lane.b32.xlu0 %v1593, 64
    %v1596 = vpop.permute.xlu0 %1595
    %v1598 = vadd.f32 %v1508, %v1596
    %v1599 = vtanh.pop %v1598
    %v1600 = vsub.f32 1.0, %v1587
    %1602 = vrot.lane.b32.xlu0 %v1599, 96
    %v1603 = vpop.permute.xlu0 %1602
    %v1605 = vmul.f32 %v1600, %v1603
    %v1606 = vmul.f32 %v1587, %v1397
    %v1607 = vadd.f32 %v1605, %v1606
    %v1608 = vld [vmem:[#allocation3 + $0x10] sm:$0xff]
    %v1609 = vsel %vm444, %v1505, 0
    %1611 = vmatprep.subr.mxu0 0.0
    %1612 = vmatpush1.msra.mxu0 %v423
    %1613 = vmatprep.subr.mxu0 0.0
    %1614 = vmatpush1.msra.mxu0 %v424
    %1615 = vmatprep.subr.mxu0 0.0
    %1616 = vmatpush1.msra.mxu0 %v425
    %1617 = vmatprep.subr.mxu0 0.0
    %1618 = vmatpush1.msra.mxu0 %v426
    %1619 = vmatprep.subr.mxu0 0.0
    %1620 = vmatpush1.msra.mxu0 0.0
    %1621 = vmatprep.subr.mxu0 0.0
    %1622 = vmatpush1.msra.mxu0 0.0
    %1623 = vmatprep.subr.mxu0 0.0
    %1624 = vmatpush1.msra.mxu0 0.0
    %1625 = vmatprep.subr.mxu0 0.0
    %1626 = vmatpush1.msra.mxu0 0.0
    %1627 = vmatprep.subr.mxu0 0.0
    %1628 = vmatpush1.msra.mxu0 0.0
    %1629 = vmatprep.subr.mxu0 0.0
    %1630 = vmatpush1.msra.mxu0 0.0
    %1631 = vmatprep.subr.mxu0 0.0
    %1632 = vmatpush1.msra.mxu0 0.0
    %1633 = vmatprep.subr.mxu0 0.0
    %1634 = vmatpush1.msra.mxu0 0.0
    %1635 = vmatprep.subr.mxu0 0.0
    %1636 = vmatpush1.msra.mxu0 0.0
    %1637 = vmatprep.subr.mxu0 0.0
    %1638 = vmatpush1.msra.mxu0 0.0
    %1639 = vmatprep.subr.mxu0 0.0
    %1640 = vmatpush1.msra.mxu0 0.0
    %1641 = vmatprep.subr.mxu0 0.0
    %1642 = vmatpush1.msra.mxu0 0.0
    %1643 = vmatprep.subr.mxu0 0.0
    %1644 = vmatpush1.msra.mxu0 0.0
    %1645 = vmatprep.subr.mxu0 0.0
    %1646 = vmatpush1.msra.mxu0 0.0
    %1647 = vmatprep.subr.mxu0 0.0
    %1648 = vmatpush1.msra.mxu0 0.0
    %1649 = vmatprep.subr.mxu0 0.0
    %1650 = vmatpush1.msra.mxu0 0.0
    %1651 = vmatprep.subr.mxu0 0.0
    %1652 = vmatpush1.msra.mxu0 0.0
    %1653 = vmatprep.subr.mxu0 0.0
    %1654 = vmatpush1.msra.mxu0 0.0
    %1655 = vmatprep.subr.mxu0 0.0
    %1656 = vmatpush1.msra.mxu0 0.0
    %1657 = vmatprep.subr.mxu0 0.0
    %1658 = vmatpush1.msra.mxu0 0.0
    %1659 = vmatprep.subr.mxu0 0.0
    %1660 = vmatpush1.msra.mxu0 0.0
    %1661 = vmatprep.subr.mxu0 0.0
    %1662 = vmatpush1.msra.mxu0 0.0
    %1663 = vmatprep.subr.mxu0 0.0
    %1664 = vmatpush1.msra.mxu0 0.0
    %1665 = vmatprep.subr.mxu0 0.0
    %1666 = vmatpush1.msra.mxu0 0.0
    %1667 = vmatprep.subr.mxu0 0.0
    %1668 = vmatpush1.msra.mxu0 0.0
    %1669 = vmatprep.subr.mxu0 0.0
    %1670 = vmatpush1.msra.mxu0 0.0
    %1671 = vmatprep.subr.mxu0 0.0
    %1672 = vmatpush1.msra.mxu0 0.0
    %1673 = vmatprep.subr.mxu0 0.0
    %1674 = vmatpush1.msra.mxu0 0.0
    %1675 = vmatprep.mubr.f32.mxu0 0.0
    %1676 = vmatmul.mubr.f32.gmra.mrb[0].mxu0 %v1609
    %v1677 = vpop.f32.mrb[0].mxu0
    %v1678 = vadd.f32 0.0, %v1677
    %v1679 = vpop.f32.mrb[0].mxu0
    %1680 = vdwg.mxu0
    %v1681 = vadd.f32 %v1608, %v1678
    %v1682 = vxor.u32 %v1681, 2147483648
    %v1683 = vmul.f32 %v1682, 1.442695
    %v1684 = vpow.pop %v1683
    %v1685 = vadd.f32 %v1684, 1.0
    %v1686 = vrcp.pop %v1685
    %v1687 = vmul.f32 1.0, %v1686
    %v1688 = vadd.f32 %v1678, %v633
    %1690 = vrot.lane.b32.xlu0 %v1688, 64
    %v1691 = vpop.permute.xlu0 %1690
    %v1693 = vmul.f32 %v1687, %v1691
    %1695 = vrot.lane.b32.xlu0 %v1693, 64
    %v1696 = vpop.permute.xlu0 %1695
    %v1698 = vadd.f32 %v1608, %v1696
    %v1699 = vtanh.pop %v1698
    %v1700 = vsub.f32 1.0, %v1687
    %1702 = vrot.lane.b32.xlu0 %v1699, 96
    %v1703 = vpop.permute.xlu0 %1702
    %v1705 = vmul.f32 %v1700, %v1703
    %v1706 = vmul.f32 %v1687, %v1497
    %v1707 = vadd.f32 %v1705, %v1706
    %1709 = vrot.lane.b32.xlu0 %v1607, 96
    %v1710 = vpop.permute.xlu0 %1709
    %1712 = vst.msk [vmem:[#allocation4 + $0x28] sm:$0xff] %vm444, %v1710
    %1714 = vrot.lane.b32.xlu0 %v1707, 96
    %v1715 = vpop.permute.xlu0 %1714
    %1717 = vst.msk [vmem:[#allocation5 + $0x10] sm:$0xff] %vm444, %v1715
    %v1718 = vld [vmem:[#allocation2 + $0x30] sm:$0xff]
    %v1719 = vsel %vm444, %v1710, 0
    %1721 = vmatprep.subr.mxu0 0.0
    %1722 = vmatpush1.msra.mxu0 %v418
    %1723 = vmatprep.subr.mxu0 0.0
    %1724 = vmatpush1.msra.mxu0 %v419
    %1725 = vmatprep.subr.mxu0 0.0
    %1726 = vmatpush1.msra.mxu0 %v420
    %1727 = vmatprep.subr.mxu0 0.0
    %1728 = vmatpush1.msra.mxu0 %v421
    %1729 = vmatprep.subr.mxu0 0.0
    %1730 = vmatpush1.msra.mxu0 0.0
    %1731 = vmatprep.subr.mxu0 0.0
    %1732 = vmatpush1.msra.mxu0 0.0
    %1733 = vmatprep.subr.mxu0 0.0
    %1734 = vmatpush1.msra.mxu0 0.0
    %1735 = vmatprep.subr.mxu0 0.0
    %1736 = vmatpush1.msra.mxu0 0.0
    %1737 = vmatprep.subr.mxu0 0.0
    %1738 = vmatpush1.msra.mxu0 0.0
    %1739 = vmatprep.subr.mxu0 0.0
    %1740 = vmatpush1.msra.mxu0 0.0
    %1741 = vmatprep.subr.mxu0 0.0
    %1742 = vmatpush1.msra.mxu0 0.0
    %1743 = vmatprep.subr.mxu0 0.0
    %1744 = vmatpush1.msra.mxu0 0.0
    %1745 = vmatprep.subr.mxu0 0.0
    %1746 = vmatpush1.msra.mxu0 0.0
    %1747 = vmatprep.subr.mxu0 0.0
    %1748 = vmatpush1.msra.mxu0 0.0
    %1749 = vmatprep.subr.mxu0 0.0
    %1750 = vmatpush1.msra.mxu0 0.0
    %1751 = vmatprep.subr.mxu0 0.0
    %1752 = vmatpush1.msra.mxu0 0.0
    %1753 = vmatprep.subr.mxu0 0.0
    %1754 = vmatpush1.msra.mxu0 0.0
    %1755 = vmatprep.subr.mxu0 0.0
    %1756 = vmatpush1.msra.mxu0 0.0
    %1757 = vmatprep.subr.mxu0 0.0
    %1758 = vmatpush1.msra.mxu0 0.0
    %1759 = vmatprep.subr.mxu0 0.0
    %1760 = vmatpush1.msra.mxu0 0.0
    %1761 = vmatprep.subr.mxu0 0.0
    %1762 = vmatpush1.msra.mxu0 0.0
    %1763 = vmatprep.subr.mxu0 0.0
    %1764 = vmatpush1.msra.mxu0 0.0
    %1765 = vmatprep.subr.mxu0 0.0
    %1766 = vmatpush1.msra.mxu0 0.0
    %1767 = vmatprep.subr.mxu0 0.0
    %1768 = vmatpush1.msra.mxu0 0.0
    %1769 = vmatprep.subr.mxu0 0.0
    %1770 = vmatpush1.msra.mxu0 0.0
    %1771 = vmatprep.subr.mxu0 0.0
    %1772 = vmatpush1.msra.mxu0 0.0
    %1773 = vmatprep.subr.mxu0 0.0
    %1774 = vmatpush1.msra.mxu0 0.0
    %1775 = vmatprep.subr.mxu0 0.0
    %1776 = vmatpush1.msra.mxu0 0.0
    %1777 = vmatprep.subr.mxu0 0.0
    %1778 = vmatpush1.msra.mxu0 0.0
    %1779 = vmatprep.subr.mxu0 0.0
    %1780 = vmatpush1.msra.mxu0 0.0
    %1781 = vmatprep.subr.mxu0 0.0
    %1782 = vmatpush1.msra.mxu0 0.0
    %1783 = vmatprep.subr.mxu0 0.0
    %1784 = vmatpush1.msra.mxu0 0.0
    %1785 = vmatprep.mubr.f32.mxu0 0.0
    %1786 = vmatmul.mubr.f32.gmra.mrb[0].mxu0 %v1719
    %v1787 = vpop.f32.mrb[0].mxu0
    %v1788 = vadd.f32 0.0, %v1787
    %v1789 = vpop.f32.mrb[0].mxu0
    %1790 = vdwg.mxu0
    %v1791 = vadd.f32 %v1718, %v1788
    %v1792 = vxor.u32 %v1791, 2147483648
    %v1793 = vmul.f32 %v1792, 1.442695
    %v1794 = vpow.pop %v1793
    %v1795 = vadd.f32 %v1794, 1.0
    %v1796 = vrcp.pop %v1795
    %v1797 = vmul.f32 1.0, %v1796
    %v1798 = vadd.f32 %v1788, %v526
    %1800 = vrot.lane.b32.xlu0 %v1798, 64
    %v1801 = vpop.permute.xlu0 %1800
    %v1803 = vmul.f32 %v1797, %v1801
    %1805 = vrot.lane.b32.xlu0 %v1803, 64
    %v1806 = vpop.permute.xlu0 %1805
    %v1808 = vadd.f32 %v1718, %v1806
    %v1809 = vtanh.pop %v1808
    %v1810 = vsub.f32 1.0, %v1797
    %1812 = vrot.lane.b32.xlu0 %v1809, 96
    %v1813 = vpop.permute.xlu0 %1812
    %v1815 = vmul.f32 %v1810, %v1813
    %v1816 = vmul.f32 %v1797, %v1607
    %v1817 = vadd.f32 %v1815, %v1816
    %v1818 = vld [vmem:[#allocation3 + $0x8] sm:$0xff]
    %v1819 = vsel %vm444, %v1715, 0
    %1821 = vmatprep.subr.mxu0 0.0
    %1822 = vmatpush1.msra.mxu0 %v423
    %1823 = vmatprep.subr.mxu0 0.0
    %1824 = vmatpush1.msra.mxu0 %v424
    %1825 = vmatprep.subr.mxu0 0.0
    %1826 = vmatpush1.msra.mxu0 %v425
    %1827 = vmatprep.subr.mxu0 0.0
    %1828 = vmatpush1.msra.mxu0 %v426
    %1829 = vmatprep.subr.mxu0 0.0
    %1830 = vmatpush1.msra.mxu0 0.0
    %1831 = vmatprep.subr.mxu0 0.0
    %1832 = vmatpush1.msra.mxu0 0.0
    %1833 = vmatprep.subr.mxu0 0.0
    %1834 = vmatpush1.msra.mxu0 0.0
    %1835 = vmatprep.subr.mxu0 0.0
    %1836 = vmatpush1.msra.mxu0 0.0
    %1837 = vmatprep.subr.mxu0 0.0
    %1838 = vmatpush1.msra.mxu0 0.0
    %1839 = vmatprep.subr.mxu0 0.0
    %1840 = vmatpush1.msra.mxu0 0.0
    %1841 = vmatprep.subr.mxu0 0.0
    %1842 = vmatpush1.msra.mxu0 0.0
    %1843 = vmatprep.subr.mxu0 0.0
    %1844 = vmatpush1.msra.mxu0 0.0
    %1845 = vmatprep.subr.mxu0 0.0
    %1846 = vmatpush1.msra.mxu0 0.0
    %1847 = vmatprep.subr.mxu0 0.0
    %1848 = vmatpush1.msra.mxu0 0.0
    %1849 = vmatprep.subr.mxu0 0.0
    %1850 = vmatpush1.msra.mxu0 0.0
    %1851 = vmatprep.subr.mxu0 0.0
    %1852 = vmatpush1.msra.mxu0 0.0
    %1853 = vmatprep.subr.mxu0 0.0
    %1854 = vmatpush1.msra.mxu0 0.0
    %1855 = vmatprep.subr.mxu0 0.0
    %1856 = vmatpush1.msra.mxu0 0.0
    %1857 = vmatprep.subr.mxu0 0.0
    %1858 = vmatpush1.msra.mxu0 0.0
    %1859 = vmatprep.subr.mxu0 0.0
    %1860 = vmatpush1.msra.mxu0 0.0
    %1861 = vmatprep.subr.mxu0 0.0
    %1862 = vmatpush1.msra.mxu0 0.0
    %1863 = vmatprep.subr.mxu0 0.0
    %1864 = vmatpush1.msra.mxu0 0.0
    %1865 = vmatprep.subr.mxu0 0.0
    %1866 = vmatpush1.msra.mxu0 0.0
    %1867 = vmatprep.subr.mxu0 0.0
    %1868 = vmatpush1.msra.mxu0 0.0
    %1869 = vmatprep.subr.mxu0 0.0
    %1870 = vmatpush1.msra.mxu0 0.0
    %1871 = vmatprep.subr.mxu0 0.0
    %1872 = vmatpush1.msra.mxu0 0.0
    %1873 = vmatprep.subr.mxu0 0.0
    %1874 = vmatpush1.msra.mxu0 0.0
    %1875 = vmatprep.subr.mxu0 0.0
    %1876 = vmatpush1.msra.mxu0 0.0
    %1877 = vmatprep.subr.mxu0 0.0
    %1878 = vmatpush1.msra.mxu0 0.0
    %1879 = vmatprep.subr.mxu0 0.0
    %1880 = vmatpush1.msra.mxu0 0.0
    %1881 = vmatprep.subr.mxu0 0.0
    %1882 = vmatpush1.msra.mxu0 0.0
    %1883 = vmatprep.subr.mxu0 0.0
    %1884 = vmatpush1.msra.mxu0 0.0
    %1885 = vmatprep.mubr.f32.mxu0 0.0
    %1886 = vmatmul.mubr.f32.gmra.mrb[0].mxu0 %v1819
    %v1887 = vpop.f32.mrb[0].mxu0
    %v1888 = vadd.f32 0.0, %v1887
    %v1889 = vpop.f32.mrb[0].mxu0
    %1890 = vdwg.mxu0
    %v1891 = vadd.f32 %v1818, %v1888
    %v1892 = vxor.u32 %v1891, 2147483648
    %v1893 = vmul.f32 %v1892, 1.442695
    %v1894 = vpow.pop %v1893
    %v1895 = vadd.f32 %v1894, 1.0
    %v1896 = vrcp.pop %v1895
    %v1897 = vmul.f32 1.0, %v1896
    %v1898 = vadd.f32 %v1888, %v633
    %1900 = vrot.lane.b32.xlu0 %v1898, 64
    %v1901 = vpop.permute.xlu0 %1900
    %v1903 = vmul.f32 %v1897, %v1901
    %1905 = vrot.lane.b32.xlu0 %v1903, 64
    %v1906 = vpop.permute.xlu0 %1905
    %v1908 = vadd.f32 %v1818, %v1906
    %v1909 = vtanh.pop %v1908
    %v1910 = vsub.f32 1.0, %v1897
    %1912 = vrot.lane.b32.xlu0 %v1909, 96
    %v1913 = vpop.permute.xlu0 %1912
    %v1915 = vmul.f32 %v1910, %v1913
    %v1916 = vmul.f32 %v1897, %v1707
    %v1917 = vadd.f32 %v1915, %v1916
    %1919 = vrot.lane.b32.xlu0 %v1817, 96
    %v1920 = vpop.permute.xlu0 %1919
    %1922 = vst.msk [vmem:[#allocation4 + $0x30] sm:$0xff] %vm444, %v1920
    %1924 = vrot.lane.b32.xlu0 %v1917, 96
    %v1925 = vpop.permute.xlu0 %1924
    %1927 = vst.msk [vmem:[#allocation5 + $0x8] sm:$0xff] %vm444, %v1925
    %v1928 = vld [vmem:[#allocation2 + $0x38] sm:$0xff]
    %v1929 = vsel %vm444, %v1920, 0
    %1931 = vmatprep.subr.mxu0 0.0
    %1932 = vmatpush1.msra.mxu0 %v418
    %1933 = vmatprep.subr.mxu0 0.0
    %1934 = vmatpush1.msra.mxu0 %v419
    %1935 = vmatprep.subr.mxu0 0.0
    %1936 = vmatpush1.msra.mxu0 %v420
    %1937 = vmatprep.subr.mxu0 0.0
    %1938 = vmatpush1.msra.mxu0 %v421
    %1939 = vmatprep.subr.mxu0 0.0
    %1940 = vmatpush1.msra.mxu0 0.0
    %1941 = vmatprep.subr.mxu0 0.0
    %1942 = vmatpush1.msra.mxu0 0.0
    %1943 = vmatprep.subr.mxu0 0.0
    %1944 = vmatpush1.msra.mxu0 0.0
    %1945 = vmatprep.subr.mxu0 0.0
    %1946 = vmatpush1.msra.mxu0 0.0
    %1947 = vmatprep.subr.mxu0 0.0
    %1948 = vmatpush1.msra.mxu0 0.0
    %1949 = vmatprep.subr.mxu0 0.0
    %1950 = vmatpush1.msra.mxu0 0.0
    %1951 = vmatprep.subr.mxu0 0.0
    %1952 = vmatpush1.msra.mxu0 0.0
    %1953 = vmatprep.subr.mxu0 0.0
    %1954 = vmatpush1.msra.mxu0 0.0
    %1955 = vmatprep.subr.mxu0 0.0
    %1956 = vmatpush1.msra.mxu0 0.0
    %1957 = vmatprep.subr.mxu0 0.0
    %1958 = vmatpush1.msra.mxu0 0.0
    %1959 = vmatprep.subr.mxu0 0.0
    %1960 = vmatpush1.msra.mxu0 0.0
    %1961 = vmatprep.subr.mxu0 0.0
    %1962 = vmatpush1.msra.mxu0 0.0
    %1963 = vmatprep.subr.mxu0 0.0
    %1964 = vmatpush1.msra.mxu0 0.0
    %1965 = vmatprep.subr.mxu0 0.0
    %1966 = vmatpush1.msra.mxu0 0.0
    %1967 = vmatprep.subr.mxu0 0.0
    %1968 = vmatpush1.msra.mxu0 0.0
    %1969 = vmatprep.subr.mxu0 0.0
    %1970 = vmatpush1.msra.mxu0 0.0
    %1971 = vmatprep.subr.mxu0 0.0
    %1972 = vmatpush1.msra.mxu0 0.0
    %1973 = vmatprep.subr.mxu0 0.0
    %1974 = vmatpush1.msra.mxu0 0.0
    %1975 = vmatprep.subr.mxu0 0.0
    %1976 = vmatpush1.msra.mxu0 0.0
    %1977 = vmatprep.subr.mxu0 0.0
    %1978 = vmatpush1.msra.mxu0 0.0
    %1979 = vmatprep.subr.mxu0 0.0
    %1980 = vmatpush1.msra.mxu0 0.0
    %1981 = vmatprep.subr.mxu0 0.0
    %1982 = vmatpush1.msra.mxu0 0.0
    %1983 = vmatprep.subr.mxu0 0.0
    %1984 = vmatpush1.msra.mxu0 0.0
    %1985 = vmatprep.subr.mxu0 0.0
    %1986 = vmatpush1.msra.mxu0 0.0
    %1987 = vmatprep.subr.mxu0 0.0
    %1988 = vmatpush1.msra.mxu0 0.0
    %1989 = vmatprep.subr.mxu0 0.0
    %1990 = vmatpush1.msra.mxu0 0.0
    %1991 = vmatprep.subr.mxu0 0.0
    %1992 = vmatpush1.msra.mxu0 0.0
    %1993 = vmatprep.subr.mxu0 0.0
    %1994 = vmatpush1.msra.mxu0 0.0
    %1995 = vmatprep.mubr.f32.mxu0 0.0
    %1996 = vmatmul.mubr.f32.gmra.mrb[0].mxu0 %v1929
    %v1997 = vpop.f32.mrb[0].mxu0
    %v1998 = vadd.f32 0.0, %v1997
    %v1999 = vpop.f32.mrb[0].mxu0
    %2000 = vdwg.mxu0
    %v2001 = vadd.f32 %v1928, %v1998
    %v2002 = vxor.u32 %v2001, 2147483648
    %v2003 = vmul.f32 %v2002, 1.442695
    %v2004 = vpow.pop %v2003
    %v2005 = vadd.f32 %v2004, 1.0
    %v2006 = vrcp.pop %v2005
    %v2007 = vmul.f32 1.0, %v2006
    %v2008 = vadd.f32 %v1998, %v526
    %2010 = vrot.lane.b32.xlu0 %v2008, 64
    %v2011 = vpop.permute.xlu0 %2010
    %v2013 = vmul.f32 %v2007, %v2011
    %2015 = vrot.lane.b32.xlu0 %v2013, 64
    %v2016 = vpop.permute.xlu0 %2015
    %v2018 = vadd.f32 %v1928, %v2016
    %v2019 = vtanh.pop %v2018
    %v2020 = vsub.f32 1.0, %v2007
    %2022 = vrot.lane.b32.xlu0 %v2019, 96
    %v2023 = vpop.permute.xlu0 %2022
    %v2025 = vmul.f32 %v2020, %v2023
    %v2026 = vmul.f32 %v2007, %v1817
    %v2027 = vadd.f32 %v2025, %v2026
    %v2028 = vld [vmem:[#allocation3] sm:$0xff]
    %v2029 = vsel %vm444, %v1925, 0
    %2031 = vmatprep.subr.mxu0 0.0
    %2032 = vmatpush1.msra.mxu0 %v423
    %2033 = vmatprep.subr.mxu0 0.0
    %2034 = vmatpush1.msra.mxu0 %v424
    %2035 = vmatprep.subr.mxu0 0.0
    %2036 = vmatpush1.msra.mxu0 %v425
    %2037 = vmatprep.subr.mxu0 0.0
    %2038 = vmatpush1.msra.mxu0 %v426
    %2039 = vmatprep.subr.mxu0 0.0
    %2040 = vmatpush1.msra.mxu0 0.0
    %2041 = vmatprep.subr.mxu0 0.0
    %2042 = vmatpush1.msra.mxu0 0.0
    %2043 = vmatprep.subr.mxu0 0.0
    %2044 = vmatpush1.msra.mxu0 0.0
    %2045 = vmatprep.subr.mxu0 0.0
    %2046 = vmatpush1.msra.mxu0 0.0
    %2047 = vmatprep.subr.mxu0 0.0
    %2048 = vmatpush1.msra.mxu0 0.0
    %2049 = vmatprep.subr.mxu0 0.0
    %2050 = vmatpush1.msra.mxu0 0.0
    %2051 = vmatprep.subr.mxu0 0.0
    %2052 = vmatpush1.msra.mxu0 0.0
    %2053 = vmatprep.subr.mxu0 0.0
    %2054 = vmatpush1.msra.mxu0 0.0
    %2055 = vmatprep.subr.mxu0 0.0
    %2056 = vmatpush1.msra.mxu0 0.0
    %2057 = vmatprep.subr.mxu0 0.0
    %2058 = vmatpush1.msra.mxu0 0.0
    %2059 = vmatprep.subr.mxu0 0.0
    %2060 = vmatpush1.msra.mxu0 0.0
    %2061 = vmatprep.subr.mxu0 0.0
    %2062 = vmatpush1.msra.mxu0 0.0
    %2063 = vmatprep.subr.mxu0 0.0
    %2064 = vmatpush1.msra.mxu0 0.0
    %2065 = vmatprep.subr.mxu0 0.0
    %2066 = vmatpush1.msra.mxu0 0.0
    %2067 = vmatprep.subr.mxu0 0.0
    %2068 = vmatpush1.msra.mxu0 0.0
    %2069 = vmatprep.subr.mxu0 0.0
    %2070 = vmatpush1.msra.mxu0 0.0
    %2071 = vmatprep.subr.mxu0 0.0
    %2072 = vmatpush1.msra.mxu0 0.0
    %2073 = vmatprep.subr.mxu0 0.0
    %2074 = vmatpush1.msra.mxu0 0.0
    %2075 = vmatprep.subr.mxu0 0.0
    %2076 = vmatpush1.msra.mxu0 0.0
    %2077 = vmatprep.subr.mxu0 0.0
    %2078 = vmatpush1.msra.mxu0 0.0
    %2079 = vmatprep.subr.mxu0 0.0
    %2080 = vmatpush1.msra.mxu0 0.0
    %2081 = vmatprep.subr.mxu0 0.0
    %2082 = vmatpush1.msra.mxu0 0.0
    %2083 = vmatprep.subr.mxu0 0.0
    %2084 = vmatpush1.msra.mxu0 0.0
    %2085 = vmatprep.subr.mxu0 0.0
    %2086 = vmatpush1.msra.mxu0 0.0
    %2087 = vmatprep.subr.mxu0 0.0
    %2088 = vmatpush1.msra.mxu0 0.0
    %2089 = vmatprep.subr.mxu0 0.0
    %2090 = vmatpush1.msra.mxu0 0.0
    %2091 = vmatprep.subr.mxu0 0.0
    %2092 = vmatpush1.msra.mxu0 0.0
    %2093 = vmatprep.subr.mxu0 0.0
    %2094 = vmatpush1.msra.mxu0 0.0
    %2095 = vmatprep.mubr.f32.mxu0 0.0
    %2096 = vmatmul.mubr.f32.gmra.mrb[0].mxu0 %v2029
    %v2097 = vpop.f32.mrb[0].mxu0
    %v2098 = vadd.f32 0.0, %v2097
    %v2099 = vpop.f32.mrb[0].mxu0
    %2100 = vdwg.mxu0
    %v2101 = vadd.f32 %v2028, %v2098
    %v2102 = vxor.u32 %v2101, 2147483648
    %v2103 = vmul.f32 %v2102, 1.442695
    %v2104 = vpow.pop %v2103
    %v2105 = vadd.f32 %v2104, 1.0
    %v2106 = vrcp.pop %v2105
    %v2107 = vmul.f32 1.0, %v2106
    %v2108 = vadd.f32 %v2098, %v633
    %2110 = vrot.lane.b32.xlu0 %v2108, 64
    %v2111 = vpop.permute.xlu0 %2110
    %v2113 = vmul.f32 %v2107, %v2111
    %2115 = vrot.lane.b32.xlu0 %v2113, 64
    %v2116 = vpop.permute.xlu0 %2115
    %v2118 = vadd.f32 %v2028, %v2116
    %v2119 = vtanh.pop %v2118
    %v2120 = vsub.f32 1.0, %v2107
    %2122 = vrot.lane.b32.xlu0 %v2119, 96
    %v2123 = vpop.permute.xlu0 %2122
    %v2125 = vmul.f32 %v2120, %v2123
    %v2126 = vmul.f32 %v2107, %v1917
    %v2127 = vadd.f32 %v2125, %v2126
    %2129 = vrot.lane.b32.xlu0 %v2027, 96
    %v2130 = vpop.permute.xlu0 %2129
    %2132 = vst.msk [vmem:[#allocation4 + $0x38] sm:$0xff] %vm444, %v2130
    %2134 = vrot.lane.b32.xlu0 %v2127, 96
    %v2135 = vpop.permute.xlu0 %2134
    %2137 = vst.msk [vmem:[#allocation5] sm:$0xff] %vm444, %v2135
    %v2138 = vld [vmem:[#allocation4] sm:$0xff]
    %v2139 = vld [vmem:[#allocation4 + $0x8] sm:$0xff]
    %v2140 = vld [vmem:[#allocation4 + $0x10] sm:$0xff]
    %v2141 = vld [vmem:[#allocation4 + $0x18] sm:$0xff]
    %v2142 = vld [vmem:[#allocation4 + $0x20] sm:$0xff]
    %v2143 = vld [vmem:[#allocation4 + $0x28] sm:$0xff]
    %v2144 = vld [vmem:[#allocation4 + $0x30] sm:$0xff]
    %v2145 = vld [vmem:[#allocation4 + $0x38] sm:$0xff]
    %v2146 = vld [vmem:[#allocation5] sm:$0xff]
    %v2147 = vld [vmem:[#allocation5 + $0x8] sm:$0xff]
    %v2148 = vld [vmem:[#allocation5 + $0x10] sm:$0xff]
    %v2149 = vld [vmem:[#allocation5 + $0x18] sm:$0xff]
    %v2150 = vld [vmem:[#allocation5 + $0x20] sm:$0xff]
    %v2151 = vld [vmem:[#allocation5 + $0x28] sm:$0xff]
    %v2152 = vld [vmem:[#allocation5 + $0x30] sm:$0xff]
    %v2153 = vld [vmem:[#allocation5 + $0x38] sm:$0xff]
    %v2154 = vld [vmem:[#allocation10] sm:$0xff]
    %v2155 = vld [vmem:[#allocation10 + $0x8] sm:$0xff]
    %v2156 = vld [vmem:[#allocation10 + $0x10] sm:$0xff]
    %v2157 = vld [vmem:[#allocation10 + $0x18] sm:$0xff]
    %v2158 = vld [vmem:[#allocation12] sm:$0xff]
    %v2159 = vld [vmem:[#allocation12 + $0x8] sm:$0xff]
    %v2160 = vld [vmem:[#allocation12 + $0x10] sm:$0xff]
    %v2161 = vld [vmem:[#allocation12 + $0x18] sm:$0xff]
    %v2163 = vsel %vm444, %v2146, 0
    %v2166 = vsel %vm444, %v2147, 0
    %v2169 = vsel %vm444, %v2148, 0
    %v2172 = vsel %vm444, %v2149, 0
    %v2175 = vsel %vm444, %v2150, 0
    %v2178 = vsel %vm444, %v2151, 0
    %v2181 = vsel %vm444, %v2152, 0
    %v2184 = vsel %vm444, %v2153, 0
    %2186 = vmatprep.subr.mxu0 0.0
    %2187 = vmatpush1.msra.mxu0 %v2158
    %2188 = vmatprep.subr.mxu0 0.0
    %2189 = vmatpush1.msra.mxu0 %v2159
    %2190 = vmatprep.subr.mxu0 0.0
    %2191 = vmatpush1.msra.mxu0 %v2160
    %2192 = vmatprep.subr.mxu0 0.0
    %2193 = vmatpush1.msra.mxu0 %v2161
    %2194 = vmatprep.subr.mxu0 0.0
    %2195 = vmatpush1.msra.mxu0 0.0
    %2196 = vmatprep.subr.mxu0 0.0
    %2197 = vmatpush1.msra.mxu0 0.0
    %2198 = vmatprep.subr.mxu0 0.0
    %2199 = vmatpush1.msra.mxu0 0.0
    %2200 = vmatprep.subr.mxu0 0.0
    %2201 = vmatpush1.msra.mxu0 0.0
    %2202 = vmatprep.subr.mxu0 0.0
    %2203 = vmatpush1.msra.mxu0 0.0
    %2204 = vmatprep.subr.mxu0 0.0
    %2205 = vmatpush1.msra.mxu0 0.0
    %2206 = vmatprep.subr.mxu0 0.0
    %2207 = vmatpush1.msra.mxu0 0.0
    %2208 = vmatprep.subr.mxu0 0.0
    %2209 = vmatpush1.msra.mxu0 0.0
    %2210 = vmatprep.subr.mxu0 0.0
    %2211 = vmatpush1.msra.mxu0 0.0
    %2212 = vmatprep.subr.mxu0 0.0
    %2213 = vmatpush1.msra.mxu0 0.0
    %2214 = vmatprep.subr.mxu0 0.0
    %2215 = vmatpush1.msra.mxu0 0.0
    %2216 = vmatprep.subr.mxu0 0.0
    %2217 = vmatpush1.msra.mxu0 0.0
    %2218 = vmatprep.subr.mxu0 0.0
    %2219 = vmatpush1.msra.mxu0 0.0
    %2220 = vmatprep.subr.mxu0 0.0
    %2221 = vmatpush1.msra.mxu0 0.0
    %2222 = vmatprep.subr.mxu0 0.0
    %2223 = vmatpush1.msra.mxu0 0.0
    %2224 = vmatprep.subr.mxu0 0.0
    %2225 = vmatpush1.msra.mxu0 0.0
    %2226 = vmatprep.subr.mxu0 0.0
    %2227 = vmatpush1.msra.mxu0 0.0
    %2228 = vmatprep.subr.mxu0 0.0
    %2229 = vmatpush1.msra.mxu0 0.0
    %2230 = vmatprep.subr.mxu0 0.0
    %2231 = vmatpush1.msra.mxu0 0.0
    %2232 = vmatprep.subr.mxu0 0.0
    %2233 = vmatpush1.msra.mxu0 0.0
    %2234 = vmatprep.subr.mxu0 0.0
    %2235 = vmatpush1.msra.mxu0 0.0
    %2236 = vmatprep.subr.mxu0 0.0
    %2237 = vmatpush1.msra.mxu0 0.0
    %2238 = vmatprep.subr.mxu0 0.0
    %2239 = vmatpush1.msra.mxu0 0.0
    %2240 = vmatprep.subr.mxu0 0.0
    %2241 = vmatpush1.msra.mxu0 0.0
    %2242 = vmatprep.subr.mxu0 0.0
    %2243 = vmatpush1.msra.mxu0 0.0
    %2244 = vmatprep.subr.mxu0 0.0
    %2245 = vmatpush1.msra.mxu0 0.0
    %2246 = vmatprep.subr.mxu0 0.0
    %2247 = vmatpush1.msra.mxu0 0.0
    %2248 = vmatprep.subr.mxu0 0.0
    %2249 = vmatpush1.msra.mxu0 0.0
    %2250 = vmatprep.mubr.f32.mxu0 0.0
    %2251 = vmatmul.mubr.f32.gmra.mrb[0].mxu0 %v2163
    %v2252 = vpop.f32.mrb[0].mxu0
    %v2253 = vadd.f32 0.0, %v2252
    %v2254 = vpop.f32.mrb[0].mxu0
    %2255 = vmatprep.mubr.f32.mxu0 0.0
    %2256 = vmatmul.mubr.f32.gmra.mrb[0].mxu0 %v2166
    %v2257 = vpop.f32.mrb[0].mxu0
    %v2258 = vadd.f32 0.0, %v2257
    %v2259 = vpop.f32.mrb[0].mxu0
    %2260 = vmatprep.mubr.f32.mxu0 0.0
    %2261 = vmatmul.mubr.f32.gmra.mrb[0].mxu0 %v2169
    %v2262 = vpop.f32.mrb[0].mxu0
    %v2263 = vadd.f32 0.0, %v2262
    %v2264 = vpop.f32.mrb[0].mxu0
    %2265 = vmatprep.mubr.f32.mxu0 0.0
    %2266 = vmatmul.mubr.f32.gmra.mrb[0].mxu0 %v2172
    %v2267 = vpop.f32.mrb[0].mxu0
    %v2268 = vadd.f32 0.0, %v2267
    %v2269 = vpop.f32.mrb[0].mxu0
    %2270 = vmatprep.mubr.f32.mxu0 0.0
    %2271 = vmatmul.mubr.f32.gmra.mrb[0].mxu0 %v2175
    %v2272 = vpop.f32.mrb[0].mxu0
    %v2273 = vadd.f32 0.0, %v2272
    %v2274 = vpop.f32.mrb[0].mxu0
    %2275 = vmatprep.mubr.f32.mxu0 0.0
    %2276 = vmatmul.mubr.f32.gmra.mrb[0].mxu0 %v2178
    %v2277 = vpop.f32.mrb[0].mxu0
    %v2278 = vadd.f32 0.0, %v2277
    %v2279 = vpop.f32.mrb[0].mxu0
    %2280 = vmatprep.mubr.f32.mxu0 0.0
    %2281 = vmatmul.mubr.f32.gmra.mrb[0].mxu0 %v2181
    %v2282 = vpop.f32.mrb[0].mxu0
    %v2283 = vadd.f32 0.0, %v2282
    %v2284 = vpop.f32.mrb[0].mxu0
    %2285 = vmatprep.mubr.f32.mxu0 0.0
    %2286 = vmatmul.mubr.f32.gmra.mrb[0].mxu0 %v2184
    %v2287 = vpop.f32.mrb[0].mxu0
    %v2288 = vadd.f32 0.0, %v2287
    %v2289 = vpop.f32.mrb[0].mxu0
    %2290 = vdwg.mxu0
    %v2292 = vsel %vm444, %v2138, 0
    %v2295 = vsel %vm444, %v2139, 0
    %v2298 = vsel %vm444, %v2140, 0
    %v2301 = vsel %vm444, %v2141, 0
    %v2304 = vsel %vm444, %v2142, 0
    %v2307 = vsel %vm444, %v2143, 0
    %v2310 = vsel %vm444, %v2144, 0
    %v2313 = vsel %vm444, %v2145, 0
    %2315 = vmatprep.subr.mxu0 0.0
    %2316 = vmatpush1.msra.mxu0 %v2154
    %2317 = vmatprep.subr.mxu0 0.0
    %2318 = vmatpush1.msra.mxu0 %v2155
    %2319 = vmatprep.subr.mxu0 0.0
    %2320 = vmatpush1.msra.mxu0 %v2156
    %2321 = vmatprep.subr.mxu0 0.0
    %2322 = vmatpush1.msra.mxu0 %v2157
    %2323 = vmatprep.subr.mxu0 0.0
    %2324 = vmatpush1.msra.mxu0 0.0
    %2325 = vmatprep.subr.mxu0 0.0
    %2326 = vmatpush1.msra.mxu0 0.0
    %2327 = vmatprep.subr.mxu0 0.0
    %2328 = vmatpush1.msra.mxu0 0.0
    %2329 = vmatprep.subr.mxu0 0.0
    %2330 = vmatpush1.msra.mxu0 0.0
    %2331 = vmatprep.subr.mxu0 0.0
    %2332 = vmatpush1.msra.mxu0 0.0
    %2333 = vmatprep.subr.mxu0 0.0
    %2334 = vmatpush1.msra.mxu0 0.0
    %2335 = vmatprep.subr.mxu0 0.0
    %2336 = vmatpush1.msra.mxu0 0.0
    %2337 = vmatprep.subr.mxu0 0.0
    %2338 = vmatpush1.msra.mxu0 0.0
    %2339 = vmatprep.subr.mxu0 0.0
    %2340 = vmatpush1.msra.mxu0 0.0
    %2341 = vmatprep.subr.mxu0 0.0
    %2342 = vmatpush1.msra.mxu0 0.0
    %2343 = vmatprep.subr.mxu0 0.0
    %2344 = vmatpush1.msra.mxu0 0.0
    %2345 = vmatprep.subr.mxu0 0.0
    %2346 = vmatpush1.msra.mxu0 0.0
    %2347 = vmatprep.subr.mxu0 0.0
    %2348 = vmatpush1.msra.mxu0 0.0
    %2349 = vmatprep.subr.mxu0 0.0
    %2350 = vmatpush1.msra.mxu0 0.0
    %2351 = vmatprep.subr.mxu0 0.0
    %2352 = vmatpush1.msra.mxu0 0.0
    %2353 = vmatprep.subr.mxu0 0.0
    %2354 = vmatpush1.msra.mxu0 0.0
    %2355 = vmatprep.subr.mxu0 0.0
    %2356 = vmatpush1.msra.mxu0 0.0
    %2357 = vmatprep.subr.mxu0 0.0
    %2358 = vmatpush1.msra.mxu0 0.0
    %2359 = vmatprep.subr.mxu0 0.0
    %2360 = vmatpush1.msra.mxu0 0.0
    %2361 = vmatprep.subr.mxu0 0.0
    %2362 = vmatpush1.msra.mxu0 0.0
    %2363 = vmatprep.subr.mxu0 0.0
    %2364 = vmatpush1.msra.mxu0 0.0
    %2365 = vmatprep.subr.mxu0 0.0
    %2366 = vmatpush1.msra.mxu0 0.0
    %2367 = vmatprep.subr.mxu0 0.0
    %2368 = vmatpush1.msra.mxu0 0.0
    %2369 = vmatprep.subr.mxu0 0.0
    %2370 = vmatpush1.msra.mxu0 0.0
    %2371 = vmatprep.subr.mxu0 0.0
    %2372 = vmatpush1.msra.mxu0 0.0
    %2373 = vmatprep.subr.mxu0 0.0
    %2374 = vmatpush1.msra.mxu0 0.0
    %2375 = vmatprep.subr.mxu0 0.0
    %2376 = vmatpush1.msra.mxu0 0.0
    %2377 = vmatprep.subr.mxu0 0.0
    %2378 = vmatpush1.msra.mxu0 0.0
    %2379 = vmatprep.mubr.f32.mxu0 0.0
    %2380 = vmatmul.mubr.f32.gmra.mrb[0].mxu0 %v2292
    %v2381 = vpop.f32.mrb[0].mxu0
    %v2382 = vadd.f32 %v2253, %v2381
    %v2383 = vpop.f32.mrb[0].mxu0
    %2384 = vmatprep.mubr.f32.mxu0 0.0
    %2385 = vmatmul.mubr.f32.gmra.mrb[0].mxu0 %v2295
    %v2386 = vpop.f32.mrb[0].mxu0
    %v2387 = vadd.f32 %v2258, %v2386
    %v2388 = vpop.f32.mrb[0].mxu0
    %2389 = vmatprep.mubr.f32.mxu0 0.0
    %2390 = vmatmul.mubr.f32.gmra.mrb[0].mxu0 %v2298
    %v2391 = vpop.f32.mrb[0].mxu0
    %v2392 = vadd.f32 %v2263, %v2391
    %v2393 = vpop.f32.mrb[0].mxu0
    %2394 = vmatprep.mubr.f32.mxu0 0.0
    %2395 = vmatmul.mubr.f32.gmra.mrb[0].mxu0 %v2301
    %v2396 = vpop.f32.mrb[0].mxu0
    %v2397 = vadd.f32 %v2268, %v2396
    %v2398 = vpop.f32.mrb[0].mxu0
    %2399 = vmatprep.mubr.f32.mxu0 0.0
    %2400 = vmatmul.mubr.f32.gmra.mrb[0].mxu0 %v2304
    %v2401 = vpop.f32.mrb[0].mxu0
    %v2402 = vadd.f32 %v2273, %v2401
    %v2403 = vpop.f32.mrb[0].mxu0
    %2404 = vmatprep.mubr.f32.mxu0 0.0
    %2405 = vmatmul.mubr.f32.gmra.mrb[0].mxu0 %v2307
    %v2406 = vpop.f32.mrb[0].mxu0
    %v2407 = vadd.f32 %v2278, %v2406
    %v2408 = vpop.f32.mrb[0].mxu0
    %2409 = vmatprep.mubr.f32.mxu0 0.0
    %2410 = vmatmul.mubr.f32.gmra.mrb[0].mxu0 %v2310
    %v2411 = vpop.f32.mrb[0].mxu0
    %v2412 = vadd.f32 %v2283, %v2411
    %v2413 = vpop.f32.mrb[0].mxu0
    %2414 = vmatprep.mubr.f32.mxu0 0.0
    %2415 = vmatmul.mubr.f32.gmra.mrb[0].mxu0 %v2313
    %v2416 = vpop.f32.mrb[0].mxu0
    %v2417 = vadd.f32 %v2288, %v2416
    %v2418 = vpop.f32.mrb[0].mxu0
    %2419 = vdwg.mxu0
    %s2420 = scalar_lea.vmem [#allocation15], 2
    %v2421 = vld [vmem:[%s2420] sm:$0x1]
    %v2423 = vlaneseq
    %v2424 = vshrl.u32 %v2423, 7
    %v2425 = vsub.s32 0, %v2424
    %v2426 = vrot.slane %v2421, %v2425
    %v2428 = vadd.f32 %v2382, %v2426
    %v2429 = vadd.f32 %v2387, %v2426
    %v2430 = vadd.f32 %v2392, %v2426
    %v2431 = vadd.f32 %v2397, %v2426
    %v2432 = vadd.f32 %v2402, %v2426
    %v2433 = vadd.f32 %v2407, %v2426
    %v2434 = vadd.f32 %v2412, %v2426
    %v2435 = vadd.f32 %v2417, %v2426
    %2436 = vst.msk [vmem:[#allocation2] sm:$0xff] %vm279, %v2428
    %2437 = vst.msk [vmem:[#allocation2 + $0x8] sm:$0xff] %vm279, %v2429
    %2438 = vst.msk [vmem:[#allocation2 + $0x10] sm:$0xff] %vm279, %v2430
    %2439 = vst.msk [vmem:[#allocation2 + $0x18] sm:$0xff] %vm279, %v2431
    %2440 = vst.msk [vmem:[#allocation2 + $0x20] sm:$0xff] %vm279, %v2432
    %2441 = vst.msk [vmem:[#allocation2 + $0x28] sm:$0xff] %vm279, %v2433
    %2442 = vst.msk [vmem:[#allocation2 + $0x30] sm:$0xff] %vm279, %v2434
    %2443 = vst.msk [vmem:[#allocation2 + $0x38] sm:$0xff] %vm279, %v2435
    %s2444 = scalar_lea.vmem [#allocation10], 32
    %v2445 = vld [vmem:[%s2444] sm:$0xff]
    %v2446 = vld [vmem:[%s2444 + $0x8] sm:$0xff]
    %v2447 = vld [vmem:[%s2444 + $0x10] sm:$0xff]
    %v2448 = vld [vmem:[%s2444 + $0x18] sm:$0xff]
    %s2449 = scalar_lea.vmem [#allocation12], 32
    %v2450 = vld [vmem:[%s2449] sm:$0xff]
    %v2451 = vld [vmem:[%s2449 + $0x8] sm:$0xff]
    %v2452 = vld [vmem:[%s2449 + $0x10] sm:$0xff]
    %v2453 = vld [vmem:[%s2449 + $0x18] sm:$0xff]
    %2454 = vmatprep.subr.mxu0 0.0
    %2455 = vmatpush1.msra.mxu0 %v2450
    %2456 = vmatprep.subr.mxu0 0.0
    %2457 = vmatpush1.msra.mxu0 %v2451
    %2458 = vmatprep.subr.mxu0 0.0
    %2459 = vmatpush1.msra.mxu0 %v2452
    %2460 = vmatprep.subr.mxu0 0.0
    %2461 = vmatpush1.msra.mxu0 %v2453
    %2462 = vmatprep.subr.mxu0 0.0
    %2463 = vmatpush1.msra.mxu0 0.0
    %2464 = vmatprep.subr.mxu0 0.0
    %2465 = vmatpush1.msra.mxu0 0.0
    %2466 = vmatprep.subr.mxu0 0.0
    %2467 = vmatpush1.msra.mxu0 0.0
    %2468 = vmatprep.subr.mxu0 0.0
    %2469 = vmatpush1.msra.mxu0 0.0
    %2470 = vmatprep.subr.mxu0 0.0
    %2471 = vmatpush1.msra.mxu0 0.0
    %2472 = vmatprep.subr.mxu0 0.0
    %2473 = vmatpush1.msra.mxu0 0.0
    %2474 = vmatprep.subr.mxu0 0.0
    %2475 = vmatpush1.msra.mxu0 0.0
    %2476 = vmatprep.subr.mxu0 0.0
    %2477 = vmatpush1.msra.mxu0 0.0
    %2478 = vmatprep.subr.mxu0 0.0
    %2479 = vmatpush1.msra.mxu0 0.0
    %2480 = vmatprep.subr.mxu0 0.0
    %2481 = vmatpush1.msra.mxu0 0.0
    %2482 = vmatprep.subr.mxu0 0.0
    %2483 = vmatpush1.msra.mxu0 0.0
    %2484 = vmatprep.subr.mxu0 0.0
    %2485 = vmatpush1.msra.mxu0 0.0
    %2486 = vmatprep.subr.mxu0 0.0
    %2487 = vmatpush1.msra.mxu0 0.0
    %2488 = vmatprep.subr.mxu0 0.0
    %2489 = vmatpush1.msra.mxu0 0.0
    %2490 = vmatprep.subr.mxu0 0.0
    %2491 = vmatpush1.msra.mxu0 0.0
    %2492 = vmatprep.subr.mxu0 0.0
    %2493 = vmatpush1.msra.mxu0 0.0
    %2494 = vmatprep.subr.mxu0 0.0
    %2495 = vmatpush1.msra.mxu0 0.0
    %2496 = vmatprep.subr.mxu0 0.0
    %2497 = vmatpush1.msra.mxu0 0.0
    %2498 = vmatprep.subr.mxu0 0.0
    %2499 = vmatpush1.msra.mxu0 0.0
    %2500 = vmatprep.subr.mxu0 0.0
    %2501 = vmatpush1.msra.mxu0 0.0
    %2502 = vmatprep.subr.mxu0 0.0
    %2503 = vmatpush1.msra.mxu0 0.0
    %2504 = vmatprep.subr.mxu0 0.0
    %2505 = vmatpush1.msra.mxu0 0.0
    %2506 = vmatprep.subr.mxu0 0.0
    %2507 = vmatpush1.msra.mxu0 0.0
    %2508 = vmatprep.subr.mxu0 0.0
    %2509 = vmatpush1.msra.mxu0 0.0
    %2510 = vmatprep.subr.mxu0 0.0
    %2511 = vmatpush1.msra.mxu0 0.0
    %2512 = vmatprep.subr.mxu0 0.0
    %2513 = vmatpush1.msra.mxu0 0.0
    %2514 = vmatprep.subr.mxu0 0.0
    %2515 = vmatpush1.msra.mxu0 0.0
    %2516 = vmatprep.subr.mxu0 0.0
    %2517 = vmatpush1.msra.mxu0 0.0
    %2518 = vmatprep.mubr.f32.mxu0 0.0
    %2519 = vmatmul.mubr.f32.gmra.mrb[0].mxu0 %v2163
    %v2520 = vpop.f32.mrb[0].mxu0
    %v2521 = vadd.f32 0.0, %v2520
    %v2522 = vpop.f32.mrb[0].mxu0
    %2523 = vmatprep.mubr.f32.mxu0 0.0
    %2524 = vmatmul.mubr.f32.gmra.mrb[0].mxu0 %v2166
    %v2525 = vpop.f32.mrb[0].mxu0
    %v2526 = vadd.f32 0.0, %v2525
    %v2527 = vpop.f32.mrb[0].mxu0
    %2528 = vmatprep.mubr.f32.mxu0 0.0
    %2529 = vmatmul.mubr.f32.gmra.mrb[0].mxu0 %v2169
    %v2530 = vpop.f32.mrb[0].mxu0
    %v2531 = vadd.f32 0.0, %v2530
    %v2532 = vpop.f32.mrb[0].mxu0
    %2533 = vmatprep.mubr.f32.mxu0 0.0
    %2534 = vmatmul.mubr.f32.gmra.mrb[0].mxu0 %v2172
    %v2535 = vpop.f32.mrb[0].mxu0
    %v2536 = vadd.f32 0.0, %v2535
    %v2537 = vpop.f32.mrb[0].mxu0
    %2538 = vmatprep.mubr.f32.mxu0 0.0
    %2539 = vmatmul.mubr.f32.gmra.mrb[0].mxu0 %v2175
    %v2540 = vpop.f32.mrb[0].mxu0
    %v2541 = vadd.f32 0.0, %v2540
    %v2542 = vpop.f32.mrb[0].mxu0
    %2543 = vmatprep.mubr.f32.mxu0 0.0
    %2544 = vmatmul.mubr.f32.gmra.mrb[0].mxu0 %v2178
    %v2545 = vpop.f32.mrb[0].mxu0
    %v2546 = vadd.f32 0.0, %v2545
    %v2547 = vpop.f32.mrb[0].mxu0
    %2548 = vmatprep.mubr.f32.mxu0 0.0
    %2549 = vmatmul.mubr.f32.gmra.mrb[0].mxu0 %v2181
    %v2550 = vpop.f32.mrb[0].mxu0
    %v2551 = vadd.f32 0.0, %v2550
    %v2552 = vpop.f32.mrb[0].mxu0
    %2553 = vmatprep.mubr.f32.mxu0 0.0
    %2554 = vmatmul.mubr.f32.gmra.mrb[0].mxu0 %v2184
    %v2555 = vpop.f32.mrb[0].mxu0
    %v2556 = vadd.f32 0.0, %v2555
    %v2557 = vpop.f32.mrb[0].mxu0
    %2558 = vdwg.mxu0
    %2559 = vmatprep.subr.mxu0 0.0
    %2560 = vmatpush1.msra.mxu0 %v2445
    %2561 = vmatprep.subr.mxu0 0.0
    %2562 = vmatpush1.msra.mxu0 %v2446
    %2563 = vmatprep.subr.mxu0 0.0
    %2564 = vmatpush1.msra.mxu0 %v2447
    %2565 = vmatprep.subr.mxu0 0.0
    %2566 = vmatpush1.msra.mxu0 %v2448
    %2567 = vmatprep.subr.mxu0 0.0
    %2568 = vmatpush1.msra.mxu0 0.0
    %2569 = vmatprep.subr.mxu0 0.0
    %2570 = vmatpush1.msra.mxu0 0.0
    %2571 = vmatprep.subr.mxu0 0.0
    %2572 = vmatpush1.msra.mxu0 0.0
    %2573 = vmatprep.subr.mxu0 0.0
    %2574 = vmatpush1.msra.mxu0 0.0
    %2575 = vmatprep.subr.mxu0 0.0
    %2576 = vmatpush1.msra.mxu0 0.0
    %2577 = vmatprep.subr.mxu0 0.0
    %2578 = vmatpush1.msra.mxu0 0.0
    %2579 = vmatprep.subr.mxu0 0.0
    %2580 = vmatpush1.msra.mxu0 0.0
    %2581 = vmatprep.subr.mxu0 0.0
    %2582 = vmatpush1.msra.mxu0 0.0
    %2583 = vmatprep.subr.mxu0 0.0
    %2584 = vmatpush1.msra.mxu0 0.0
    %2585 = vmatprep.subr.mxu0 0.0
    %2586 = vmatpush1.msra.mxu0 0.0
    %2587 = vmatprep.subr.mxu0 0.0
    %2588 = vmatpush1.msra.mxu0 0.0
    %2589 = vmatprep.subr.mxu0 0.0
    %2590 = vmatpush1.msra.mxu0 0.0
    %2591 = vmatprep.subr.mxu0 0.0
    %2592 = vmatpush1.msra.mxu0 0.0
    %2593 = vmatprep.subr.mxu0 0.0
    %2594 = vmatpush1.msra.mxu0 0.0
    %2595 = vmatprep.subr.mxu0 0.0
    %2596 = vmatpush1.msra.mxu0 0.0
    %2597 = vmatprep.subr.mxu0 0.0
    %2598 = vmatpush1.msra.mxu0 0.0
    %2599 = vmatprep.subr.mxu0 0.0
    %2600 = vmatpush1.msra.mxu0 0.0
    %2601 = vmatprep.subr.mxu0 0.0
    %2602 = vmatpush1.msra.mxu0 0.0
    %2603 = vmatprep.subr.mxu0 0.0
    %2604 = vmatpush1.msra.mxu0 0.0
    %2605 = vmatprep.subr.mxu0 0.0
    %2606 = vmatpush1.msra.mxu0 0.0
    %2607 = vmatprep.subr.mxu0 0.0
    %2608 = vmatpush1.msra.mxu0 0.0
    %2609 = vmatprep.subr.mxu0 0.0
    %2610 = vmatpush1.msra.mxu0 0.0
    %2611 = vmatprep.subr.mxu0 0.0
    %2612 = vmatpush1.msra.mxu0 0.0
    %2613 = vmatprep.subr.mxu0 0.0
    %2614 = vmatpush1.msra.mxu0 0.0
    %2615 = vmatprep.subr.mxu0 0.0
    %2616 = vmatpush1.msra.mxu0 0.0
    %2617 = vmatprep.subr.mxu0 0.0
    %2618 = vmatpush1.msra.mxu0 0.0
    %2619 = vmatprep.subr.mxu0 0.0
    %2620 = vmatpush1.msra.mxu0 0.0
    %2621 = vmatprep.subr.mxu0 0.0
    %2622 = vmatpush1.msra.mxu0 0.0
    %2623 = vmatprep.mubr.f32.mxu0 0.0
    %2624 = vmatmul.mubr.f32.gmra.mrb[0].mxu0 %v2292
    %v2625 = vpop.f32.mrb[0].mxu0
    %v2626 = vadd.f32 %v2521, %v2625
    %v2627 = vpop.f32.mrb[0].mxu0
    %2628 = vmatprep.mubr.f32.mxu0 0.0
    %2629 = vmatmul.mubr.f32.gmra.mrb[0].mxu0 %v2295
    %v2630 = vpop.f32.mrb[0].mxu0
    %v2631 = vadd.f32 %v2526, %v2630
    %v2632 = vpop.f32.mrb[0].mxu0
    %2633 = vmatprep.mubr.f32.mxu0 0.0
    %2634 = vmatmul.mubr.f32.gmra.mrb[0].mxu0 %v2298
    %v2635 = vpop.f32.mrb[0].mxu0
    %v2636 = vadd.f32 %v2531, %v2635
    %v2637 = vpop.f32.mrb[0].mxu0
    %2638 = vmatprep.mubr.f32.mxu0 0.0
    %2639 = vmatmul.mubr.f32.gmra.mrb[0].mxu0 %v2301
    %v2640 = vpop.f32.mrb[0].mxu0
    %v2641 = vadd.f32 %v2536, %v2640
    %v2642 = vpop.f32.mrb[0].mxu0
    %2643 = vmatprep.mubr.f32.mxu0 0.0
    %2644 = vmatmul.mubr.f32.gmra.mrb[0].mxu0 %v2304
    %v2645 = vpop.f32.mrb[0].mxu0
    %v2646 = vadd.f32 %v2541, %v2645
    %v2647 = vpop.f32.mrb[0].mxu0
    %2648 = vmatprep.mubr.f32.mxu0 0.0
    %2649 = vmatmul.mubr.f32.gmra.mrb[0].mxu0 %v2307
    %v2650 = vpop.f32.mrb[0].mxu0
    %v2651 = vadd.f32 %v2546, %v2650
    %v2652 = vpop.f32.mrb[0].mxu0
    %2653 = vmatprep.mubr.f32.mxu0 0.0
    %2654 = vmatmul.mubr.f32.gmra.mrb[0].mxu0 %v2310
    %v2655 = vpop.f32.mrb[0].mxu0
    %v2656 = vadd.f32 %v2551, %v2655
    %v2657 = vpop.f32.mrb[0].mxu0
    %2658 = vmatprep.mubr.f32.mxu0 0.0
    %2659 = vmatmul.mubr.f32.gmra.mrb[0].mxu0 %v2313
    %v2660 = vpop.f32.mrb[0].mxu0
    %v2661 = vadd.f32 %v2556, %v2660
    %v2662 = vpop.f32.mrb[0].mxu0
    %2663 = vdwg.mxu0
    %s2664 = scalar_lea.vmem [#allocation15], 3
    %v2665 = vld [vmem:[%s2664] sm:$0x1]
    %v2667 = vlaneseq
    %v2668 = vshrl.u32 %v2667, 7
    %v2669 = vsub.s32 0, %v2668
    %v2670 = vrot.slane %v2665, %v2669
    %v2672 = vadd.f32 %v2626, %v2670
    %v2673 = vadd.f32 %v2631, %v2670
    %v2674 = vadd.f32 %v2636, %v2670
    %v2675 = vadd.f32 %v2641, %v2670
    %v2676 = vadd.f32 %v2646, %v2670
    %v2677 = vadd.f32 %v2651, %v2670
    %v2678 = vadd.f32 %v2656, %v2670
    %v2679 = vadd.f32 %v2661, %v2670
    %2680 = vst.msk [vmem:[#allocation3] sm:$0xff] %vm279, %v2672
    %2681 = vst.msk [vmem:[#allocation3 + $0x8] sm:$0xff] %vm279, %v2673
    %2682 = vst.msk [vmem:[#allocation3 + $0x10] sm:$0xff] %vm279, %v2674
    %2683 = vst.msk [vmem:[#allocation3 + $0x18] sm:$0xff] %vm279, %v2675
    %2684 = vst.msk [vmem:[#allocation3 + $0x20] sm:$0xff] %vm279, %v2676
    %2685 = vst.msk [vmem:[#allocation3 + $0x28] sm:$0xff] %vm279, %v2677
    %2686 = vst.msk [vmem:[#allocation3 + $0x30] sm:$0xff] %vm279, %v2678
    %2687 = vst.msk [vmem:[#allocation3 + $0x38] sm:$0xff] %vm279, %v2679
    %s2688 = scalar_lea.vmem [#allocation13], 64
    %v2689 = vld [vmem:[%s2688] sm:$0xff]
    %v2690 = vld [vmem:[%s2688 + $0x8] sm:$0xff]
    %v2691 = vld [vmem:[%s2688 + $0x10] sm:$0xff]
    %v2692 = vld [vmem:[%s2688 + $0x18] sm:$0xff]
    %s2693 = scalar_lea.vmem [#allocation13], 96
    %v2694 = vld [vmem:[%s2693] sm:$0xff]
    %v2695 = vld [vmem:[%s2693 + $0x8] sm:$0xff]
    %v2696 = vld [vmem:[%s2693 + $0x10] sm:$0xff]
    %v2697 = vld [vmem:[%s2693 + $0x18] sm:$0xff]
    %s2698 = scalar_lea.vmem [#allocation16], 2
    %v2699 = vld [vmem:[%s2698] sm:$0x1]
    %v2701 = vlaneseq
    %v2702 = vshrl.u32 %v2701, 7
    %v2703 = vsub.s32 0, %v2702
    %v2704 = vrot.slane %v2699, %v2703
    %s2705 = scalar_lea.vmem [#allocation16], 3
    %v2706 = vld [vmem:[%s2705] sm:$0x1]
    %v2708 = vlaneseq
    %v2709 = vshrl.u32 %v2708, 7
    %v2710 = vsub.s32 0, %v2709
    %v2711 = vrot.slane %v2706, %v2710
    %s2712 = scalar_lea.vmem %s1, 16
    %v2713 = vld [vmem:[%s2712] sm:$0xff]
    %s2714 = scalar_lea.vmem %s1, 24
    %v2715 = vld [vmem:[%s2714] sm:$0xff]
    %v2716 = vld [vmem:[#allocation2] sm:$0xff]
    %v2718 = vsel %vm444, %v2713, 0
    %2720 = vmatprep.subr.mxu0 0.0
    %2721 = vmatpush1.msra.mxu0 %v2689
    %2722 = vmatprep.subr.mxu0 0.0
    %2723 = vmatpush1.msra.mxu0 %v2690
    %2724 = vmatprep.subr.mxu0 0.0
    %2725 = vmatpush1.msra.mxu0 %v2691
    %2726 = vmatprep.subr.mxu0 0.0
    %2727 = vmatpush1.msra.mxu0 %v2692
    %2728 = vmatprep.subr.mxu0 0.0
    %2729 = vmatpush1.msra.mxu0 0.0
    %2730 = vmatprep.subr.mxu0 0.0
    %2731 = vmatpush1.msra.mxu0 0.0
    %2732 = vmatprep.subr.mxu0 0.0
    %2733 = vmatpush1.msra.mxu0 0.0
    %2734 = vmatprep.subr.mxu0 0.0
    %2735 = vmatpush1.msra.mxu0 0.0
    %2736 = vmatprep.subr.mxu0 0.0
    %2737 = vmatpush1.msra.mxu0 0.0
    %2738 = vmatprep.subr.mxu0 0.0
    %2739 = vmatpush1.msra.mxu0 0.0
    %2740 = vmatprep.subr.mxu0 0.0
    %2741 = vmatpush1.msra.mxu0 0.0
    %2742 = vmatprep.subr.mxu0 0.0
    %2743 = vmatpush1.msra.mxu0 0.0
    %2744 = vmatprep.subr.mxu0 0.0
    %2745 = vmatpush1.msra.mxu0 0.0
    %2746 = vmatprep.subr.mxu0 0.0
    %2747 = vmatpush1.msra.mxu0 0.0
    %2748 = vmatprep.subr.mxu0 0.0
    %2749 = vmatpush1.msra.mxu0 0.0
    %2750 = vmatprep.subr.mxu0 0.0
    %2751 = vmatpush1.msra.mxu0 0.0
    %2752 = vmatprep.subr.mxu0 0.0
    %2753 = vmatpush1.msra.mxu0 0.0
    %2754 = vmatprep.subr.mxu0 0.0
    %2755 = vmatpush1.msra.mxu0 0.0
    %2756 = vmatprep.subr.mxu0 0.0
    %2757 = vmatpush1.msra.mxu0 0.0
    %2758 = vmatprep.subr.mxu0 0.0
    %2759 = vmatpush1.msra.mxu0 0.0
    %2760 = vmatprep.subr.mxu0 0.0
    %2761 = vmatpush1.msra.mxu0 0.0
    %2762 = vmatprep.subr.mxu0 0.0
    %2763 = vmatpush1.msra.mxu0 0.0
    %2764 = vmatprep.subr.mxu0 0.0
    %2765 = vmatpush1.msra.mxu0 0.0
    %2766 = vmatprep.subr.mxu0 0.0
    %2767 = vmatpush1.msra.mxu0 0.0
    %2768 = vmatprep.subr.mxu0 0.0
    %2769 = vmatpush1.msra.mxu0 0.0
    %2770 = vmatprep.subr.mxu0 0.0
    %2771 = vmatpush1.msra.mxu0 0.0
    %2772 = vmatprep.subr.mxu0 0.0
    %2773 = vmatpush1.msra.mxu0 0.0
    %2774 = vmatprep.subr.mxu0 0.0
    %2775 = vmatpush1.msra.mxu0 0.0
    %2776 = vmatprep.subr.mxu0 0.0
    %2777 = vmatpush1.msra.mxu0 0.0
    %2778 = vmatprep.subr.mxu0 0.0
    %2779 = vmatpush1.msra.mxu0 0.0
    %2780 = vmatprep.subr.mxu0 0.0
    %2781 = vmatpush1.msra.mxu0 0.0
    %2782 = vmatprep.subr.mxu0 0.0
    %2783 = vmatpush1.msra.mxu0 0.0
    %2784 = vmatprep.mubr.f32.mxu0 0.0
    %2785 = vmatmul.mubr.f32.gmra.mrb[0].mxu0 %v2718
    %v2786 = vpop.f32.mrb[0].mxu0
    %v2787 = vadd.f32 0.0, %v2786
    %v2788 = vpop.f32.mrb[0].mxu0
    %2789 = vdwg.mxu0
    %v2790 = vadd.f32 %v2716, %v2787
    %v2791 = vxor.u32 %v2790, 2147483648
    %v2792 = vmul.f32 %v2791, 1.442695
    %v2793 = vpow.pop %v2792
    %v2794 = vadd.f32 %v2793, 1.0
    %v2795 = vrcp.pop %v2794
    %v2796 = vmul.f32 1.0, %v2795
    %2797 = vrot.lane.b32.xlu0 %v2704, 64
    %v2798 = vpop.permute.xlu0 %2797
    %v2800 = vadd.f32 %v2787, %v2798
    %2802 = vrot.lane.b32.xlu0 %v2800, 64
    %v2803 = vpop.permute.xlu0 %2802
    %v2805 = vmul.f32 %v2796, %v2803
    %2807 = vrot.lane.b32.xlu0 %v2805, 64
    %v2808 = vpop.permute.xlu0 %2807
    %v2810 = vadd.f32 %v2716, %v2808
    %v2811 = vtanh.pop %v2810
    %v2812 = vsub.f32 1.0, %v2796
    %2814 = vrot.lane.b32.xlu0 %v2811, 96
    %v2815 = vpop.permute.xlu0 %2814
    %v2817 = vmul.f32 %v2812, %v2815
    %2818 = vrot.lane.b32.xlu0 %v2713, 32
    %v2819 = vpop.permute.xlu0 %2818
    %v2821 = vmul.f32 %v2796, %v2819
    %v2822 = vadd.f32 %v2817, %v2821
    %v2823 = vld [vmem:[#allocation3 + $0x38] sm:$0xff]
    %v2825 = vsel %vm444, %v2715, 0
    %2827 = vmatprep.subr.mxu0 0.0
    %2828 = vmatpush1.msra.mxu0 %v2694
    %2829 = vmatprep.subr.mxu0 0.0
    %2830 = vmatpush1.msra.mxu0 %v2695
    %2831 = vmatprep.subr.mxu0 0.0
    %2832 = vmatpush1.msra.mxu0 %v2696
    %2833 = vmatprep.subr.mxu0 0.0
    %2834 = vmatpush1.msra.mxu0 %v2697
    %2835 = vmatprep.subr.mxu0 0.0
    %2836 = vmatpush1.msra.mxu0 0.0
    %2837 = vmatprep.subr.mxu0 0.0
    %2838 = vmatpush1.msra.mxu0 0.0
    %2839 = vmatprep.subr.mxu0 0.0
    %2840 = vmatpush1.msra.mxu0 0.0
    %2841 = vmatprep.subr.mxu0 0.0
    %2842 = vmatpush1.msra.mxu0 0.0
    %2843 = vmatprep.subr.mxu0 0.0
    %2844 = vmatpush1.msra.mxu0 0.0
    %2845 = vmatprep.subr.mxu0 0.0
    %2846 = vmatpush1.msra.mxu0 0.0
    %2847 = vmatprep.subr.mxu0 0.0
    %2848 = vmatpush1.msra.mxu0 0.0
    %2849 = vmatprep.subr.mxu0 0.0
    %2850 = vmatpush1.msra.mxu0 0.0
    %2851 = vmatprep.subr.mxu0 0.0
    %2852 = vmatpush1.msra.mxu0 0.0
    %2853 = vmatprep.subr.mxu0 0.0
    %2854 = vmatpush1.msra.mxu0 0.0
    %2855 = vmatprep.subr.mxu0 0.0
    %2856 = vmatpush1.msra.mxu0 0.0
    %2857 = vmatprep.subr.mxu0 0.0
    %2858 = vmatpush1.msra.mxu0 0.0
    %2859 = vmatprep.subr.mxu0 0.0
    %2860 = vmatpush1.msra.mxu0 0.0
    %2861 = vmatprep.subr.mxu0 0.0
    %2862 = vmatpush1.msra.mxu0 0.0
    %2863 = vmatprep.subr.mxu0 0.0
    %2864 = vmatpush1.msra.mxu0 0.0
    %2865 = vmatprep.subr.mxu0 0.0
    %2866 = vmatpush1.msra.mxu0 0.0
    %2867 = vmatprep.subr.mxu0 0.0
    %2868 = vmatpush1.msra.mxu0 0.0
    %2869 = vmatprep.subr.mxu0 0.0
    %2870 = vmatpush1.msra.mxu0 0.0
    %2871 = vmatprep.subr.mxu0 0.0
    %2872 = vmatpush1.msra.mxu0 0.0
    %2873 = vmatprep.subr.mxu0 0.0
    %2874 = vmatpush1.msra.mxu0 0.0
    %2875 = vmatprep.subr.mxu0 0.0
    %2876 = vmatpush1.msra.mxu0 0.0
    %2877 = vmatprep.subr.mxu0 0.0
    %2878 = vmatpush1.msra.mxu0 0.0
    %2879 = vmatprep.subr.mxu0 0.0
    %2880 = vmatpush1.msra.mxu0 0.0
    %2881 = vmatprep.subr.mxu0 0.0
    %2882 = vmatpush1.msra.mxu0 0.0
    %2883 = vmatprep.subr.mxu0 0.0
    %2884 = vmatpush1.msra.mxu0 0.0
    %2885 = vmatprep.subr.mxu0 0.0
    %2886 = vmatpush1.msra.mxu0 0.0
    %2887 = vmatprep.subr.mxu0 0.0
    %2888 = vmatpush1.msra.mxu0 0.0
    %2889 = vmatprep.subr.mxu0 0.0
    %2890 = vmatpush1.msra.mxu0 0.0
    %2891 = vmatprep.mubr.f32.mxu0 0.0
    %2892 = vmatmul.mubr.f32.gmra.mrb[0].mxu0 %v2825
    %v2893 = vpop.f32.mrb[0].mxu0
    %v2894 = vadd.f32 0.0, %v2893
    %v2895 = vpop.f32.mrb[0].mxu0
    %2896 = vdwg.mxu0
    %v2897 = vadd.f32 %v2823, %v2894
    %v2898 = vxor.u32 %v2897, 2147483648
    %v2899 = vmul.f32 %v2898, 1.442695
    %v2900 = vpow.pop %v2899
    %v2901 = vadd.f32 %v2900, 1.0
    %v2902 = vrcp.pop %v2901
    %v2903 = vmul.f32 1.0, %v2902
    %2904 = vrot.lane.b32.xlu0 %v2711, 64
    %v2905 = vpop.permute.xlu0 %2904
    %v2907 = vadd.f32 %v2894, %v2905
    %2909 = vrot.lane.b32.xlu0 %v2907, 64
    %v2910 = vpop.permute.xlu0 %2909
    %v2912 = vmul.f32 %v2903, %v2910
    %2914 = vrot.lane.b32.xlu0 %v2912, 64
    %v2915 = vpop.permute.xlu0 %2914
    %v2917 = vadd.f32 %v2823, %v2915
    %v2918 = vtanh.pop %v2917
    %v2919 = vsub.f32 1.0, %v2903
    %2921 = vrot.lane.b32.xlu0 %v2918, 96
    %v2922 = vpop.permute.xlu0 %2921
    %v2924 = vmul.f32 %v2919, %v2922
    %2925 = vrot.lane.b32.xlu0 %v2715, 32
    %v2926 = vpop.permute.xlu0 %2925
    %v2928 = vmul.f32 %v2903, %v2926
    %v2929 = vadd.f32 %v2924, %v2928
    %v2930 = vld [vmem:[#allocation2 + $0x8] sm:$0xff]
    %2932 = vrot.lane.b32.xlu0 %v2822, 96
    %v2933 = vpop.permute.xlu0 %2932
    %v2934 = vsel %vm444, %v2933, 0
    %2936 = vmatprep.subr.mxu0 0.0
    %2937 = vmatpush1.msra.mxu0 %v2689
    %2938 = vmatprep.subr.mxu0 0.0
    %2939 = vmatpush1.msra.mxu0 %v2690
    %2940 = vmatprep.subr.mxu0 0.0
    %2941 = vmatpush1.msra.mxu0 %v2691
    %2942 = vmatprep.subr.mxu0 0.0
    %2943 = vmatpush1.msra.mxu0 %v2692
    %2944 = vmatprep.subr.mxu0 0.0
    %2945 = vmatpush1.msra.mxu0 0.0
    %2946 = vmatprep.subr.mxu0 0.0
    %2947 = vmatpush1.msra.mxu0 0.0
    %2948 = vmatprep.subr.mxu0 0.0
    %2949 = vmatpush1.msra.mxu0 0.0
    %2950 = vmatprep.subr.mxu0 0.0
    %2951 = vmatpush1.msra.mxu0 0.0
    %2952 = vmatprep.subr.mxu0 0.0
    %2953 = vmatpush1.msra.mxu0 0.0
    %2954 = vmatprep.subr.mxu0 0.0
    %2955 = vmatpush1.msra.mxu0 0.0
    %2956 = vmatprep.subr.mxu0 0.0
    %2957 = vmatpush1.msra.mxu0 0.0
    %2958 = vmatprep.subr.mxu0 0.0
    %2959 = vmatpush1.msra.mxu0 0.0
    %2960 = vmatprep.subr.mxu0 0.0
    %2961 = vmatpush1.msra.mxu0 0.0
    %2962 = vmatprep.subr.mxu0 0.0
    %2963 = vmatpush1.msra.mxu0 0.0
    %2964 = vmatprep.subr.mxu0 0.0
    %2965 = vmatpush1.msra.mxu0 0.0
    %2966 = vmatprep.subr.mxu0 0.0
    %2967 = vmatpush1.msra.mxu0 0.0
    %2968 = vmatprep.subr.mxu0 0.0
    %2969 = vmatpush1.msra.mxu0 0.0
    %2970 = vmatprep.subr.mxu0 0.0
    %2971 = vmatpush1.msra.mxu0 0.0
    %2972 = vmatprep.subr.mxu0 0.0
    %2973 = vmatpush1.msra.mxu0 0.0
    %2974 = vmatprep.subr.mxu0 0.0
    %2975 = vmatpush1.msra.mxu0 0.0
    %2976 = vmatprep.subr.mxu0 0.0
    %2977 = vmatpush1.msra.mxu0 0.0
    %2978 = vmatprep.subr.mxu0 0.0
    %2979 = vmatpush1.msra.mxu0 0.0
    %2980 = vmatprep.subr.mxu0 0.0
    %2981 = vmatpush1.msra.mxu0 0.0
    %2982 = vmatprep.subr.mxu0 0.0
    %2983 = vmatpush1.msra.mxu0 0.0
    %2984 = vmatprep.subr.mxu0 0.0
    %2985 = vmatpush1.msra.mxu0 0.0
    %2986 = vmatprep.subr.mxu0 0.0
    %2987 = vmatpush1.msra.mxu0 0.0
    %2988 = vmatprep.subr.mxu0 0.0
    %2989 = vmatpush1.msra.mxu0 0.0
    %2990 = vmatprep.subr.mxu0 0.0
    %2991 = vmatpush1.msra.mxu0 0.0
    %2992 = vmatprep.subr.mxu0 0.0
    %2993 = vmatpush1.msra.mxu0 0.0
    %2994 = vmatprep.subr.mxu0 0.0
    %2995 = vmatpush1.msra.mxu0 0.0
    %2996 = vmatprep.subr.mxu0 0.0
    %2997 = vmatpush1.msra.mxu0 0.0
    %2998 = vmatprep.subr.mxu0 0.0
    %2999 = vmatpush1.msra.mxu0 0.0
    %3000 = vmatprep.mubr.f32.mxu0 0.0
    %3001 = vmatmul.mubr.f32.gmra.mrb[0].mxu0 %v2934
    %v3002 = vpop.f32.mrb[0].mxu0
    %v3003 = vadd.f32 0.0, %v3002
    %v3004 = vpop.f32.mrb[0].mxu0
    %3005 = vdwg.mxu0
    %v3006 = vadd.f32 %v2930, %v3003
    %v3007 = vxor.u32 %v3006, 2147483648
    %v3008 = vmul.f32 %v3007, 1.442695
    %v3009 = vpow.pop %v3008
    %v3010 = vadd.f32 %v3009, 1.0
    %v3011 = vrcp.pop %v3010
    %v3012 = vmul.f32 1.0, %v3011
    %v3013 = vadd.f32 %v3003, %v2798
    %3015 = vrot.lane.b32.xlu0 %v3013, 64
    %v3016 = vpop.permute.xlu0 %3015
    %v3018 = vmul.f32 %v3012, %v3016
    %3020 = vrot.lane.b32.xlu0 %v3018, 64
    %v3021 = vpop.permute.xlu0 %3020
    %v3023 = vadd.f32 %v2930, %v3021
    %v3024 = vtanh.pop %v3023
    %v3025 = vsub.f32 1.0, %v3012
    %3027 = vrot.lane.b32.xlu0 %v3024, 96
    %v3028 = vpop.permute.xlu0 %3027
    %v3030 = vmul.f32 %v3025, %v3028
    %v3031 = vmul.f32 %v3012, %v2822
    %v3032 = vadd.f32 %v3030, %v3031
    %v3033 = vld [vmem:[#allocation3 + $0x30] sm:$0xff]
    %3035 = vrot.lane.b32.xlu0 %v2929, 96
    %v3036 = vpop.permute.xlu0 %3035
    %v3037 = vsel %vm444, %v3036, 0
    %3039 = vmatprep.subr.mxu0 0.0
    %3040 = vmatpush1.msra.mxu0 %v2694
    %3041 = vmatprep.subr.mxu0 0.0
    %3042 = vmatpush1.msra.mxu0 %v2695
    %3043 = vmatprep.subr.mxu0 0.0
    %3044 = vmatpush1.msra.mxu0 %v2696
    %3045 = vmatprep.subr.mxu0 0.0
    %3046 = vmatpush1.msra.mxu0 %v2697
    %3047 = vmatprep.subr.mxu0 0.0
    %3048 = vmatpush1.msra.mxu0 0.0
    %3049 = vmatprep.subr.mxu0 0.0
    %3050 = vmatpush1.msra.mxu0 0.0
    %3051 = vmatprep.subr.mxu0 0.0
    %3052 = vmatpush1.msra.mxu0 0.0
    %3053 = vmatprep.subr.mxu0 0.0
    %3054 = vmatpush1.msra.mxu0 0.0
    %3055 = vmatprep.subr.mxu0 0.0
    %3056 = vmatpush1.msra.mxu0 0.0
    %3057 = vmatprep.subr.mxu0 0.0
    %3058 = vmatpush1.msra.mxu0 0.0
    %3059 = vmatprep.subr.mxu0 0.0
    %3060 = vmatpush1.msra.mxu0 0.0
    %3061 = vmatprep.subr.mxu0 0.0
    %3062 = vmatpush1.msra.mxu0 0.0
    %3063 = vmatprep.subr.mxu0 0.0
    %3064 = vmatpush1.msra.mxu0 0.0
    %3065 = vmatprep.subr.mxu0 0.0
    %3066 = vmatpush1.msra.mxu0 0.0
    %3067 = vmatprep.subr.mxu0 0.0
    %3068 = vmatpush1.msra.mxu0 0.0
    %3069 = vmatprep.subr.mxu0 0.0
    %3070 = vmatpush1.msra.mxu0 0.0
    %3071 = vmatprep.subr.mxu0 0.0
    %3072 = vmatpush1.msra.mxu0 0.0
    %3073 = vmatprep.subr.mxu0 0.0
    %3074 = vmatpush1.msra.mxu0 0.0
    %3075 = vmatprep.subr.mxu0 0.0
    %3076 = vmatpush1.msra.mxu0 0.0
    %3077 = vmatprep.subr.mxu0 0.0
    %3078 = vmatpush1.msra.mxu0 0.0
    %3079 = vmatprep.subr.mxu0 0.0
    %3080 = vmatpush1.msra.mxu0 0.0
    %3081 = vmatprep.subr.mxu0 0.0
    %3082 = vmatpush1.msra.mxu0 0.0
    %3083 = vmatprep.subr.mxu0 0.0
    %3084 = vmatpush1.msra.mxu0 0.0
    %3085 = vmatprep.subr.mxu0 0.0
    %3086 = vmatpush1.msra.mxu0 0.0
    %3087 = vmatprep.subr.mxu0 0.0
    %3088 = vmatpush1.msra.mxu0 0.0
    %3089 = vmatprep.subr.mxu0 0.0
    %3090 = vmatpush1.msra.mxu0 0.0
    %3091 = vmatprep.subr.mxu0 0.0
    %3092 = vmatpush1.msra.mxu0 0.0
    %3093 = vmatprep.subr.mxu0 0.0
    %3094 = vmatpush1.msra.mxu0 0.0
    %3095 = vmatprep.subr.mxu0 0.0
    %3096 = vmatpush1.msra.mxu0 0.0
    %3097 = vmatprep.subr.mxu0 0.0
    %3098 = vmatpush1.msra.mxu0 0.0
    %3099 = vmatprep.subr.mxu0 0.0
    %3100 = vmatpush1.msra.mxu0 0.0
    %3101 = vmatprep.subr.mxu0 0.0
    %3102 = vmatpush1.msra.mxu0 0.0
    %3103 = vmatprep.mubr.f32.mxu0 0.0
    %3104 = vmatmul.mubr.f32.gmra.mrb[0].mxu0 %v3037
    %v3105 = vpop.f32.mrb[0].mxu0
    %v3106 = vadd.f32 0.0, %v3105
    %v3107 = vpop.f32.mrb[0].mxu0
    %3108 = vdwg.mxu0
    %v3109 = vadd.f32 %v3033, %v3106
    %v3110 = vxor.u32 %v3109, 2147483648
    %v3111 = vmul.f32 %v3110, 1.442695
    %v3112 = vpow.pop %v3111
    %v3113 = vadd.f32 %v3112, 1.0
    %v3114 = vrcp.pop %v3113
    %v3115 = vmul.f32 1.0, %v3114
    %v3116 = vadd.f32 %v3106, %v2905
    %3118 = vrot.lane.b32.xlu0 %v3116, 64
    %v3119 = vpop.permute.xlu0 %3118
    %v3121 = vmul.f32 %v3115, %v3119
    %3123 = vrot.lane.b32.xlu0 %v3121, 64
    %v3124 = vpop.permute.xlu0 %3123
    %v3126 = vadd.f32 %v3033, %v3124
    %v3127 = vtanh.pop %v3126
    %v3128 = vsub.f32 1.0, %v3115
    %3130 = vrot.lane.b32.xlu0 %v3127, 96
    %v3131 = vpop.permute.xlu0 %3130
    %v3133 = vmul.f32 %v3128, %v3131
    %v3134 = vmul.f32 %v3115, %v2929
    %v3135 = vadd.f32 %v3133, %v3134
    %v3136 = vld [vmem:[#allocation2 + $0x10] sm:$0xff]
    %3138 = vrot.lane.b32.xlu0 %v3032, 96
    %v3139 = vpop.permute.xlu0 %3138
    %v3140 = vsel %vm444, %v3139, 0
    %3142 = vmatprep.subr.mxu0 0.0
    %3143 = vmatpush1.msra.mxu0 %v2689
    %3144 = vmatprep.subr.mxu0 0.0
    %3145 = vmatpush1.msra.mxu0 %v2690
    %3146 = vmatprep.subr.mxu0 0.0
    %3147 = vmatpush1.msra.mxu0 %v2691
    %3148 = vmatprep.subr.mxu0 0.0
    %3149 = vmatpush1.msra.mxu0 %v2692
    %3150 = vmatprep.subr.mxu0 0.0
    %3151 = vmatpush1.msra.mxu0 0.0
    %3152 = vmatprep.subr.mxu0 0.0
    %3153 = vmatpush1.msra.mxu0 0.0
    %3154 = vmatprep.subr.mxu0 0.0
    %3155 = vmatpush1.msra.mxu0 0.0
    %3156 = vmatprep.subr.mxu0 0.0
    %3157 = vmatpush1.msra.mxu0 0.0
    %3158 = vmatprep.subr.mxu0 0.0
    %3159 = vmatpush1.msra.mxu0 0.0
    %3160 = vmatprep.subr.mxu0 0.0
    %3161 = vmatpush1.msra.mxu0 0.0
    %3162 = vmatprep.subr.mxu0 0.0
    %3163 = vmatpush1.msra.mxu0 0.0
    %3164 = vmatprep.subr.mxu0 0.0
    %3165 = vmatpush1.msra.mxu0 0.0
    %3166 = vmatprep.subr.mxu0 0.0
    %3167 = vmatpush1.msra.mxu0 0.0
    %3168 = vmatprep.subr.mxu0 0.0
    %3169 = vmatpush1.msra.mxu0 0.0
    %3170 = vmatprep.subr.mxu0 0.0
    %3171 = vmatpush1.msra.mxu0 0.0
    %3172 = vmatprep.subr.mxu0 0.0
    %3173 = vmatpush1.msra.mxu0 0.0
    %3174 = vmatprep.subr.mxu0 0.0
    %3175 = vmatpush1.msra.mxu0 0.0
    %3176 = vmatprep.subr.mxu0 0.0
    %3177 = vmatpush1.msra.mxu0 0.0
    %3178 = vmatprep.subr.mxu0 0.0
    %3179 = vmatpush1.msra.mxu0 0.0
    %3180 = vmatprep.subr.mxu0 0.0
    %3181 = vmatpush1.msra.mxu0 0.0
    %3182 = vmatprep.subr.mxu0 0.0
    %3183 = vmatpush1.msra.mxu0 0.0
    %3184 = vmatprep.subr.mxu0 0.0
    %3185 = vmatpush1.msra.mxu0 0.0
    %3186 = vmatprep.subr.mxu0 0.0
    %3187 = vmatpush1.msra.mxu0 0.0
    %3188 = vmatprep.subr.mxu0 0.0
    %3189 = vmatpush1.msra.mxu0 0.0
    %3190 = vmatprep.subr.mxu0 0.0
    %3191 = vmatpush1.msra.mxu0 0.0
    %3192 = vmatprep.subr.mxu0 0.0
    %3193 = vmatpush1.msra.mxu0 0.0
    %3194 = vmatprep.subr.mxu0 0.0
    %3195 = vmatpush1.msra.mxu0 0.0
    %3196 = vmatprep.subr.mxu0 0.0
    %3197 = vmatpush1.msra.mxu0 0.0
    %3198 = vmatprep.subr.mxu0 0.0
    %3199 = vmatpush1.msra.mxu0 0.0
    %3200 = vmatprep.subr.mxu0 0.0
    %3201 = vmatpush1.msra.mxu0 0.0
    %3202 = vmatprep.subr.mxu0 0.0
    %3203 = vmatpush1.msra.mxu0 0.0
    %3204 = vmatprep.subr.mxu0 0.0
    %3205 = vmatpush1.msra.mxu0 0.0
    %3206 = vmatprep.mubr.f32.mxu0 0.0
    %3207 = vmatmul.mubr.f32.gmra.mrb[0].mxu0 %v3140
    %v3208 = vpop.f32.mrb[0].mxu0
    %v3209 = vadd.f32 0.0, %v3208
    %v3210 = vpop.f32.mrb[0].mxu0
    %3211 = vdwg.mxu0
    %v3212 = vadd.f32 %v3136, %v3209
    %v3213 = vxor.u32 %v3212, 2147483648
    %v3214 = vmul.f32 %v3213, 1.442695
    %v3215 = vpow.pop %v3214
    %v3216 = vadd.f32 %v3215, 1.0
    %v3217 = vrcp.pop %v3216
    %v3218 = vmul.f32 1.0, %v3217
    %v3219 = vadd.f32 %v3209, %v2798
    %3221 = vrot.lane.b32.xlu0 %v3219, 64
    %v3222 = vpop.permute.xlu0 %3221
    %v3224 = vmul.f32 %v3218, %v3222
    %3226 = vrot.lane.b32.xlu0 %v3224, 64
    %v3227 = vpop.permute.xlu0 %3226
    %v3229 = vadd.f32 %v3136, %v3227
    %v3230 = vtanh.pop %v3229
    %v3231 = vsub.f32 1.0, %v3218
    %3233 = vrot.lane.b32.xlu0 %v3230, 96
    %v3234 = vpop.permute.xlu0 %3233
    %v3236 = vmul.f32 %v3231, %v3234
    %v3237 = vmul.f32 %v3218, %v3032
    %v3238 = vadd.f32 %v3236, %v3237
    %v3239 = vld [vmem:[#allocation3 + $0x28] sm:$0xff]
    %3241 = vrot.lane.b32.xlu0 %v3135, 96
    %v3242 = vpop.permute.xlu0 %3241
    %v3243 = vsel %vm444, %v3242, 0
    %3245 = vmatprep.subr.mxu0 0.0
    %3246 = vmatpush1.msra.mxu0 %v2694
    %3247 = vmatprep.subr.mxu0 0.0
    %3248 = vmatpush1.msra.mxu0 %v2695
    %3249 = vmatprep.subr.mxu0 0.0
    %3250 = vmatpush1.msra.mxu0 %v2696
    %3251 = vmatprep.subr.mxu0 0.0
    %3252 = vmatpush1.msra.mxu0 %v2697
    %3253 = vmatprep.subr.mxu0 0.0
    %3254 = vmatpush1.msra.mxu0 0.0
    %3255 = vmatprep.subr.mxu0 0.0
    %3256 = vmatpush1.msra.mxu0 0.0
    %3257 = vmatprep.subr.mxu0 0.0
    %3258 = vmatpush1.msra.mxu0 0.0
    %3259 = vmatprep.subr.mxu0 0.0
    %3260 = vmatpush1.msra.mxu0 0.0
    %3261 = vmatprep.subr.mxu0 0.0
    %3262 = vmatpush1.msra.mxu0 0.0
    %3263 = vmatprep.subr.mxu0 0.0
    %3264 = vmatpush1.msra.mxu0 0.0
    %3265 = vmatprep.subr.mxu0 0.0
    %3266 = vmatpush1.msra.mxu0 0.0
    %3267 = vmatprep.subr.mxu0 0.0
    %3268 = vmatpush1.msra.mxu0 0.0
    %3269 = vmatprep.subr.mxu0 0.0
    %3270 = vmatpush1.msra.mxu0 0.0
    %3271 = vmatprep.subr.mxu0 0.0
    %3272 = vmatpush1.msra.mxu0 0.0
    %3273 = vmatprep.subr.mxu0 0.0
    %3274 = vmatpush1.msra.mxu0 0.0
    %3275 = vmatprep.subr.mxu0 0.0
    %3276 = vmatpush1.msra.mxu0 0.0
    %3277 = vmatprep.subr.mxu0 0.0
    %3278 = vmatpush1.msra.mxu0 0.0
    %3279 = vmatprep.subr.mxu0 0.0
    %3280 = vmatpush1.msra.mxu0 0.0
    %3281 = vmatprep.subr.mxu0 0.0
    %3282 = vmatpush1.msra.mxu0 0.0
    %3283 = vmatprep.subr.mxu0 0.0
    %3284 = vmatpush1.msra.mxu0 0.0
    %3285 = vmatprep.subr.mxu0 0.0
    %3286 = vmatpush1.msra.mxu0 0.0
    %3287 = vmatprep.subr.mxu0 0.0
    %3288 = vmatpush1.msra.mxu0 0.0
    %3289 = vmatprep.subr.mxu0 0.0
    %3290 = vmatpush1.msra.mxu0 0.0
    %3291 = vmatprep.subr.mxu0 0.0
    %3292 = vmatpush1.msra.mxu0 0.0
    %3293 = vmatprep.subr.mxu0 0.0
    %3294 = vmatpush1.msra.mxu0 0.0
    %3295 = vmatprep.subr.mxu0 0.0
    %3296 = vmatpush1.msra.mxu0 0.0
    %3297 = vmatprep.subr.mxu0 0.0
    %3298 = vmatpush1.msra.mxu0 0.0
    %3299 = vmatprep.subr.mxu0 0.0
    %3300 = vmatpush1.msra.mxu0 0.0
    %3301 = vmatprep.subr.mxu0 0.0
    %3302 = vmatpush1.msra.mxu0 0.0
    %3303 = vmatprep.subr.mxu0 0.0
    %3304 = vmatpush1.msra.mxu0 0.0
    %3305 = vmatprep.subr.mxu0 0.0
    %3306 = vmatpush1.msra.mxu0 0.0
    %3307 = vmatprep.subr.mxu0 0.0
    %3308 = vmatpush1.msra.mxu0 0.0
    %3309 = vmatprep.mubr.f32.mxu0 0.0
    %3310 = vmatmul.mubr.f32.gmra.mrb[0].mxu0 %v3243
    %v3311 = vpop.f32.mrb[0].mxu0
    %v3312 = vadd.f32 0.0, %v3311
    %v3313 = vpop.f32.mrb[0].mxu0
    %3314 = vdwg.mxu0
    %v3315 = vadd.f32 %v3239, %v3312
    %v3316 = vxor.u32 %v3315, 2147483648
    %v3317 = vmul.f32 %v3316, 1.442695
    %v3318 = vpow.pop %v3317
    %v3319 = vadd.f32 %v3318, 1.0
    %v3320 = vrcp.pop %v3319
    %v3321 = vmul.f32 1.0, %v3320
    %v3322 = vadd.f32 %v3312, %v2905
    %3324 = vrot.lane.b32.xlu0 %v3322, 64
    %v3325 = vpop.permute.xlu0 %3324
    %v3327 = vmul.f32 %v3321, %v3325
    %3329 = vrot.lane.b32.xlu0 %v3327, 64
    %v3330 = vpop.permute.xlu0 %3329
    %v3332 = vadd.f32 %v3239, %v3330
    %v3333 = vtanh.pop %v3332
    %v3334 = vsub.f32 1.0, %v3321
    %3336 = vrot.lane.b32.xlu0 %v3333, 96
    %v3337 = vpop.permute.xlu0 %3336
    %v3339 = vmul.f32 %v3334, %v3337
    %v3340 = vmul.f32 %v3321, %v3135
    %v3341 = vadd.f32 %v3339, %v3340
    %v3342 = vld [vmem:[#allocation2 + $0x18] sm:$0xff]
    %3344 = vrot.lane.b32.xlu0 %v3238, 96
    %v3345 = vpop.permute.xlu0 %3344
    %v3346 = vsel %vm444, %v3345, 0
    %3348 = vmatprep.subr.mxu0 0.0
    %3349 = vmatpush1.msra.mxu0 %v2689
    %3350 = vmatprep.subr.mxu0 0.0
    %3351 = vmatpush1.msra.mxu0 %v2690
    %3352 = vmatprep.subr.mxu0 0.0
    %3353 = vmatpush1.msra.mxu0 %v2691
    %3354 = vmatprep.subr.mxu0 0.0
    %3355 = vmatpush1.msra.mxu0 %v2692
    %3356 = vmatprep.subr.mxu0 0.0
    %3357 = vmatpush1.msra.mxu0 0.0
    %3358 = vmatprep.subr.mxu0 0.0
    %3359 = vmatpush1.msra.mxu0 0.0
    %3360 = vmatprep.subr.mxu0 0.0
    %3361 = vmatpush1.msra.mxu0 0.0
    %3362 = vmatprep.subr.mxu0 0.0
    %3363 = vmatpush1.msra.mxu0 0.0
    %3364 = vmatprep.subr.mxu0 0.0
    %3365 = vmatpush1.msra.mxu0 0.0
    %3366 = vmatprep.subr.mxu0 0.0
    %3367 = vmatpush1.msra.mxu0 0.0
    %3368 = vmatprep.subr.mxu0 0.0
    %3369 = vmatpush1.msra.mxu0 0.0
    %3370 = vmatprep.subr.mxu0 0.0
    %3371 = vmatpush1.msra.mxu0 0.0
    %3372 = vmatprep.subr.mxu0 0.0
    %3373 = vmatpush1.msra.mxu0 0.0
    %3374 = vmatprep.subr.mxu0 0.0
    %3375 = vmatpush1.msra.mxu0 0.0
    %3376 = vmatprep.subr.mxu0 0.0
    %3377 = vmatpush1.msra.mxu0 0.0
    %3378 = vmatprep.subr.mxu0 0.0
    %3379 = vmatpush1.msra.mxu0 0.0
    %3380 = vmatprep.subr.mxu0 0.0
    %3381 = vmatpush1.msra.mxu0 0.0
    %3382 = vmatprep.subr.mxu0 0.0
    %3383 = vmatpush1.msra.mxu0 0.0
    %3384 = vmatprep.subr.mxu0 0.0
    %3385 = vmatpush1.msra.mxu0 0.0
    %3386 = vmatprep.subr.mxu0 0.0
    %3387 = vmatpush1.msra.mxu0 0.0
    %3388 = vmatprep.subr.mxu0 0.0
    %3389 = vmatpush1.msra.mxu0 0.0
    %3390 = vmatprep.subr.mxu0 0.0
    %3391 = vmatpush1.msra.mxu0 0.0
    %3392 = vmatprep.subr.mxu0 0.0
    %3393 = vmatpush1.msra.mxu0 0.0
    %3394 = vmatprep.subr.mxu0 0.0
    %3395 = vmatpush1.msra.mxu0 0.0
    %3396 = vmatprep.subr.mxu0 0.0
    %3397 = vmatpush1.msra.mxu0 0.0
    %3398 = vmatprep.subr.mxu0 0.0
    %3399 = vmatpush1.msra.mxu0 0.0
    %3400 = vmatprep.subr.mxu0 0.0
    %3401 = vmatpush1.msra.mxu0 0.0
    %3402 = vmatprep.subr.mxu0 0.0
    %3403 = vmatpush1.msra.mxu0 0.0
    %3404 = vmatprep.subr.mxu0 0.0
    %3405 = vmatpush1.msra.mxu0 0.0
    %3406 = vmatprep.subr.mxu0 0.0
    %3407 = vmatpush1.msra.mxu0 0.0
    %3408 = vmatprep.subr.mxu0 0.0
    %3409 = vmatpush1.msra.mxu0 0.0
    %3410 = vmatprep.subr.mxu0 0.0
    %3411 = vmatpush1.msra.mxu0 0.0
    %3412 = vmatprep.mubr.f32.mxu0 0.0
    %3413 = vmatmul.mubr.f32.gmra.mrb[0].mxu0 %v3346
    %v3414 = vpop.f32.mrb[0].mxu0
    %v3415 = vadd.f32 0.0, %v3414
    %v3416 = vpop.f32.mrb[0].mxu0
    %3417 = vdwg.mxu0
    %v3418 = vadd.f32 %v3342, %v3415
    %v3419 = vxor.u32 %v3418, 2147483648
    %v3420 = vmul.f32 %v3419, 1.442695
    %v3421 = vpow.pop %v3420
    %v3422 = vadd.f32 %v3421, 1.0
    %v3423 = vrcp.pop %v3422
    %v3424 = vmul.f32 1.0, %v3423
    %v3425 = vadd.f32 %v3415, %v2798
    %3427 = vrot.lane.b32.xlu0 %v3425, 64
    %v3428 = vpop.permute.xlu0 %3427
    %v3430 = vmul.f32 %v3424, %v3428
    %3432 = vrot.lane.b32.xlu0 %v3430, 64
    %v3433 = vpop.permute.xlu0 %3432
    %v3435 = vadd.f32 %v3342, %v3433
    %v3436 = vtanh.pop %v3435
    %v3437 = vsub.f32 1.0, %v3424
    %3439 = vrot.lane.b32.xlu0 %v3436, 96
    %v3440 = vpop.permute.xlu0 %3439
    %v3442 = vmul.f32 %v3437, %v3440
    %v3443 = vmul.f32 %v3424, %v3238
    %v3444 = vadd.f32 %v3442, %v3443
    %v3445 = vld [vmem:[#allocation3 + $0x20] sm:$0xff]
    %3447 = vrot.lane.b32.xlu0 %v3341, 96
    %v3448 = vpop.permute.xlu0 %3447
    %v3449 = vsel %vm444, %v3448, 0
    %3451 = vmatprep.subr.mxu0 0.0
    %3452 = vmatpush1.msra.mxu0 %v2694
    %3453 = vmatprep.subr.mxu0 0.0
    %3454 = vmatpush1.msra.mxu0 %v2695
    %3455 = vmatprep.subr.mxu0 0.0
    %3456 = vmatpush1.msra.mxu0 %v2696
    %3457 = vmatprep.subr.mxu0 0.0
    %3458 = vmatpush1.msra.mxu0 %v2697
    %3459 = vmatprep.subr.mxu0 0.0
    %3460 = vmatpush1.msra.mxu0 0.0
    %3461 = vmatprep.subr.mxu0 0.0
    %3462 = vmatpush1.msra.mxu0 0.0
    %3463 = vmatprep.subr.mxu0 0.0
    %3464 = vmatpush1.msra.mxu0 0.0
    %3465 = vmatprep.subr.mxu0 0.0
    %3466 = vmatpush1.msra.mxu0 0.0
    %3467 = vmatprep.subr.mxu0 0.0
    %3468 = vmatpush1.msra.mxu0 0.0
    %3469 = vmatprep.subr.mxu0 0.0
    %3470 = vmatpush1.msra.mxu0 0.0
    %3471 = vmatprep.subr.mxu0 0.0
    %3472 = vmatpush1.msra.mxu0 0.0
    %3473 = vmatprep.subr.mxu0 0.0
    %3474 = vmatpush1.msra.mxu0 0.0
    %3475 = vmatprep.subr.mxu0 0.0
    %3476 = vmatpush1.msra.mxu0 0.0
    %3477 = vmatprep.subr.mxu0 0.0
    %3478 = vmatpush1.msra.mxu0 0.0
    %3479 = vmatprep.subr.mxu0 0.0
    %3480 = vmatpush1.msra.mxu0 0.0
    %3481 = vmatprep.subr.mxu0 0.0
    %3482 = vmatpush1.msra.mxu0 0.0
    %3483 = vmatprep.subr.mxu0 0.0
    %3484 = vmatpush1.msra.mxu0 0.0
    %3485 = vmatprep.subr.mxu0 0.0
    %3486 = vmatpush1.msra.mxu0 0.0
    %3487 = vmatprep.subr.mxu0 0.0
    %3488 = vmatpush1.msra.mxu0 0.0
    %3489 = vmatprep.subr.mxu0 0.0
    %3490 = vmatpush1.msra.mxu0 0.0
    %3491 = vmatprep.subr.mxu0 0.0
    %3492 = vmatpush1.msra.mxu0 0.0
    %3493 = vmatprep.subr.mxu0 0.0
    %3494 = vmatpush1.msra.mxu0 0.0
    %3495 = vmatprep.subr.mxu0 0.0
    %3496 = vmatpush1.msra.mxu0 0.0
    %3497 = vmatprep.subr.mxu0 0.0
    %3498 = vmatpush1.msra.mxu0 0.0
    %3499 = vmatprep.subr.mxu0 0.0
    %3500 = vmatpush1.msra.mxu0 0.0
    %3501 = vmatprep.subr.mxu0 0.0
    %3502 = vmatpush1.msra.mxu0 0.0
    %3503 = vmatprep.subr.mxu0 0.0
    %3504 = vmatpush1.msra.mxu0 0.0
    %3505 = vmatprep.subr.mxu0 0.0
    %3506 = vmatpush1.msra.mxu0 0.0
    %3507 = vmatprep.subr.mxu0 0.0
    %3508 = vmatpush1.msra.mxu0 0.0
    %3509 = vmatprep.subr.mxu0 0.0
    %3510 = vmatpush1.msra.mxu0 0.0
    %3511 = vmatprep.subr.mxu0 0.0
    %3512 = vmatpush1.msra.mxu0 0.0
    %3513 = vmatprep.subr.mxu0 0.0
    %3514 = vmatpush1.msra.mxu0 0.0
    %3515 = vmatprep.mubr.f32.mxu0 0.0
    %3516 = vmatmul.mubr.f32.gmra.mrb[0].mxu0 %v3449
    %v3517 = vpop.f32.mrb[0].mxu0
    %v3518 = vadd.f32 0.0, %v3517
    %v3519 = vpop.f32.mrb[0].mxu0
    %3520 = vdwg.mxu0
    %v3521 = vadd.f32 %v3445, %v3518
    %v3522 = vxor.u32 %v3521, 2147483648
    %v3523 = vmul.f32 %v3522, 1.442695
    %v3524 = vpow.pop %v3523
    %v3525 = vadd.f32 %v3524, 1.0
    %v3526 = vrcp.pop %v3525
    %v3527 = vmul.f32 1.0, %v3526
    %v3528 = vadd.f32 %v3518, %v2905
    %3530 = vrot.lane.b32.xlu0 %v3528, 64
    %v3531 = vpop.permute.xlu0 %3530
    %v3533 = vmul.f32 %v3527, %v3531
    %3535 = vrot.lane.b32.xlu0 %v3533, 64
    %v3536 = vpop.permute.xlu0 %3535
    %v3538 = vadd.f32 %v3445, %v3536
    %v3539 = vtanh.pop %v3538
    %v3540 = vsub.f32 1.0, %v3527
    %3542 = vrot.lane.b32.xlu0 %v3539, 96
    %v3543 = vpop.permute.xlu0 %3542
    %v3545 = vmul.f32 %v3540, %v3543
    %v3546 = vmul.f32 %v3527, %v3341
    %v3547 = vadd.f32 %v3545, %v3546
    %v3548 = vld [vmem:[#allocation2 + $0x20] sm:$0xff]
    %3550 = vrot.lane.b32.xlu0 %v3444, 96
    %v3551 = vpop.permute.xlu0 %3550
    %v3552 = vsel %vm444, %v3551, 0
    %3554 = vmatprep.subr.mxu0 0.0
    %3555 = vmatpush1.msra.mxu0 %v2689
    %3556 = vmatprep.subr.mxu0 0.0
    %3557 = vmatpush1.msra.mxu0 %v2690
    %3558 = vmatprep.subr.mxu0 0.0
    %3559 = vmatpush1.msra.mxu0 %v2691
    %3560 = vmatprep.subr.mxu0 0.0
    %3561 = vmatpush1.msra.mxu0 %v2692
    %3562 = vmatprep.subr.mxu0 0.0
    %3563 = vmatpush1.msra.mxu0 0.0
    %3564 = vmatprep.subr.mxu0 0.0
    %3565 = vmatpush1.msra.mxu0 0.0
    %3566 = vmatprep.subr.mxu0 0.0
    %3567 = vmatpush1.msra.mxu0 0.0
    %3568 = vmatprep.subr.mxu0 0.0
    %3569 = vmatpush1.msra.mxu0 0.0
    %3570 = vmatprep.subr.mxu0 0.0
    %3571 = vmatpush1.msra.mxu0 0.0
    %3572 = vmatprep.subr.mxu0 0.0
    %3573 = vmatpush1.msra.mxu0 0.0
    %3574 = vmatprep.subr.mxu0 0.0
    %3575 = vmatpush1.msra.mxu0 0.0
    %3576 = vmatprep.subr.mxu0 0.0
    %3577 = vmatpush1.msra.mxu0 0.0
    %3578 = vmatprep.subr.mxu0 0.0
    %3579 = vmatpush1.msra.mxu0 0.0
    %3580 = vmatprep.subr.mxu0 0.0
    %3581 = vmatpush1.msra.mxu0 0.0
    %3582 = vmatprep.subr.mxu0 0.0
    %3583 = vmatpush1.msra.mxu0 0.0
    %3584 = vmatprep.subr.mxu0 0.0
    %3585 = vmatpush1.msra.mxu0 0.0
    %3586 = vmatprep.subr.mxu0 0.0
    %3587 = vmatpush1.msra.mxu0 0.0
    %3588 = vmatprep.subr.mxu0 0.0
    %3589 = vmatpush1.msra.mxu0 0.0
    %3590 = vmatprep.subr.mxu0 0.0
    %3591 = vmatpush1.msra.mxu0 0.0
    %3592 = vmatprep.subr.mxu0 0.0
    %3593 = vmatpush1.msra.mxu0 0.0
    %3594 = vmatprep.subr.mxu0 0.0
    %3595 = vmatpush1.msra.mxu0 0.0
    %3596 = vmatprep.subr.mxu0 0.0
    %3597 = vmatpush1.msra.mxu0 0.0
    %3598 = vmatprep.subr.mxu0 0.0
    %3599 = vmatpush1.msra.mxu0 0.0
    %3600 = vmatprep.subr.mxu0 0.0
    %3601 = vmatpush1.msra.mxu0 0.0
    %3602 = vmatprep.subr.mxu0 0.0
    %3603 = vmatpush1.msra.mxu0 0.0
    %3604 = vmatprep.subr.mxu0 0.0
    %3605 = vmatpush1.msra.mxu0 0.0
    %3606 = vmatprep.subr.mxu0 0.0
    %3607 = vmatpush1.msra.mxu0 0.0
    %3608 = vmatprep.subr.mxu0 0.0
    %3609 = vmatpush1.msra.mxu0 0.0
    %3610 = vmatprep.subr.mxu0 0.0
    %3611 = vmatpush1.msra.mxu0 0.0
    %3612 = vmatprep.subr.mxu0 0.0
    %3613 = vmatpush1.msra.mxu0 0.0
    %3614 = vmatprep.subr.mxu0 0.0
    %3615 = vmatpush1.msra.mxu0 0.0
    %3616 = vmatprep.subr.mxu0 0.0
    %3617 = vmatpush1.msra.mxu0 0.0
    %3618 = vmatprep.mubr.f32.mxu0 0.0
    %3619 = vmatmul.mubr.f32.gmra.mrb[0].mxu0 %v3552
    %v3620 = vpop.f32.mrb[0].mxu0
    %v3621 = vadd.f32 0.0, %v3620
    %v3622 = vpop.f32.mrb[0].mxu0
    %3623 = vdwg.mxu0
    %v3624 = vadd.f32 %v3548, %v3621
    %v3625 = vxor.u32 %v3624, 2147483648
    %v3626 = vmul.f32 %v3625, 1.442695
    %v3627 = vpow.pop %v3626
    %v3628 = vadd.f32 %v3627, 1.0
    %v3629 = vrcp.pop %v3628
    %v3630 = vmul.f32 1.0, %v3629
    %v3631 = vadd.f32 %v3621, %v2798
    %3633 = vrot.lane.b32.xlu0 %v3631, 64
    %v3634 = vpop.permute.xlu0 %3633
    %v3636 = vmul.f32 %v3630, %v3634
    %3638 = vrot.lane.b32.xlu0 %v3636, 64
    %v3639 = vpop.permute.xlu0 %3638
    %v3641 = vadd.f32 %v3548, %v3639
    %v3642 = vtanh.pop %v3641
    %v3643 = vsub.f32 1.0, %v3630
    %3645 = vrot.lane.b32.xlu0 %v3642, 96
    %v3646 = vpop.permute.xlu0 %3645
    %v3648 = vmul.f32 %v3643, %v3646
    %v3649 = vmul.f32 %v3630, %v3444
    %v3650 = vadd.f32 %v3648, %v3649
    %v3651 = vld [vmem:[#allocation3 + $0x18] sm:$0xff]
    %3653 = vrot.lane.b32.xlu0 %v3547, 96
    %v3654 = vpop.permute.xlu0 %3653
    %v3655 = vsel %vm444, %v3654, 0
    %3657 = vmatprep.subr.mxu0 0.0
    %3658 = vmatpush1.msra.mxu0 %v2694
    %3659 = vmatprep.subr.mxu0 0.0
    %3660 = vmatpush1.msra.mxu0 %v2695
    %3661 = vmatprep.subr.mxu0 0.0
    %3662 = vmatpush1.msra.mxu0 %v2696
    %3663 = vmatprep.subr.mxu0 0.0
    %3664 = vmatpush1.msra.mxu0 %v2697
    %3665 = vmatprep.subr.mxu0 0.0
    %3666 = vmatpush1.msra.mxu0 0.0
    %3667 = vmatprep.subr.mxu0 0.0
    %3668 = vmatpush1.msra.mxu0 0.0
    %3669 = vmatprep.subr.mxu0 0.0
    %3670 = vmatpush1.msra.mxu0 0.0
    %3671 = vmatprep.subr.mxu0 0.0
    %3672 = vmatpush1.msra.mxu0 0.0
    %3673 = vmatprep.subr.mxu0 0.0
    %3674 = vmatpush1.msra.mxu0 0.0
    %3675 = vmatprep.subr.mxu0 0.0
    %3676 = vmatpush1.msra.mxu0 0.0
    %3677 = vmatprep.subr.mxu0 0.0
    %3678 = vmatpush1.msra.mxu0 0.0
    %3679 = vmatprep.subr.mxu0 0.0
    %3680 = vmatpush1.msra.mxu0 0.0
    %3681 = vmatprep.subr.mxu0 0.0
    %3682 = vmatpush1.msra.mxu0 0.0
    %3683 = vmatprep.subr.mxu0 0.0
    %3684 = vmatpush1.msra.mxu0 0.0
    %3685 = vmatprep.subr.mxu0 0.0
    %3686 = vmatpush1.msra.mxu0 0.0
    %3687 = vmatprep.subr.mxu0 0.0
    %3688 = vmatpush1.msra.mxu0 0.0
    %3689 = vmatprep.subr.mxu0 0.0
    %3690 = vmatpush1.msra.mxu0 0.0
    %3691 = vmatprep.subr.mxu0 0.0
    %3692 = vmatpush1.msra.mxu0 0.0
    %3693 = vmatprep.subr.mxu0 0.0
    %3694 = vmatpush1.msra.mxu0 0.0
    %3695 = vmatprep.subr.mxu0 0.0
    %3696 = vmatpush1.msra.mxu0 0.0
    %3697 = vmatprep.subr.mxu0 0.0
    %3698 = vmatpush1.msra.mxu0 0.0
    %3699 = vmatprep.subr.mxu0 0.0
    %3700 = vmatpush1.msra.mxu0 0.0
    %3701 = vmatprep.subr.mxu0 0.0
    %3702 = vmatpush1.msra.mxu0 0.0
    %3703 = vmatprep.subr.mxu0 0.0
    %3704 = vmatpush1.msra.mxu0 0.0
    %3705 = vmatprep.subr.mxu0 0.0
    %3706 = vmatpush1.msra.mxu0 0.0
    %3707 = vmatprep.subr.mxu0 0.0
    %3708 = vmatpush1.msra.mxu0 0.0
    %3709 = vmatprep.subr.mxu0 0.0
    %3710 = vmatpush1.msra.mxu0 0.0
    %3711 = vmatprep.subr.mxu0 0.0
    %3712 = vmatpush1.msra.mxu0 0.0
    %3713 = vmatprep.subr.mxu0 0.0
    %3714 = vmatpush1.msra.mxu0 0.0
    %3715 = vmatprep.subr.mxu0 0.0
    %3716 = vmatpush1.msra.mxu0 0.0
    %3717 = vmatprep.subr.mxu0 0.0
    %3718 = vmatpush1.msra.mxu0 0.0
    %3719 = vmatprep.subr.mxu0 0.0
    %3720 = vmatpush1.msra.mxu0 0.0
    %3721 = vmatprep.mubr.f32.mxu0 0.0
    %3722 = vmatmul.mubr.f32.gmra.mrb[0].mxu0 %v3655
    %v3723 = vpop.f32.mrb[0].mxu0
    %v3724 = vadd.f32 0.0, %v3723
    %v3725 = vpop.f32.mrb[0].mxu0
    %3726 = vdwg.mxu0
    %v3727 = vadd.f32 %v3651, %v3724
    %v3728 = vxor.u32 %v3727, 2147483648
    %v3729 = vmul.f32 %v3728, 1.442695
    %v3730 = vpow.pop %v3729
    %v3731 = vadd.f32 %v3730, 1.0
    %v3732 = vrcp.pop %v3731
    %v3733 = vmul.f32 1.0, %v3732
    %v3734 = vadd.f32 %v3724, %v2905
    %3736 = vrot.lane.b32.xlu0 %v3734, 64
    %v3737 = vpop.permute.xlu0 %3736
    %v3739 = vmul.f32 %v3733, %v3737
    %3741 = vrot.lane.b32.xlu0 %v3739, 64
    %v3742 = vpop.permute.xlu0 %3741
    %v3744 = vadd.f32 %v3651, %v3742
    %v3745 = vtanh.pop %v3744
    %v3746 = vsub.f32 1.0, %v3733
    %3748 = vrot.lane.b32.xlu0 %v3745, 96
    %v3749 = vpop.permute.xlu0 %3748
    %v3751 = vmul.f32 %v3746, %v3749
    %v3752 = vmul.f32 %v3733, %v3547
    %v3753 = vadd.f32 %v3751, %v3752
    %v3754 = vld [vmem:[#allocation2 + $0x28] sm:$0xff]
    %3756 = vrot.lane.b32.xlu0 %v3650, 96
    %v3757 = vpop.permute.xlu0 %3756
    %v3758 = vsel %vm444, %v3757, 0
    %3760 = vmatprep.subr.mxu0 0.0
    %3761 = vmatpush1.msra.mxu0 %v2689
    %3762 = vmatprep.subr.mxu0 0.0
    %3763 = vmatpush1.msra.mxu0 %v2690
    %3764 = vmatprep.subr.mxu0 0.0
    %3765 = vmatpush1.msra.mxu0 %v2691
    %3766 = vmatprep.subr.mxu0 0.0
    %3767 = vmatpush1.msra.mxu0 %v2692
    %3768 = vmatprep.subr.mxu0 0.0
    %3769 = vmatpush1.msra.mxu0 0.0
    %3770 = vmatprep.subr.mxu0 0.0
    %3771 = vmatpush1.msra.mxu0 0.0
    %3772 = vmatprep.subr.mxu0 0.0
    %3773 = vmatpush1.msra.mxu0 0.0
    %3774 = vmatprep.subr.mxu0 0.0
    %3775 = vmatpush1.msra.mxu0 0.0
    %3776 = vmatprep.subr.mxu0 0.0
    %3777 = vmatpush1.msra.mxu0 0.0
    %3778 = vmatprep.subr.mxu0 0.0
    %3779 = vmatpush1.msra.mxu0 0.0
    %3780 = vmatprep.subr.mxu0 0.0
    %3781 = vmatpush1.msra.mxu0 0.0
    %3782 = vmatprep.subr.mxu0 0.0
    %3783 = vmatpush1.msra.mxu0 0.0
    %3784 = vmatprep.subr.mxu0 0.0
    %3785 = vmatpush1.msra.mxu0 0.0
    %3786 = vmatprep.subr.mxu0 0.0
    %3787 = vmatpush1.msra.mxu0 0.0
    %3788 = vmatprep.subr.mxu0 0.0
    %3789 = vmatpush1.msra.mxu0 0.0
    %3790 = vmatprep.subr.mxu0 0.0
    %3791 = vmatpush1.msra.mxu0 0.0
    %3792 = vmatprep.subr.mxu0 0.0
    %3793 = vmatpush1.msra.mxu0 0.0
    %3794 = vmatprep.subr.mxu0 0.0
    %3795 = vmatpush1.msra.mxu0 0.0
    %3796 = vmatprep.subr.mxu0 0.0
    %3797 = vmatpush1.msra.mxu0 0.0
    %3798 = vmatprep.subr.mxu0 0.0
    %3799 = vmatpush1.msra.mxu0 0.0
    %3800 = vmatprep.subr.mxu0 0.0
    %3801 = vmatpush1.msra.mxu0 0.0
    %3802 = vmatprep.subr.mxu0 0.0
    %3803 = vmatpush1.msra.mxu0 0.0
    %3804 = vmatprep.subr.mxu0 0.0
    %3805 = vmatpush1.msra.mxu0 0.0
    %3806 = vmatprep.subr.mxu0 0.0
    %3807 = vmatpush1.msra.mxu0 0.0
    %3808 = vmatprep.subr.mxu0 0.0
    %3809 = vmatpush1.msra.mxu0 0.0
    %3810 = vmatprep.subr.mxu0 0.0
    %3811 = vmatpush1.msra.mxu0 0.0
    %3812 = vmatprep.subr.mxu0 0.0
    %3813 = vmatpush1.msra.mxu0 0.0
    %3814 = vmatprep.subr.mxu0 0.0
    %3815 = vmatpush1.msra.mxu0 0.0
    %3816 = vmatprep.subr.mxu0 0.0
    %3817 = vmatpush1.msra.mxu0 0.0
    %3818 = vmatprep.subr.mxu0 0.0
    %3819 = vmatpush1.msra.mxu0 0.0
    %3820 = vmatprep.subr.mxu0 0.0
    %3821 = vmatpush1.msra.mxu0 0.0
    %3822 = vmatprep.subr.mxu0 0.0
    %3823 = vmatpush1.msra.mxu0 0.0
    %3824 = vmatprep.mubr.f32.mxu0 0.0
    %3825 = vmatmul.mubr.f32.gmra.mrb[0].mxu0 %v3758
    %v3826 = vpop.f32.mrb[0].mxu0
    %v3827 = vadd.f32 0.0, %v3826
    %v3828 = vpop.f32.mrb[0].mxu0
    %3829 = vdwg.mxu0
    %v3830 = vadd.f32 %v3754, %v3827
    %v3831 = vxor.u32 %v3830, 2147483648
    %v3832 = vmul.f32 %v3831, 1.442695
    %v3833 = vpow.pop %v3832
    %v3834 = vadd.f32 %v3833, 1.0
    %v3835 = vrcp.pop %v3834
    %v3836 = vmul.f32 1.0, %v3835
    %v3837 = vadd.f32 %v3827, %v2798
    %3839 = vrot.lane.b32.xlu0 %v3837, 64
    %v3840 = vpop.permute.xlu0 %3839
    %v3842 = vmul.f32 %v3836, %v3840
    %3844 = vrot.lane.b32.xlu0 %v3842, 64
    %v3845 = vpop.permute.xlu0 %3844
    %v3847 = vadd.f32 %v3754, %v3845
    %v3848 = vtanh.pop %v3847
    %v3849 = vsub.f32 1.0, %v3836
    %3851 = vrot.lane.b32.xlu0 %v3848, 96
    %v3852 = vpop.permute.xlu0 %3851
    %v3854 = vmul.f32 %v3849, %v3852
    %v3855 = vmul.f32 %v3836, %v3650
    %v3856 = vadd.f32 %v3854, %v3855
    %v3857 = vld [vmem:[#allocation3 + $0x10] sm:$0xff]
    %3859 = vrot.lane.b32.xlu0 %v3753, 96
    %v3860 = vpop.permute.xlu0 %3859
    %v3861 = vsel %vm444, %v3860, 0
    %3863 = vmatprep.subr.mxu0 0.0
    %3864 = vmatpush1.msra.mxu0 %v2694
    %3865 = vmatprep.subr.mxu0 0.0
    %3866 = vmatpush1.msra.mxu0 %v2695
    %3867 = vmatprep.subr.mxu0 0.0
    %3868 = vmatpush1.msra.mxu0 %v2696
    %3869 = vmatprep.subr.mxu0 0.0
    %3870 = vmatpush1.msra.mxu0 %v2697
    %3871 = vmatprep.subr.mxu0 0.0
    %3872 = vmatpush1.msra.mxu0 0.0
    %3873 = vmatprep.subr.mxu0 0.0
    %3874 = vmatpush1.msra.mxu0 0.0
    %3875 = vmatprep.subr.mxu0 0.0
    %3876 = vmatpush1.msra.mxu0 0.0
    %3877 = vmatprep.subr.mxu0 0.0
    %3878 = vmatpush1.msra.mxu0 0.0
    %3879 = vmatprep.subr.mxu0 0.0
    %3880 = vmatpush1.msra.mxu0 0.0
    %3881 = vmatprep.subr.mxu0 0.0
    %3882 = vmatpush1.msra.mxu0 0.0
    %3883 = vmatprep.subr.mxu0 0.0
    %3884 = vmatpush1.msra.mxu0 0.0
    %3885 = vmatprep.subr.mxu0 0.0
    %3886 = vmatpush1.msra.mxu0 0.0
    %3887 = vmatprep.subr.mxu0 0.0
    %3888 = vmatpush1.msra.mxu0 0.0
    %3889 = vmatprep.subr.mxu0 0.0
    %3890 = vmatpush1.msra.mxu0 0.0
    %3891 = vmatprep.subr.mxu0 0.0
    %3892 = vmatpush1.msra.mxu0 0.0
    %3893 = vmatprep.subr.mxu0 0.0
    %3894 = vmatpush1.msra.mxu0 0.0
    %3895 = vmatprep.subr.mxu0 0.0
    %3896 = vmatpush1.msra.mxu0 0.0
    %3897 = vmatprep.subr.mxu0 0.0
    %3898 = vmatpush1.msra.mxu0 0.0
    %3899 = vmatprep.subr.mxu0 0.0
    %3900 = vmatpush1.msra.mxu0 0.0
    %3901 = vmatprep.subr.mxu0 0.0
    %3902 = vmatpush1.msra.mxu0 0.0
    %3903 = vmatprep.subr.mxu0 0.0
    %3904 = vmatpush1.msra.mxu0 0.0
    %3905 = vmatprep.subr.mxu0 0.0
    %3906 = vmatpush1.msra.mxu0 0.0
    %3907 = vmatprep.subr.mxu0 0.0
    %3908 = vmatpush1.msra.mxu0 0.0
    %3909 = vmatprep.subr.mxu0 0.0
    %3910 = vmatpush1.msra.mxu0 0.0
    %3911 = vmatprep.subr.mxu0 0.0
    %3912 = vmatpush1.msra.mxu0 0.0
    %3913 = vmatprep.subr.mxu0 0.0
    %3914 = vmatpush1.msra.mxu0 0.0
    %3915 = vmatprep.subr.mxu0 0.0
    %3916 = vmatpush1.msra.mxu0 0.0
    %3917 = vmatprep.subr.mxu0 0.0
    %3918 = vmatpush1.msra.mxu0 0.0
    %3919 = vmatprep.subr.mxu0 0.0
    %3920 = vmatpush1.msra.mxu0 0.0
    %3921 = vmatprep.subr.mxu0 0.0
    %3922 = vmatpush1.msra.mxu0 0.0
    %3923 = vmatprep.subr.mxu0 0.0
    %3924 = vmatpush1.msra.mxu0 0.0
    %3925 = vmatprep.subr.mxu0 0.0
    %3926 = vmatpush1.msra.mxu0 0.0
    %3927 = vmatprep.mubr.f32.mxu0 0.0
    %3928 = vmatmul.mubr.f32.gmra.mrb[0].mxu0 %v3861
    %v3929 = vpop.f32.mrb[0].mxu0
    %v3930 = vadd.f32 0.0, %v3929
    %v3931 = vpop.f32.mrb[0].mxu0
    %3932 = vdwg.mxu0
    %v3933 = vadd.f32 %v3857, %v3930
    %v3934 = vxor.u32 %v3933, 2147483648
    %v3935 = vmul.f32 %v3934, 1.442695
    %v3936 = vpow.pop %v3935
    %v3937 = vadd.f32 %v3936, 1.0
    %v3938 = vrcp.pop %v3937
    %v3939 = vmul.f32 1.0, %v3938
    %v3940 = vadd.f32 %v3930, %v2905
    %3942 = vrot.lane.b32.xlu0 %v3940, 64
    %v3943 = vpop.permute.xlu0 %3942
    %v3945 = vmul.f32 %v3939, %v3943
    %3947 = vrot.lane.b32.xlu0 %v3945, 64
    %v3948 = vpop.permute.xlu0 %3947
    %v3950 = vadd.f32 %v3857, %v3948
    %v3951 = vtanh.pop %v3950
    %v3952 = vsub.f32 1.0, %v3939
    %3954 = vrot.lane.b32.xlu0 %v3951, 96
    %v3955 = vpop.permute.xlu0 %3954
    %v3957 = vmul.f32 %v3952, %v3955
    %v3958 = vmul.f32 %v3939, %v3753
    %v3959 = vadd.f32 %v3957, %v3958
    %v3960 = vld [vmem:[#allocation2 + $0x30] sm:$0xff]
    %3962 = vrot.lane.b32.xlu0 %v3856, 96
    %v3963 = vpop.permute.xlu0 %3962
    %v3964 = vsel %vm444, %v3963, 0
    %3966 = vmatprep.subr.mxu0 0.0
    %3967 = vmatpush1.msra.mxu0 %v2689
    %3968 = vmatprep.subr.mxu0 0.0
    %3969 = vmatpush1.msra.mxu0 %v2690
    %3970 = vmatprep.subr.mxu0 0.0
    %3971 = vmatpush1.msra.mxu0 %v2691
    %3972 = vmatprep.subr.mxu0 0.0
    %3973 = vmatpush1.msra.mxu0 %v2692
    %3974 = vmatprep.subr.mxu0 0.0
    %3975 = vmatpush1.msra.mxu0 0.0
    %3976 = vmatprep.subr.mxu0 0.0
    %3977 = vmatpush1.msra.mxu0 0.0
    %3978 = vmatprep.subr.mxu0 0.0
    %3979 = vmatpush1.msra.mxu0 0.0
    %3980 = vmatprep.subr.mxu0 0.0
    %3981 = vmatpush1.msra.mxu0 0.0
    %3982 = vmatprep.subr.mxu0 0.0
    %3983 = vmatpush1.msra.mxu0 0.0
    %3984 = vmatprep.subr.mxu0 0.0
    %3985 = vmatpush1.msra.mxu0 0.0
    %3986 = vmatprep.subr.mxu0 0.0
    %3987 = vmatpush1.msra.mxu0 0.0
    %3988 = vmatprep.subr.mxu0 0.0
    %3989 = vmatpush1.msra.mxu0 0.0
    %3990 = vmatprep.subr.mxu0 0.0
    %3991 = vmatpush1.msra.mxu0 0.0
    %3992 = vmatprep.subr.mxu0 0.0
    %3993 = vmatpush1.msra.mxu0 0.0
    %3994 = vmatprep.subr.mxu0 0.0
    %3995 = vmatpush1.msra.mxu0 0.0
    %3996 = vmatprep.subr.mxu0 0.0
    %3997 = vmatpush1.msra.mxu0 0.0
    %3998 = vmatprep.subr.mxu0 0.0
    %3999 = vmatpush1.msra.mxu0 0.0
    %4000 = vmatprep.subr.mxu0 0.0
    %4001 = vmatpush1.msra.mxu0 0.0
    %4002 = vmatprep.subr.mxu0 0.0
    %4003 = vmatpush1.msra.mxu0 0.0
    %4004 = vmatprep.subr.mxu0 0.0
    %4005 = vmatpush1.msra.mxu0 0.0
    %4006 = vmatprep.subr.mxu0 0.0
    %4007 = vmatpush1.msra.mxu0 0.0
    %4008 = vmatprep.subr.mxu0 0.0
    %4009 = vmatpush1.msra.mxu0 0.0
    %4010 = vmatprep.subr.mxu0 0.0
    %4011 = vmatpush1.msra.mxu0 0.0
    %4012 = vmatprep.subr.mxu0 0.0
    %4013 = vmatpush1.msra.mxu0 0.0
    %4014 = vmatprep.subr.mxu0 0.0
    %4015 = vmatpush1.msra.mxu0 0.0
    %4016 = vmatprep.subr.mxu0 0.0
    %4017 = vmatpush1.msra.mxu0 0.0
    %4018 = vmatprep.subr.mxu0 0.0
    %4019 = vmatpush1.msra.mxu0 0.0
    %4020 = vmatprep.subr.mxu0 0.0
    %4021 = vmatpush1.msra.mxu0 0.0
    %4022 = vmatprep.subr.mxu0 0.0
    %4023 = vmatpush1.msra.mxu0 0.0
    %4024 = vmatprep.subr.mxu0 0.0
    %4025 = vmatpush1.msra.mxu0 0.0
    %4026 = vmatprep.subr.mxu0 0.0
    %4027 = vmatpush1.msra.mxu0 0.0
    %4028 = vmatprep.subr.mxu0 0.0
    %4029 = vmatpush1.msra.mxu0 0.0
    %4030 = vmatprep.mubr.f32.mxu0 0.0
    %4031 = vmatmul.mubr.f32.gmra.mrb[0].mxu0 %v3964
    %v4032 = vpop.f32.mrb[0].mxu0
    %v4033 = vadd.f32 0.0, %v4032
    %v4034 = vpop.f32.mrb[0].mxu0
    %4035 = vdwg.mxu0
    %v4036 = vadd.f32 %v3960, %v4033
    %v4037 = vxor.u32 %v4036, 2147483648
    %v4038 = vmul.f32 %v4037, 1.442695
    %v4039 = vpow.pop %v4038
    %v4040 = vadd.f32 %v4039, 1.0
    %v4041 = vrcp.pop %v4040
    %v4042 = vmul.f32 1.0, %v4041
    %v4043 = vadd.f32 %v4033, %v2798
    %4045 = vrot.lane.b32.xlu0 %v4043, 64
    %v4046 = vpop.permute.xlu0 %4045
    %v4048 = vmul.f32 %v4042, %v4046
    %4050 = vrot.lane.b32.xlu0 %v4048, 64
    %v4051 = vpop.permute.xlu0 %4050
    %v4053 = vadd.f32 %v3960, %v4051
    %v4054 = vtanh.pop %v4053
    %v4055 = vsub.f32 1.0, %v4042
    %4057 = vrot.lane.b32.xlu0 %v4054, 96
    %v4058 = vpop.permute.xlu0 %4057
    %v4060 = vmul.f32 %v4055, %v4058
    %v4061 = vmul.f32 %v4042, %v3856
    %v4062 = vadd.f32 %v4060, %v4061
    %v4063 = vld [vmem:[#allocation3 + $0x8] sm:$0xff]
    %4065 = vrot.lane.b32.xlu0 %v3959, 96
    %v4066 = vpop.permute.xlu0 %4065
    %v4067 = vsel %vm444, %v4066, 0
    %4069 = vmatprep.subr.mxu0 0.0
    %4070 = vmatpush1.msra.mxu0 %v2694
    %4071 = vmatprep.subr.mxu0 0.0
    %4072 = vmatpush1.msra.mxu0 %v2695
    %4073 = vmatprep.subr.mxu0 0.0
    %4074 = vmatpush1.msra.mxu0 %v2696
    %4075 = vmatprep.subr.mxu0 0.0
    %4076 = vmatpush1.msra.mxu0 %v2697
    %4077 = vmatprep.subr.mxu0 0.0
    %4078 = vmatpush1.msra.mxu0 0.0
    %4079 = vmatprep.subr.mxu0 0.0
    %4080 = vmatpush1.msra.mxu0 0.0
    %4081 = vmatprep.subr.mxu0 0.0
    %4082 = vmatpush1.msra.mxu0 0.0
    %4083 = vmatprep.subr.mxu0 0.0
    %4084 = vmatpush1.msra.mxu0 0.0
    %4085 = vmatprep.subr.mxu0 0.0
    %4086 = vmatpush1.msra.mxu0 0.0
    %4087 = vmatprep.subr.mxu0 0.0
    %4088 = vmatpush1.msra.mxu0 0.0
    %4089 = vmatprep.subr.mxu0 0.0
    %4090 = vmatpush1.msra.mxu0 0.0
    %4091 = vmatprep.subr.mxu0 0.0
    %4092 = vmatpush1.msra.mxu0 0.0
    %4093 = vmatprep.subr.mxu0 0.0
    %4094 = vmatpush1.msra.mxu0 0.0
    %4095 = vmatprep.subr.mxu0 0.0
    %4096 = vmatpush1.msra.mxu0 0.0
    %4097 = vmatprep.subr.mxu0 0.0
    %4098 = vmatpush1.msra.mxu0 0.0
    %4099 = vmatprep.subr.mxu0 0.0
    %4100 = vmatpush1.msra.mxu0 0.0
    %4101 = vmatprep.subr.mxu0 0.0
    %4102 = vmatpush1.msra.mxu0 0.0
    %4103 = vmatprep.subr.mxu0 0.0
    %4104 = vmatpush1.msra.mxu0 0.0
    %4105 = vmatprep.subr.mxu0 0.0
    %4106 = vmatpush1.msra.mxu0 0.0
    %4107 = vmatprep.subr.mxu0 0.0
    %4108 = vmatpush1.msra.mxu0 0.0
    %4109 = vmatprep.subr.mxu0 0.0
    %4110 = vmatpush1.msra.mxu0 0.0
    %4111 = vmatprep.subr.mxu0 0.0
    %4112 = vmatpush1.msra.mxu0 0.0
    %4113 = vmatprep.subr.mxu0 0.0
    %4114 = vmatpush1.msra.mxu0 0.0
    %4115 = vmatprep.subr.mxu0 0.0
    %4116 = vmatpush1.msra.mxu0 0.0
    %4117 = vmatprep.subr.mxu0 0.0
    %4118 = vmatpush1.msra.mxu0 0.0
    %4119 = vmatprep.subr.mxu0 0.0
    %4120 = vmatpush1.msra.mxu0 0.0
    %4121 = vmatprep.subr.mxu0 0.0
    %4122 = vmatpush1.msra.mxu0 0.0
    %4123 = vmatprep.subr.mxu0 0.0
    %4124 = vmatpush1.msra.mxu0 0.0
    %4125 = vmatprep.subr.mxu0 0.0
    %4126 = vmatpush1.msra.mxu0 0.0
    %4127 = vmatprep.subr.mxu0 0.0
    %4128 = vmatpush1.msra.mxu0 0.0
    %4129 = vmatprep.subr.mxu0 0.0
    %4130 = vmatpush1.msra.mxu0 0.0
    %4131 = vmatprep.subr.mxu0 0.0
    %4132 = vmatpush1.msra.mxu0 0.0
    %4133 = vmatprep.mubr.f32.mxu0 0.0
    %4134 = vmatmul.mubr.f32.gmra.mrb[0].mxu0 %v4067
    %v4135 = vpop.f32.mrb[0].mxu0
    %v4136 = vadd.f32 0.0, %v4135
    %v4137 = vpop.f32.mrb[0].mxu0
    %4138 = vdwg.mxu0
    %v4139 = vadd.f32 %v4063, %v4136
    %v4140 = vxor.u32 %v4139, 2147483648
    %v4141 = vmul.f32 %v4140, 1.442695
    %v4142 = vpow.pop %v4141
    %v4143 = vadd.f32 %v4142, 1.0
    %v4144 = vrcp.pop %v4143
    %v4145 = vmul.f32 1.0, %v4144
    %v4146 = vadd.f32 %v4136, %v2905
    %4148 = vrot.lane.b32.xlu0 %v4146, 64
    %v4149 = vpop.permute.xlu0 %4148
    %v4151 = vmul.f32 %v4145, %v4149
    %4153 = vrot.lane.b32.xlu0 %v4151, 64
    %v4154 = vpop.permute.xlu0 %4153
    %v4156 = vadd.f32 %v4063, %v4154
    %v4157 = vtanh.pop %v4156
    %v4158 = vsub.f32 1.0, %v4145
    %4160 = vrot.lane.b32.xlu0 %v4157, 96
    %v4161 = vpop.permute.xlu0 %4160
    %v4163 = vmul.f32 %v4158, %v4161
    %v4164 = vmul.f32 %v4145, %v3959
    %v4165 = vadd.f32 %v4163, %v4164
    %v4166 = vld [vmem:[#allocation2 + $0x38] sm:$0xff]
    %4168 = vrot.lane.b32.xlu0 %v4062, 96
    %v4169 = vpop.permute.xlu0 %4168
    %v4170 = vsel %vm444, %v4169, 0
    %4172 = vmatprep.subr.mxu0 0.0
    %4173 = vmatpush1.msra.mxu0 %v2689
    %4174 = vmatprep.subr.mxu0 0.0
    %4175 = vmatpush1.msra.mxu0 %v2690
    %4176 = vmatprep.subr.mxu0 0.0
    %4177 = vmatpush1.msra.mxu0 %v2691
    %4178 = vmatprep.subr.mxu0 0.0
    %4179 = vmatpush1.msra.mxu0 %v2692
    %4180 = vmatprep.subr.mxu0 0.0
    %4181 = vmatpush1.msra.mxu0 0.0
    %4182 = vmatprep.subr.mxu0 0.0
    %4183 = vmatpush1.msra.mxu0 0.0
    %4184 = vmatprep.subr.mxu0 0.0
    %4185 = vmatpush1.msra.mxu0 0.0
    %4186 = vmatprep.subr.mxu0 0.0
    %4187 = vmatpush1.msra.mxu0 0.0
    %4188 = vmatprep.subr.mxu0 0.0
    %4189 = vmatpush1.msra.mxu0 0.0
    %4190 = vmatprep.subr.mxu0 0.0
    %4191 = vmatpush1.msra.mxu0 0.0
    %4192 = vmatprep.subr.mxu0 0.0
    %4193 = vmatpush1.msra.mxu0 0.0
    %4194 = vmatprep.subr.mxu0 0.0
    %4195 = vmatpush1.msra.mxu0 0.0
    %4196 = vmatprep.subr.mxu0 0.0
    %4197 = vmatpush1.msra.mxu0 0.0
    %4198 = vmatprep.subr.mxu0 0.0
    %4199 = vmatpush1.msra.mxu0 0.0
    %4200 = vmatprep.subr.mxu0 0.0
    %4201 = vmatpush1.msra.mxu0 0.0
    %4202 = vmatprep.subr.mxu0 0.0
    %4203 = vmatpush1.msra.mxu0 0.0
    %4204 = vmatprep.subr.mxu0 0.0
    %4205 = vmatpush1.msra.mxu0 0.0
    %4206 = vmatprep.subr.mxu0 0.0
    %4207 = vmatpush1.msra.mxu0 0.0
    %4208 = vmatprep.subr.mxu0 0.0
    %4209 = vmatpush1.msra.mxu0 0.0
    %4210 = vmatprep.subr.mxu0 0.0
    %4211 = vmatpush1.msra.mxu0 0.0
    %4212 = vmatprep.subr.mxu0 0.0
    %4213 = vmatpush1.msra.mxu0 0.0
    %4214 = vmatprep.subr.mxu0 0.0
    %4215 = vmatpush1.msra.mxu0 0.0
    %4216 = vmatprep.subr.mxu0 0.0
    %4217 = vmatpush1.msra.mxu0 0.0
    %4218 = vmatprep.subr.mxu0 0.0
    %4219 = vmatpush1.msra.mxu0 0.0
    %4220 = vmatprep.subr.mxu0 0.0
    %4221 = vmatpush1.msra.mxu0 0.0
    %4222 = vmatprep.subr.mxu0 0.0
    %4223 = vmatpush1.msra.mxu0 0.0
    %4224 = vmatprep.subr.mxu0 0.0
    %4225 = vmatpush1.msra.mxu0 0.0
    %4226 = vmatprep.subr.mxu0 0.0
    %4227 = vmatpush1.msra.mxu0 0.0
    %4228 = vmatprep.subr.mxu0 0.0
    %4229 = vmatpush1.msra.mxu0 0.0
    %4230 = vmatprep.subr.mxu0 0.0
    %4231 = vmatpush1.msra.mxu0 0.0
    %4232 = vmatprep.subr.mxu0 0.0
    %4233 = vmatpush1.msra.mxu0 0.0
    %4234 = vmatprep.subr.mxu0 0.0
    %4235 = vmatpush1.msra.mxu0 0.0
    %4236 = vmatprep.mubr.f32.mxu0 0.0
    %4237 = vmatmul.mubr.f32.gmra.mrb[0].mxu0 %v4170
    %v4238 = vpop.f32.mrb[0].mxu0
    %v4239 = vadd.f32 0.0, %v4238
    %v4240 = vpop.f32.mrb[0].mxu0
    %4241 = vdwg.mxu0
    %v4242 = vadd.f32 %v4166, %v4239
    %v4243 = vxor.u32 %v4242, 2147483648
    %v4244 = vmul.f32 %v4243, 1.442695
    %v4245 = vpow.pop %v4244
    %v4246 = vadd.f32 %v4245, 1.0
    %v4247 = vrcp.pop %v4246
    %v4248 = vmul.f32 1.0, %v4247
    %v4249 = vadd.f32 %v4239, %v2798
    %4251 = vrot.lane.b32.xlu0 %v4249, 64
    %v4252 = vpop.permute.xlu0 %4251
    %v4254 = vmul.f32 %v4248, %v4252
    %4256 = vrot.lane.b32.xlu0 %v4254, 64
    %v4257 = vpop.permute.xlu0 %4256
    %v4259 = vadd.f32 %v4166, %v4257
    %v4260 = vtanh.pop %v4259
    %v4261 = vsub.f32 1.0, %v4248
    %4263 = vrot.lane.b32.xlu0 %v4260, 96
    %v4264 = vpop.permute.xlu0 %4263
    %v4266 = vmul.f32 %v4261, %v4264
    %v4267 = vmul.f32 %v4248, %v4062
    %v4268 = vadd.f32 %v4266, %v4267
    %v4269 = vld [vmem:[#allocation3] sm:$0xff]
    %4271 = vrot.lane.b32.xlu0 %v4165, 96
    %v4272 = vpop.permute.xlu0 %4271
    %v4273 = vsel %vm444, %v4272, 0
    %4275 = vmatprep.subr.mxu0 0.0
    %4276 = vmatpush1.msra.mxu0 %v2694
    %4277 = vmatprep.subr.mxu0 0.0
    %4278 = vmatpush1.msra.mxu0 %v2695
    %4279 = vmatprep.subr.mxu0 0.0
    %4280 = vmatpush1.msra.mxu0 %v2696
    %4281 = vmatprep.subr.mxu0 0.0
    %4282 = vmatpush1.msra.mxu0 %v2697
    %4283 = vmatprep.subr.mxu0 0.0
    %4284 = vmatpush1.msra.mxu0 0.0
    %4285 = vmatprep.subr.mxu0 0.0
    %4286 = vmatpush1.msra.mxu0 0.0
    %4287 = vmatprep.subr.mxu0 0.0
    %4288 = vmatpush1.msra.mxu0 0.0
    %4289 = vmatprep.subr.mxu0 0.0
    %4290 = vmatpush1.msra.mxu0 0.0
    %4291 = vmatprep.subr.mxu0 0.0
    %4292 = vmatpush1.msra.mxu0 0.0
    %4293 = vmatprep.subr.mxu0 0.0
    %4294 = vmatpush1.msra.mxu0 0.0
    %4295 = vmatprep.subr.mxu0 0.0
    %4296 = vmatpush1.msra.mxu0 0.0
    %4297 = vmatprep.subr.mxu0 0.0
    %4298 = vmatpush1.msra.mxu0 0.0
    %4299 = vmatprep.subr.mxu0 0.0
    %4300 = vmatpush1.msra.mxu0 0.0
    %4301 = vmatprep.subr.mxu0 0.0
    %4302 = vmatpush1.msra.mxu0 0.0
    %4303 = vmatprep.subr.mxu0 0.0
    %4304 = vmatpush1.msra.mxu0 0.0
    %4305 = vmatprep.subr.mxu0 0.0
    %4306 = vmatpush1.msra.mxu0 0.0
    %4307 = vmatprep.subr.mxu0 0.0
    %4308 = vmatpush1.msra.mxu0 0.0
    %4309 = vmatprep.subr.mxu0 0.0
    %4310 = vmatpush1.msra.mxu0 0.0
    %4311 = vmatprep.subr.mxu0 0.0
    %4312 = vmatpush1.msra.mxu0 0.0
    %4313 = vmatprep.subr.mxu0 0.0
    %4314 = vmatpush1.msra.mxu0 0.0
    %4315 = vmatprep.subr.mxu0 0.0
    %4316 = vmatpush1.msra.mxu0 0.0
    %4317 = vmatprep.subr.mxu0 0.0
    %4318 = vmatpush1.msra.mxu0 0.0
    %4319 = vmatprep.subr.mxu0 0.0
    %4320 = vmatpush1.msra.mxu0 0.0
    %4321 = vmatprep.subr.mxu0 0.0
    %4322 = vmatpush1.msra.mxu0 0.0
    %4323 = vmatprep.subr.mxu0 0.0
    %4324 = vmatpush1.msra.mxu0 0.0
    %4325 = vmatprep.subr.mxu0 0.0
    %4326 = vmatpush1.msra.mxu0 0.0
    %4327 = vmatprep.subr.mxu0 0.0
    %4328 = vmatpush1.msra.mxu0 0.0
    %4329 = vmatprep.subr.mxu0 0.0
    %4330 = vmatpush1.msra.mxu0 0.0
    %4331 = vmatprep.subr.mxu0 0.0
    %4332 = vmatpush1.msra.mxu0 0.0
    %4333 = vmatprep.subr.mxu0 0.0
    %4334 = vmatpush1.msra.mxu0 0.0
    %4335 = vmatprep.subr.mxu0 0.0
    %4336 = vmatpush1.msra.mxu0 0.0
    %4337 = vmatprep.subr.mxu0 0.0
    %4338 = vmatpush1.msra.mxu0 0.0
    %4339 = vmatprep.mubr.f32.mxu0 0.0
    %4340 = vmatmul.mubr.f32.gmra.mrb[0].mxu0 %v4273
    %v4341 = vpop.f32.mrb[0].mxu0
    %v4342 = vadd.f32 0.0, %v4341
    %v4343 = vpop.f32.mrb[0].mxu0
    %4344 = vdwg.mxu0
    %v4345 = vadd.f32 %v4269, %v4342
    %v4346 = vxor.u32 %v4345, 2147483648
    %v4347 = vmul.f32 %v4346, 1.442695
    %v4348 = vpow.pop %v4347
    %v4349 = vadd.f32 %v4348, 1.0
    %v4350 = vrcp.pop %v4349
    %v4351 = vmul.f32 1.0, %v4350
    %v4352 = vadd.f32 %v4342, %v2905
    %4354 = vrot.lane.b32.xlu0 %v4352, 64
    %v4355 = vpop.permute.xlu0 %4354
    %v4357 = vmul.f32 %v4351, %v4355
    %4359 = vrot.lane.b32.xlu0 %v4357, 64
    %v4360 = vpop.permute.xlu0 %4359
    %v4362 = vadd.f32 %v4269, %v4360
    %v4363 = vtanh.pop %v4362
    %v4364 = vsub.f32 1.0, %v4351
    %4366 = vrot.lane.b32.xlu0 %v4363, 96
    %v4367 = vpop.permute.xlu0 %4366
    %v4369 = vmul.f32 %v4364, %v4367
    %v4370 = vmul.f32 %v4351, %v4165
    %v4371 = vadd.f32 %v4369, %v4370
    %4373 = vrot.lane.b32.xlu0 %v4268, 32
    %v4374 = vpop.permute.xlu0 %4373
    %4377 = vrot.lane.b32.xlu0 %v4371, 64
    %v4378 = vpop.permute.xlu0 %4377
    %v4380 = vsel %vm444, %v2130, %v2127
    %v4381 = vsel %vm149, %v4380, %v4374
    %v4382 = vsel %vm279, %v4381, %v4378
    %v4383 = vld [vmem:[%s8] sm:$0xff]
    %v4384 = vld [vmem:[%s8 + $0x8] sm:$0xff]
    %v4385 = vld [vmem:[%s8 + $0x10] sm:$0xff]
    %v4386 = vld [vmem:[%s8 + $0x18] sm:$0xff]
    %v4387 = vld [vmem:[%s8 + $0x20] sm:$0xff]
    %v4388 = vld [vmem:[%s8 + $0x28] sm:$0xff]
    %v4389 = vld [vmem:[%s8 + $0x30] sm:$0xff]
    %v4390 = vld [vmem:[%s8 + $0x38] sm:$0xff]
    %v4391 = vld [vmem:[%s8 + $0x40] sm:$0xff]
    %v4392 = vld [vmem:[%s8 + $0x48] sm:$0xff]
    %v4393 = vld [vmem:[%s8 + $0x50] sm:$0xff]
    %v4394 = vld [vmem:[%s8 + $0x58] sm:$0xff]
    %v4395 = vld [vmem:[%s8 + $0x60] sm:$0xff]
    %v4396 = vld [vmem:[%s8 + $0x68] sm:$0xff]
    %v4397 = vld [vmem:[%s8 + $0x70] sm:$0xff]
    %v4398 = vld [vmem:[%s8 + $0x78] sm:$0xff]
    %v4399 = vld [vmem:[%s9] sm:$0x1]
    %v4401 = vlaneseq
    %v4402 = vshrl.u32 %v4401, 7
    %v4403 = vsub.s32 0, %v4402
    %v4404 = vrot.slane %v4399, %v4403
    %4406 = vmatprep.subr.mxu0 0.0
    %4407 = vmatpush1.msra.mxu0 %v4383
    %4408 = vmatprep.subr.mxu0 0.0
    %4409 = vmatpush1.msra.mxu0 %v4384
    %4410 = vmatprep.subr.mxu0 0.0
    %4411 = vmatpush1.msra.mxu0 %v4385
    %4412 = vmatprep.subr.mxu0 0.0
    %4413 = vmatpush1.msra.mxu0 %v4386
    %4414 = vmatprep.subr.mxu0 0.0
    %4415 = vmatpush1.msra.mxu0 %v4387
    %4416 = vmatprep.subr.mxu0 0.0
    %4417 = vmatpush1.msra.mxu0 %v4388
    %4418 = vmatprep.subr.mxu0 0.0
    %4419 = vmatpush1.msra.mxu0 %v4389
    %4420 = vmatprep.subr.mxu0 0.0
    %4421 = vmatpush1.msra.mxu0 %v4390
    %4422 = vmatprep.subr.mxu0 0.0
    %4423 = vmatpush1.msra.mxu0 %v4391
    %4424 = vmatprep.subr.mxu0 0.0
    %4425 = vmatpush1.msra.mxu0 %v4392
    %4426 = vmatprep.subr.mxu0 0.0
    %4427 = vmatpush1.msra.mxu0 %v4393
    %4428 = vmatprep.subr.mxu0 0.0
    %4429 = vmatpush1.msra.mxu0 %v4394
    %4430 = vmatprep.subr.mxu0 0.0
    %4431 = vmatpush1.msra.mxu0 %v4395
    %4432 = vmatprep.subr.mxu0 0.0
    %4433 = vmatpush1.msra.mxu0 %v4396
    %4434 = vmatprep.subr.mxu0 0.0
    %4435 = vmatpush1.msra.mxu0 %v4397
    %4436 = vmatprep.subr.mxu0 0.0
    %4437 = vmatpush1.msra.mxu0 %v4398
    %4438 = vmatprep.subr.mxu0 0.0
    %4439 = vmatpush1.msra.mxu0 0.0
    %4440 = vmatprep.subr.mxu0 0.0
    %4441 = vmatpush1.msra.mxu0 0.0
    %4442 = vmatprep.subr.mxu0 0.0
    %4443 = vmatpush1.msra.mxu0 0.0
    %4444 = vmatprep.subr.mxu0 0.0
    %4445 = vmatpush1.msra.mxu0 0.0
    %4446 = vmatprep.subr.mxu0 0.0
    %4447 = vmatpush1.msra.mxu0 0.0
    %4448 = vmatprep.subr.mxu0 0.0
    %4449 = vmatpush1.msra.mxu0 0.0
    %4450 = vmatprep.subr.mxu0 0.0
    %4451 = vmatpush1.msra.mxu0 0.0
    %4452 = vmatprep.subr.mxu0 0.0
    %4453 = vmatpush1.msra.mxu0 0.0
    %4454 = vmatprep.subr.mxu0 0.0
    %4455 = vmatpush1.msra.mxu0 0.0
    %4456 = vmatprep.subr.mxu0 0.0
    %4457 = vmatpush1.msra.mxu0 0.0
    %4458 = vmatprep.subr.mxu0 0.0
    %4459 = vmatpush1.msra.mxu0 0.0
    %4460 = vmatprep.subr.mxu0 0.0
    %4461 = vmatpush1.msra.mxu0 0.0
    %4462 = vmatprep.subr.mxu0 0.0
    %4463 = vmatpush1.msra.mxu0 0.0
    %4464 = vmatprep.subr.mxu0 0.0
    %4465 = vmatpush1.msra.mxu0 0.0
    %4466 = vmatprep.subr.mxu0 0.0
    %4467 = vmatpush1.msra.mxu0 0.0
    %4468 = vmatprep.subr.mxu0 0.0
    %4469 = vmatpush1.msra.mxu0 0.0
    %4470 = vmatprep.mubr.f32.mxu0 0.0
    %4471 = vmatmul.mubr.f32.gmra.mrb[0].mxu0 %v4382
    %v4472 = vpop.f32.mrb[0].mxu0
    %v4473 = vadd.f32 %v4404, %v4472
    %v4474 = vpop.f32.mrb[0].mxu0
    %4475 = vdwg.mxu0
    %v4476 = vtanh.pop %v4473
    %v4477 = vld [vmem:[%s10] sm:$0x1]
    %v4479 = vlaneseq
    %v4480 = vshrl.u32 %v4479, 7
    %v4481 = vsub.s32 0, %v4480
    %v4482 = vrot.slane %v4477, %v4481
    %v4484 = vmul.f32 %v4476, %v4482
    %v4485 = vsel %vm444, %v4484, 0.0
    %4486 = vadd.xlane.f32.xlu0 %v4485
    %v4487 = vpop.xlane.xlu0 %4486
    %v4488 = vld [vmem:[#allocation6] sm:$0x1]
    %v4490 = vlaneseq
    %v4491 = vshrl.u32 %v4490, 7
    %v4492 = vsub.s32 0, %v4491
    %v4493 = vrot.slane %v4488, %v4492
    %v4495 = vadd.f32 %v4487, %v4493
    %v4496 = vxor.u32 %v4495, 2147483648
    %v4497 = vmul.f32 %v4496, 1.442695
    %v4498 = vpow.pop %v4497
    %v4499 = vadd.f32 %v4498, 1.0
    %v4500 = vrcp.pop %v4499
    %v4501 = vmul.f32 1.0, %v4500
    %4503 = vset.pattern.permute.xlu0 0
    %4504 = vperm.xlu0 %4503, %v4501
    %v4505 = vpop.permute.xlu0 %4504
    %4507 = vst [vmem:[#allocation18] sm:$0xff] %v4505
    // Predicated region
    $region74: #{tpu_custom_call.1} parent=1 // pred_check
      _
    $region75: #{tpu_custom_call.1} parent=1 // pred_check_branch
      %4509 = sbr.rel (0) target = $region77
    $region76: #{tpu_custom_call.1} parent=1 // pred_region
      %s4511 = ssub.s32 128, 128
      %4512 = vsyncadd [#allocation9], %s4511
      %s4514 = sshll.u32 [#allocation18], 4
      %s4515 = int_to_ptr.vmem [resolvable:$true] %s4514
      %4517 = dma.vmem_to_hbm [thread:$0]  %s4515, 128, %s12, [#allocation9]
    $region77: #{tpu_custom_call.1} parent=1 // pred_fallthru
      _
    // Predicated region
    $region78: #{tpu_custom_call.1} parent=1 // pred_check
      _
    $region79: #{tpu_custom_call.1} parent=1 // pred_check_branch
      %4519 = sbr.rel (0) target = $region81
    $region80: #{tpu_custom_call.1} parent=1 // pred_region
      %4520 = dma.done [#allocation9], 128
    $region81: #{tpu_custom_call.1} parent=1 // pred_fallthru
      _
    %4521 = vsyncpa [#allocation8], 1
    %4522 = vsyncpa [#allocation11], 1
    %4523 = vsyncpa [#allocation14], 1
    %4524 = vsyncpa [#allocation17], 1
    %4525 = vsyncpa [#allocation9], 1

</llo_original>
